<compile_context>
chip_gen: v7x
topology: tpu7x:2x2x1
jax: 0.10.0
libtpu: 0.0.40
codegen_flags: <defaults>
</compile_context>

<pallas_src>
import functools

import jax
import jax.numpy as jnp
from jax import lax
from jax.experimental import pallas as pl
from jax.experimental.pallas import tpu as pltpu


def _self_attention_kernel(x_ref, mask_ref, wq_ref, wk_ref, wv_ref, out_ref,
                           *, num_head, head_dim, seq_len):
    # x_ref:    (1, Lp, D)  channels-last activations for batch b (zero-padded rows)
    # mask_ref: (1, 1, Lp)  key-validity mask (1 keep / 0 pad); padded tail is 0
    # wq_ref:   (D, D)      query weight, transposed to (in, out), Dh**-0.5 folded in
    # wk_ref:   (D, D)      key   weight, transposed to (in, out)
    # wv_ref:   (D, D)      value weight, transposed to (in, out)
    # out_ref:  (1, D, Lp)  output already in PyTorch (B, D, L) layout (lane-dense L)
    x = x_ref[0]                                             # (Lp, D), input dtype
    lp = x.shape[0]

    # Full-width projections, once per batch (N = D keeps the MXU array filled).
    q = jnp.dot(x, wq_ref[...], preferred_element_type=jnp.float32)   # (Lp, D)
    k = jnp.dot(x, wk_ref[...], preferred_element_type=jnp.float32)   # (Lp, D)
    v = jnp.dot(x, wv_ref[...], preferred_element_type=jnp.float32)   # (Lp, D)
    q = q.astype(x.dtype)
    k = k.astype(x.dtype)
    v = v.astype(x.dtype)

    # Model mask over keys (same select semantics as mask_logits).
    key_keep = mask_ref[0] > 0.5                             # (1, Lp)
    # Kernel-added sequence padding must get *exactly* zero attention weight
    # (the reference has no such keys), including for fully-masked query rows.
    pad_keep = lax.broadcasted_iota(jnp.int32, (1, lp), 1) < seq_len  # (1, Lp)

    for h in range(num_head):
        lo = h * head_dim
        qh = q[:, lo:lo + head_dim]                          # (Lp, Dh)
        kh = k[:, lo:lo + head_dim]
        vh = v[:, lo:lo + head_dim]

        # logits (Lq, Lk): contract over the head dim ('qd,kd->qk'), MXU.
        logits = lax.dot_general(qh, kh, (((1,), (1,)), ((), ())),
                                 preferred_element_type=jnp.float32)
        logits = jnp.where(key_keep, logits, -1e30)

        # Numerically-stable softmax over keys (f32 on VPU/EUP).
        m = jnp.max(logits, axis=-1, keepdims=True)
        e = jnp.exp(logits - m)
        e = jnp.where(pad_keep, e, 0.0)
        s = jnp.sum(e, axis=-1, keepdims=True)
        p = e * pl.reciprocal(s, approx=True)

        # TODO(synk): attention dropout (p=0.1, training only) omitted here.
        # (Dh, Lq): contract v's key axis with p's key axis -> transposed head
        # output directly (no XLU transpose) with L on the MXU's N axis.
        oh = lax.dot_general(vh, p.astype(x.dtype), (((0,), (1,)), ((), ())),
                             preferred_element_type=jnp.float32)
        out_ref[0, pl.ds(lo, head_dim), :] = oh.astype(out_ref.dtype)


def self_attention(x, mask, w_q, w_kv, num_head):
    """QANet SelfAttention forward.

    x:     (B, d_model, L)  -- PyTorch NCL layout
    mask:  (B, L)           -- 1 for valid positions, 0 for padding
    w_q:   (d_model, d_model)      1x1 conv weight (out_ch, in_ch)
    w_kv:  (2*d_model, d_model)    1x1 conv weight (out_ch, in_ch)
    returns (B, d_model, L)
    """
    B, D, L = x.shape
    H = num_head
    assert D % H == 0
    Dh = D // H
    assert Dh % 8 == 0, "head dim must be a multiple of 8 for sublane tiling"
    scale = float(Dh) ** -0.5

    # Pad the sequence axis to a lane-dense multiple of 128 (unmasked vst/vld).
    Lp = -(-L // 128) * 128

    x_ld = jnp.transpose(x, (0, 2, 1))                       # (B, L, D) channels-last
    mask_f = mask.astype(jnp.float32)                        # (B, L)
    if Lp != L:
        x_ld = jnp.pad(x_ld, ((0, 0), (0, Lp - L), (0, 0)))
        mask_f = jnp.pad(mask_f, ((0, 0), (0, Lp - L)))
    mask3 = mask_f.reshape(B, 1, Lp)

    # Hoisted weight prep: transpose to (in, out); query scale folded in.
    wq_t = (w_q * scale).T.astype(x.dtype)                   # (D, D)
    wk_t = w_kv[:D].T.astype(x.dtype)                        # (D, D)
    wv_t = w_kv[D:].T.astype(x.dtype)                        # (D, D)

    kernel = functools.partial(_self_attention_kernel,
                               num_head=H, head_dim=Dh, seq_len=L)

    out_p = pl.pallas_call(
        kernel,
        out_shape=jax.ShapeDtypeStruct((B, D, Lp), x.dtype),
        grid=(B,),
        in_specs=[
            pl.BlockSpec((1, Lp, D), lambda b: (b, 0, 0)),   # x (padded, chan-last)
            pl.BlockSpec((1, 1, Lp), lambda b: (b, 0, 0)),   # mask
            pl.BlockSpec((D, D), lambda b: (0, 0)),          # W_q (scale folded)
            pl.BlockSpec((D, D), lambda b: (0, 0)),          # W_k
            pl.BlockSpec((D, D), lambda b: (0, 0)),          # W_v
        ],
        out_specs=pl.BlockSpec((1, D, Lp), lambda b: (b, 0, 0)),
        compiler_params=pltpu.CompilerParams(
            dimension_semantics=("parallel",)),
    )(x_ld, mask3, wq_t, wk_t, wv_t)

    return out_p[:, :, :L]


def _reference(x, mask, w_q, w_kv, num_head):
    """Pure-JAX mirror of the PyTorch SelfAttention.forward (no dropout)."""
    B, D, L = x.shape
    H = num_head
    Dh = D // H
    hi = jax.lax.Precision.HIGHEST

    kv = jnp.einsum('oc,bcl->bol', w_kv, x, precision=hi)      # (B, 2D, L)
    query = jnp.einsum('oc,bcl->bol', w_q, x, precision=hi)    # (B, D, L)
    kv = jnp.transpose(kv, (0, 2, 1))                          # (B, L, 2D)
    query = jnp.transpose(query, (0, 2, 1))                    # (B, L, D)

    def split(t):  # (B, L, D) -> (B, H, L, Dh)
        return jnp.transpose(t.reshape(B, L, H, Dh), (0, 2, 1, 3))

    Q = split(query) * (Dh ** -0.5)
    K = split(kv[:, :, :D])
    V = split(kv[:, :, D:])

    logits = jnp.einsum('bhqd,bhkd->bhqk', Q, K, precision=hi)  # (B, H, L, L)
    m = mask.astype(jnp.float32).reshape(B, 1, 1, L)
    logits = logits * m + (1 - m) * -1e30
    w = jax.nn.softmax(logits, axis=-1)
    out = jnp.einsum('bhqk,bhkd->bhqd', w, V, precision=hi)     # (B, H, L, Dh)
    out = jnp.transpose(out, (0, 2, 1, 3)).reshape(B, L, D)     # (B, L, D)
    return jnp.transpose(out, (0, 2, 1))                        # (B, D, L)


if __name__ == "__main__":
    B, D, L, H = 2, 32, 16, 4          # batch, d_model, seq_len, num_head (Dh = 8)

    key = jax.random.PRNGKey(0)
    k1, k2, k3, k4 = jax.random.split(key, 4)

    # input activations, PyTorch (B, d_model, L) layout
    x = jax.random.normal(k1, (B, D, L), dtype=jnp.float32)

    # mask: 1 for valid positions, 0 for padding (pad tail of second sequence)
    lengths = jnp.array([L, L - 5], dtype=jnp.int32)
    mask = (jnp.arange(L)[None, :] < lengths[:, None]).astype(jnp.float32)

    # xavier_uniform-style init for the two 1x1 conv weights
    bq = (6.0 / (D + D)) ** 0.5
    bkv = (6.0 / (D + 2 * D)) ** 0.5
    w_q = jax.random.uniform(k3, (D, D), jnp.float32, -bq, bq)
    w_kv = jax.random.uniform(k4, (2 * D, D), jnp.float32, -bkv, bkv)

    out = self_attention(x, mask, w_q, w_kv, H)
    jax.block_until_ready(out)

    ref = _reference(x, mask, w_q, w_kv, H)
    assert out.shape == (B, D, L)
    # tolerance relaxed vs 1e-4 to accommodate the approx EUP reciprocal in softmax
    assert jnp.allclose(out, ref, atol=2e-3, rtol=2e-3), (
        float(jnp.max(jnp.abs(out - ref))))

    print("KERNEL_OK")
</pallas_src>

<mosaic_0001>
module attributes {stable_mosaic.version = 11 : i64} {
  func.func @_self_attention_kernel(%arg0: i32, %arg1: memref<1x128x32xf32, #tpu.memory_space<vmem>>, %arg2: memref<1x1x128xf32, #tpu.memory_space<vmem>>, %arg3: memref<32x32xf32, #tpu.memory_space<vmem>>, %arg4: memref<32x32xf32, #tpu.memory_space<vmem>>, %arg5: memref<32x32xf32, #tpu.memory_space<vmem>>, %arg6: memref<1x32x128xf32, #tpu.memory_space<vmem>>) attributes {dimension_semantics = [#tpu.dimension_semantics<parallel>], iteration_bounds = array<i64: 2>, scalar_prefetch = 0 : i64, scratch_operands = 0 : i64, tpu.core_type = #tpu.core_type<tc>, window_params = [{transform_indices = @transform_0, window_bounds = array<i64: 1, 128, 32>}, {transform_indices = @transform_1, window_bounds = array<i64: 1, 1, 128>}, {pipeline_mode = #tpu.pipeline_mode<synchronous>, transform_indices = @transform_2, window_bounds = array<i64: 32, 32>}, {pipeline_mode = #tpu.pipeline_mode<synchronous>, transform_indices = @transform_3, window_bounds = array<i64: 32, 32>}, {pipeline_mode = #tpu.pipeline_mode<synchronous>, transform_indices = @transform_4, window_bounds = array<i64: 32, 32>}, {transform_indices = @transform_5, window_bounds = array<i64: 1, 32, 128>}]} {
    %c0 = arith.constant 0 : index
    %c0_0 = arith.constant 0 : index
    %c0_1 = arith.constant 0 : index
    %0 = vector.load %arg1[%c0, %c0_0, %c0_1] : memref<1x128x32xf32, #tpu.memory_space<vmem>>, vector<1x128x32xf32>
    %1 = vector.shape_cast %0 : vector<1x128x32xf32> to vector<128x32xf32>
    %c0_2 = arith.constant 0 : index
    %c0_3 = arith.constant 0 : index
    %2 = vector.load %arg3[%c0_2, %c0_3] : memref<32x32xf32, #tpu.memory_space<vmem>>, vector<32x32xf32>
    %cst = arith.constant dense<0.000000e+00> : vector<128x32xf32>
    %3 = tpu.matmul %1, %2, %cst {dimension_numbers = #tpu.dot_dimension_numbers<[1], [0], [0], [1], [0, 0, 1, 1], [], []>} : vector<128x32xf32>, vector<32x32xf32>, vector<128x32xf32> -> vector<128x32xf32>
    %c0_4 = arith.constant 0 : index
    %c0_5 = arith.constant 0 : index
    %4 = vector.load %arg4[%c0_4, %c0_5] : memref<32x32xf32, #tpu.memory_space<vmem>>, vector<32x32xf32>
    %cst_6 = arith.constant dense<0.000000e+00> : vector<128x32xf32>
    %5 = tpu.matmul %1, %4, %cst_6 {dimension_numbers = #tpu.dot_dimension_numbers<[1], [0], [0], [1], [0, 0, 1, 1], [], []>} : vector<128x32xf32>, vector<32x32xf32>, vector<128x32xf32> -> vector<128x32xf32>
    %c0_7 = arith.constant 0 : index
    %c0_8 = arith.constant 0 : index
    %6 = vector.load %arg5[%c0_7, %c0_8] : memref<32x32xf32, #tpu.memory_space<vmem>>, vector<32x32xf32>
    %cst_9 = arith.constant dense<0.000000e+00> : vector<128x32xf32>
    %7 = tpu.matmul %1, %6, %cst_9 {dimension_numbers = #tpu.dot_dimension_numbers<[1], [0], [0], [1], [0, 0, 1, 1], [], []>} : vector<128x32xf32>, vector<32x32xf32>, vector<128x32xf32> -> vector<128x32xf32>
    %c0_10 = arith.constant 0 : index
    %c0_11 = arith.constant 0 : index
    %c0_12 = arith.constant 0 : index
    %8 = vector.load %arg2[%c0_10, %c0_11, %c0_12] : memref<1x1x128xf32, #tpu.memory_space<vmem>>, vector<1x1x128xf32>
    %9 = vector.shape_cast %8 : vector<1x1x128xf32> to vector<1x128xf32>
    %cst_13 = arith.constant 5.000000e-01 : f32
    %10 = vector.broadcast %cst_13 : f32 to vector<1x128xf32>
    %11 = arith.cmpf ogt, %9, %10 : vector<1x128xf32>
    %12 = tpu.iota {dimensions = array<i32: 1>} : vector<1x128xi32>
    %c16_i32 = arith.constant 16 : i32
    %13 = vector.broadcast %c16_i32 : i32 to vector<1x128xi32>
    %14 = arith.cmpi slt, %12, %13 : vector<1x128xi32>
    %15 = vector.extract_strided_slice %3 {offsets = [0, 0], sizes = [128, 8], strides = [1, 1]} : vector<128x32xf32> to vector<128x8xf32>
    %16 = vector.extract_strided_slice %5 {offsets = [0, 0], sizes = [128, 8], strides = [1, 1]} : vector<128x32xf32> to vector<128x8xf32>
    %17 = vector.extract_strided_slice %7 {offsets = [0, 0], sizes = [128, 8], strides = [1, 1]} : vector<128x32xf32> to vector<128x8xf32>
    %cst_14 = arith.constant dense<0.000000e+00> : vector<128x128xf32>
    %18 = tpu.matmul %15, %16, %cst_14 {dimension_numbers = #tpu.dot_dimension_numbers<[1], [1], [0], [0], [0, 0, 1, 0], [], []>} : vector<128x8xf32>, vector<128x8xf32>, vector<128x128xf32> -> vector<128x128xf32>
    %cst_15 = arith.constant -1.000000e+30 : f32
    %19 = vector.shape_cast %11 : vector<1x128xi1> to vector<1x128xi1>
    %20 = vector.broadcast %19 : vector<1x128xi1> to vector<128x128xi1>
    %21 = vector.broadcast %cst_15 : f32 to vector<128x128xf32>
    %22 = arith.select %20, %18, %21 : vector<128x128xi1>, vector<128x128xf32>
    %cst_16 = arith.constant dense<0xFF800000> : vector<128xf32>
    %23 = vector.multi_reduction <maximumf>, %22, %cst_16 [1] : vector<128x128xf32> to vector<128xf32>
    %24 = vector.shape_cast %23 : vector<128xf32> to vector<128x1xf32>
    %25 = vector.broadcast %24 : vector<128x1xf32> to vector<128x128xf32>
    %26 = arith.subf %22, %25 : vector<128x128xf32>
    %27 = math.exp %26 : vector<128x128xf32>
    %cst_17 = arith.constant 0.000000e+00 : f32
    %28 = vector.shape_cast %14 : vector<1x128xi1> to vector<1x128xi1>
    %29 = vector.broadcast %28 : vector<1x128xi1> to vector<128x128xi1>
    %30 = vector.broadcast %cst_17 : f32 to vector<128x128xf32>
    %31 = arith.select %29, %27, %30 : vector<128x128xi1>, vector<128x128xf32>
    %cst_18 = arith.constant dense<0.000000e+00> : vector<128xf32>
    %32 = vector.multi_reduction <add>, %31, %cst_18 [1] : vector<128x128xf32> to vector<128xf32>
    %33 = vector.shape_cast %32 : vector<128xf32> to vector<128x1xf32>
    %34 = tpu.reciprocal %33 {approx = true} : vector<128x1xf32> -> vector<128x1xf32>
    %35 = vector.broadcast %34 : vector<128x1xf32> to vector<128x128xf32>
    %36 = arith.mulf %31, %35 : vector<128x128xf32>
    %cst_19 = arith.constant dense<0.000000e+00> : vector<8x128xf32>
    %37 = tpu.matmul %17, %36, %cst_19 {dimension_numbers = #tpu.dot_dimension_numbers<[0], [1], [1], [0], [0, 1, 1, 0], [], []>} : vector<128x8xf32>, vector<128x128xf32>, vector<8x128xf32> -> vector<8x128xf32>
    %c0_20 = arith.constant 0 : index
    %c0_21 = arith.constant 0 : index
    %c0_22 = arith.constant 0 : index
    %38 = vector.load %arg6[%c0_20, %c0_21, %c0_22] : memref<1x32x128xf32, #tpu.memory_space<vmem>>, vector<1x8x128xf32>
    %39 = vector.shape_cast %38 : vector<1x8x128xf32> to vector<8x128xf32>
    %40 = vector.shape_cast %37 : vector<8x128xf32> to vector<1x8x128xf32>
    tpu.vector_store %arg6[%c0_20, %c0_21, %c0_22], %40 {strides = array<i32>} : memref<1x32x128xf32, #tpu.memory_space<vmem>>, vector<1x8x128xf32>,
    %41 = vector.extract_strided_slice %3 {offsets = [0, 8], sizes = [128, 8], strides = [1, 1]} : vector<128x32xf32> to vector<128x8xf32>
    %42 = vector.extract_strided_slice %5 {offsets = [0, 8], sizes = [128, 8], strides = [1, 1]} : vector<128x32xf32> to vector<128x8xf32>
    %43 = vector.extract_strided_slice %7 {offsets = [0, 8], sizes = [128, 8], strides = [1, 1]} : vector<128x32xf32> to vector<128x8xf32>
    %cst_23 = arith.constant dense<0.000000e+00> : vector<128x128xf32>
    %44 = tpu.matmul %41, %42, %cst_23 {dimension_numbers = #tpu.dot_dimension_numbers<[1], [1], [0], [0], [0, 0, 1, 0], [], []>} : vector<128x8xf32>, vector<128x8xf32>, vector<128x128xf32> -> vector<128x128xf32>
    %cst_24 = arith.constant -1.000000e+30 : f32
    %45 = vector.shape_cast %11 : vector<1x128xi1> to vector<1x128xi1>
    %46 = vector.broadcast %45 : vector<1x128xi1> to vector<128x128xi1>
    %47 = vector.broadcast %cst_24 : f32 to vector<128x128xf32>
    %48 = arith.select %46, %44, %47 : vector<128x128xi1>, vector<128x128xf32>
    %cst_25 = arith.constant dense<0xFF800000> : vector<128xf32>
    %49 = vector.multi_reduction <maximumf>, %48, %cst_25 [1] : vector<128x128xf32> to vector<128xf32>
    %50 = vector.shape_cast %49 : vector<128xf32> to vector<128x1xf32>
    %51 = vector.broadcast %50 : vector<128x1xf32> to vector<128x128xf32>
    %52 = arith.subf %48, %51 : vector<128x128xf32>
    %53 = math.exp %52 : vector<128x128xf32>
    %cst_26 = arith.constant 0.000000e+00 : f32
    %54 = vector.shape_cast %14 : vector<1x128xi1> to vector<1x128xi1>
    %55 = vector.broadcast %54 : vector<1x128xi1> to vector<128x128xi1>
    %56 = vector.broadcast %cst_26 : f32 to vector<128x128xf32>
    %57 = arith.select %55, %53, %56 : vector<128x128xi1>, vector<128x128xf32>
    %cst_27 = arith.constant dense<0.000000e+00> : vector<128xf32>
    %58 = vector.multi_reduction <add>, %57, %cst_27 [1] : vector<128x128xf32> to vector<128xf32>
    %59 = vector.shape_cast %58 : vector<128xf32> to vector<128x1xf32>
    %60 = tpu.reciprocal %59 {approx = true} : vector<128x1xf32> -> vector<128x1xf32>
    %61 = vector.broadcast %60 : vector<128x1xf32> to vector<128x128xf32>
    %62 = arith.mulf %57, %61 : vector<128x128xf32>
    %cst_28 = arith.constant dense<0.000000e+00> : vector<8x128xf32>
    %63 = tpu.matmul %43, %62, %cst_28 {dimension_numbers = #tpu.dot_dimension_numbers<[0], [1], [1], [0], [0, 1, 1, 0], [], []>} : vector<128x8xf32>, vector<128x128xf32>, vector<8x128xf32> -> vector<8x128xf32>
    %c0_29 = arith.constant 0 : index
    %c8 = arith.constant 8 : index
    %c0_30 = arith.constant 0 : index
    %64 = vector.load %arg6[%c0_29, %c8, %c0_30] : memref<1x32x128xf32, #tpu.memory_space<vmem>>, vector<1x8x128xf32>
    %65 = vector.shape_cast %64 : vector<1x8x128xf32> to vector<8x128xf32>
    %66 = vector.shape_cast %63 : vector<8x128xf32> to vector<1x8x128xf32>
    tpu.vector_store %arg6[%c0_29, %c8, %c0_30], %66 {strides = array<i32>} : memref<1x32x128xf32, #tpu.memory_space<vmem>>, vector<1x8x128xf32>,
    %67 = vector.extract_strided_slice %3 {offsets = [0, 16], sizes = [128, 8], strides = [1, 1]} : vector<128x32xf32> to vector<128x8xf32>
    %68 = vector.extract_strided_slice %5 {offsets = [0, 16], sizes = [128, 8], strides = [1, 1]} : vector<128x32xf32> to vector<128x8xf32>
    %69 = vector.extract_strided_slice %7 {offsets = [0, 16], sizes = [128, 8], strides = [1, 1]} : vector<128x32xf32> to vector<128x8xf32>
    %cst_31 = arith.constant dense<0.000000e+00> : vector<128x128xf32>
    %70 = tpu.matmul %67, %68, %cst_31 {dimension_numbers = #tpu.dot_dimension_numbers<[1], [1], [0], [0], [0, 0, 1, 0], [], []>} : vector<128x8xf32>, vector<128x8xf32>, vector<128x128xf32> -> vector<128x128xf32>
    %cst_32 = arith.constant -1.000000e+30 : f32
    %71 = vector.shape_cast %11 : vector<1x128xi1> to vector<1x128xi1>
    %72 = vector.broadcast %71 : vector<1x128xi1> to vector<128x128xi1>
    %73 = vector.broadcast %cst_32 : f32 to vector<128x128xf32>
    %74 = arith.select %72, %70, %73 : vector<128x128xi1>, vector<128x128xf32>
    %cst_33 = arith.constant dense<0xFF800000> : vector<128xf32>
    %75 = vector.multi_reduction <maximumf>, %74, %cst_33 [1] : vector<128x128xf32> to vector<128xf32>
    %76 = vector.shape_cast %75 : vector<128xf32> to vector<128x1xf32>
    %77 = vector.broadcast %76 : vector<128x1xf32> to vector<128x128xf32>
    %78 = arith.subf %74, %77 : vector<128x128xf32>
    %79 = math.exp %78 : vector<128x128xf32>
    %cst_34 = arith.constant 0.000000e+00 : f32
    %80 = vector.shape_cast %14 : vector<1x128xi1> to vector<1x128xi1>
    %81 = vector.broadcast %80 : vector<1x128xi1> to vector<128x128xi1>
    %82 = vector.broadcast %cst_34 : f32 to vector<128x128xf32>
    %83 = arith.select %81, %79, %82 : vector<128x128xi1>, vector<128x128xf32>
    %cst_35 = arith.constant dense<0.000000e+00> : vector<128xf32>
    %84 = vector.multi_reduction <add>, %83, %cst_35 [1] : vector<128x128xf32> to vector<128xf32>
    %85 = vector.shape_cast %84 : vector<128xf32> to vector<128x1xf32>
    %86 = tpu.reciprocal %85 {approx = true} : vector<128x1xf32> -> vector<128x1xf32>
    %87 = vector.broadcast %86 : vector<128x1xf32> to vector<128x128xf32>
    %88 = arith.mulf %83, %87 : vector<128x128xf32>
    %cst_36 = arith.constant dense<0.000000e+00> : vector<8x128xf32>
    %89 = tpu.matmul %69, %88, %cst_36 {dimension_numbers = #tpu.dot_dimension_numbers<[0], [1], [1], [0], [0, 1, 1, 0], [], []>} : vector<128x8xf32>, vector<128x128xf32>, vector<8x128xf32> -> vector<8x128xf32>
    %c0_37 = arith.constant 0 : index
    %c16 = arith.constant 16 : index
    %c0_38 = arith.constant 0 : index
    %90 = vector.load %arg6[%c0_37, %c16, %c0_38] : memref<1x32x128xf32, #tpu.memory_space<vmem>>, vector<1x8x128xf32>
    %91 = vector.shape_cast %90 : vector<1x8x128xf32> to vector<8x128xf32>
    %92 = vector.shape_cast %89 : vector<8x128xf32> to vector<1x8x128xf32>
    tpu.vector_store %arg6[%c0_37, %c16, %c0_38], %92 {strides = array<i32>} : memref<1x32x128xf32, #tpu.memory_space<vmem>>, vector<1x8x128xf32>,
    %93 = vector.extract_strided_slice %3 {offsets = [0, 24], sizes = [128, 8], strides = [1, 1]} : vector<128x32xf32> to vector<128x8xf32>
    %94 = vector.extract_strided_slice %5 {offsets = [0, 24], sizes = [128, 8], strides = [1, 1]} : vector<128x32xf32> to vector<128x8xf32>
    %95 = vector.extract_strided_slice %7 {offsets = [0, 24], sizes = [128, 8], strides = [1, 1]} : vector<128x32xf32> to vector<128x8xf32>
    %cst_39 = arith.constant dense<0.000000e+00> : vector<128x128xf32>
    %96 = tpu.matmul %93, %94, %cst_39 {dimension_numbers = #tpu.dot_dimension_numbers<[1], [1], [0], [0], [0, 0, 1, 0], [], []>} : vector<128x8xf32>, vector<128x8xf32>, vector<128x128xf32> -> vector<128x128xf32>
    %cst_40 = arith.constant -1.000000e+30 : f32
    %97 = vector.shape_cast %11 : vector<1x128xi1> to vector<1x128xi1>
    %98 = vector.broadcast %97 : vector<1x128xi1> to vector<128x128xi1>
    %99 = vector.broadcast %cst_40 : f32 to vector<128x128xf32>
    %100 = arith.select %98, %96, %99 : vector<128x128xi1>, vector<128x128xf32>
    %cst_41 = arith.constant dense<0xFF800000> : vector<128xf32>
    %101 = vector.multi_reduction <maximumf>, %100, %cst_41 [1] : vector<128x128xf32> to vector<128xf32>
    %102 = vector.shape_cast %101 : vector<128xf32> to vector<128x1xf32>
    %103 = vector.broadcast %102 : vector<128x1xf32> to vector<128x128xf32>
    %104 = arith.subf %100, %103 : vector<128x128xf32>
    %105 = math.exp %104 : vector<128x128xf32>
    %cst_42 = arith.constant 0.000000e+00 : f32
    %106 = vector.shape_cast %14 : vector<1x128xi1> to vector<1x128xi1>
    %107 = vector.broadcast %106 : vector<1x128xi1> to vector<128x128xi1>
    %108 = vector.broadcast %cst_42 : f32 to vector<128x128xf32>
    %109 = arith.select %107, %105, %108 : vector<128x128xi1>, vector<128x128xf32>
    %cst_43 = arith.constant dense<0.000000e+00> : vector<128xf32>
    %110 = vector.multi_reduction <add>, %109, %cst_43 [1] : vector<128x128xf32> to vector<128xf32>
    %111 = vector.shape_cast %110 : vector<128xf32> to vector<128x1xf32>
    %112 = tpu.reciprocal %111 {approx = true} : vector<128x1xf32> -> vector<128x1xf32>
    %113 = vector.broadcast %112 : vector<128x1xf32> to vector<128x128xf32>
    %114 = arith.mulf %109, %113 : vector<128x128xf32>
    %cst_44 = arith.constant dense<0.000000e+00> : vector<8x128xf32>
    %115 = tpu.matmul %95, %114, %cst_44 {dimension_numbers = #tpu.dot_dimension_numbers<[0], [1], [1], [0], [0, 1, 1, 0], [], []>} : vector<128x8xf32>, vector<128x128xf32>, vector<8x128xf32> -> vector<8x128xf32>
    %c0_45 = arith.constant 0 : index
    %c24 = arith.constant 24 : index
    %c0_46 = arith.constant 0 : index
    %116 = vector.load %arg6[%c0_45, %c24, %c0_46] : memref<1x32x128xf32, #tpu.memory_space<vmem>>, vector<1x8x128xf32>
    %117 = vector.shape_cast %116 : vector<1x8x128xf32> to vector<8x128xf32>
    %118 = vector.shape_cast %115 : vector<8x128xf32> to vector<1x8x128xf32>
    tpu.vector_store %arg6[%c0_45, %c24, %c0_46], %118 {strides = array<i32>} : memref<1x32x128xf32, #tpu.memory_space<vmem>>, vector<1x8x128xf32>,
    return
  }
  func.func @transform_0(%arg0: i32) -> (i32, i32, i32) {
    %c0_i32 = arith.constant 0 : i32
    %c0_i32_0 = arith.constant 0 : i32
    %c0_i32_1 = arith.constant 0 : i32
    return %arg0, %c0_i32, %c0_i32_0 : i32, i32, i32
  }
  func.func @transform_1(%arg0: i32) -> (i32, i32, i32) {
    %c0_i32 = arith.constant 0 : i32
    %c0_i32_0 = arith.constant 0 : i32
    %c0_i32_1 = arith.constant 0 : i32
    return %arg0, %c0_i32, %c0_i32_0 : i32, i32, i32
  }
  func.func @transform_2(%arg0: i32) -> (i32, i32) {
    %c0_i32 = arith.constant 0 : i32
    %c0_i32_0 = arith.constant 0 : i32
    %c0_i32_1 = arith.constant 0 : i32
    return %c0_i32, %c0_i32_0 : i32, i32
  }
  func.func @transform_3(%arg0: i32) -> (i32, i32) {
    %c0_i32 = arith.constant 0 : i32
    %c0_i32_0 = arith.constant 0 : i32
    %c0_i32_1 = arith.constant 0 : i32
    return %c0_i32, %c0_i32_0 : i32, i32
  }
  func.func @transform_4(%arg0: i32) -> (i32, i32) {
    %c0_i32 = arith.constant 0 : i32
    %c0_i32_0 = arith.constant 0 : i32
    %c0_i32_1 = arith.constant 0 : i32
    return %c0_i32, %c0_i32_0 : i32, i32
  }
  func.func @transform_5(%arg0: i32) -> (i32, i32, i32) {
    %c0_i32 = arith.constant 0 : i32
    %c0_i32_0 = arith.constant 0 : i32
    %c0_i32_1 = arith.constant 0 : i32
    return %arg0, %c0_i32, %c0_i32_0 : i32, i32, i32
  }
}

</mosaic_0001>

<llo_original>
// kernel: tpu_custom_call.1
$region0: #{tpu_custom_call.1}
  #allocation0 [shape = 'u32[]', space=smem, size = 0x4, offset = 0x4, fixed_abs, tag = 'smem constant byte address 0x4 - core index']
  #allocation1 [shape = 'u32[144,128]{1,0:T(1,128)}', space=vmem, size = 0x12000, scoped, tag = 'internal scratch']
  %s0 = inlined_call_operand.vmem [shape: f32[2,128,32], index: 0, kind: input, shape index: {}]
  %s1 = inlined_call_operand.vmem [shape: f32[2,1,128], index: 1, kind: input, shape index: {}]
  %s2 = inlined_call_operand.vmem [shape: f32[32,32], index: 2, kind: input, shape index: {}]
  %s3 = inlined_call_operand.vmem [shape: f32[32,32], index: 3, kind: input, shape index: {}]
  %s4 = inlined_call_operand.vmem [shape: f32[32,32], index: 4, kind: input, shape index: {}]
  %s5 = inlined_call_operand.hbm [shape: f32[2,32,128], index: 5, kind: output, shape index: {}]
  %s6 = sld [smem:[#allocation0]]
  $region53: #{tpu_custom_call.1} parent=0
    _
  %s8 = ssub.s32 1, %s6
  %s9 = scalar_select 0, %s8, %s6
  $region1: #{tpu_custom_call.1} parent=0
    #allocation2 [shape = 'u8[32768]{0}', space=vmem, size = 0x8000, scoped, tag = 'output window, operand 0']
    #allocation3 [shape = 's32[2]{0}', space=sflag, size = 0x8, scoped, tag = 'scoped memory for tpu_custom_call.1']
    %10 = vsyncpa [#allocation3], 0
    %s11 = scalar_lea.sflag [#allocation3], 1
    %12 = vsyncpa %s11, 0
    loop: start=0, step=1, limit=4
    $region2: #{tpu_custom_call.1} parent=1 // loop_pre_header
      _
    $region3: #{tpu_custom_call.1} parent=1 // loop_header
      %s14 = sphi 0, %s18
      %p15 = scmp.ge.s32.totalorder %s14, 4
      %s24 = sphi 0, %s26
      %s27 = sphi 0, %s24
      %s28 = sphi 0, %s27
      %s44 = sphi 0, %s28
      %s50 = sphi 0, %s52
      %s53 = sphi 0, %s50
      %s54 = sphi 0, %s53
      %s70 = sphi 0, %s54
      %s74 = sphi 0, %s74
      %s76 = sphi 0, %s74
      %s77 = sphi 0, %s76
      %s91 = sphi 0, %s77
      %s95 = sphi 0, %s95
      %s97 = sphi 0, %s95
      %s98 = sphi 0, %s97
      %s112 = sphi 0, %s98
      %s116 = sphi 0, %s116
      %s118 = sphi 0, %s116
      %s119 = sphi 0, %s118
      %s133 = sphi 0, %s119
      %s139 = sphi 0, %s141
      %s142 = sphi 0, %s139
      %s143 = sphi 0, %s142
      %s159 = sphi 0, %s143
    $region4: #{tpu_custom_call.1} parent=1 // loop_header_branch
      %17 = sbr.rel (%p15) target = $region8
    $region5: #{tpu_custom_call.1} parent=1 // loop_body
      %s19 = ssub.s32 %s14, 1
      %s20 = ssub.s32 %s14, 2
      %s21 = sadd.s32 %s14, 1
      %s22 = ssub.s32 %s14, %s21
      %p23 = scmp.eq.s32.totalorder %s22, 0
      %s25 = sadd.s32 %s24, 1
      %s26 = scalar_select %p23, %s24, %s25
      %p29 = pneg %p23
      %p30 = scmp.eq.s32.totalorder %s14, 1
      %p31 = por %p29, %p30
      %p32 = scmp.ne.s32.totalorder %s24, %s27
      %p33 = scmp.eq.s32.totalorder %s14, 0
      %p34 = por %p32, %p33
      %p35 = scmp.ne.s32.totalorder %s24, %s27
      %p36 = scmp.eq.s32.totalorder %s19, 1
      %p37 = por %p35, %p36
      %p38 = scmp.ne.s32.totalorder %s27, %s28
      %p39 = scmp.eq.s32.totalorder %s19, 0
      %p40 = por %p38, %p39
      %p41 = scmp.ne.s32.totalorder %s27, %s28
      %p42 = scmp.eq.s32.totalorder %s20, 1
      %p43 = por %p41, %p42
      %p45 = scmp.ne.s32.totalorder %s28, %s44
      %p46 = scmp.eq.s32.totalorder %s20, 0
      %p47 = por %p45, %p46
      %s48 = ssub.s32 %s14, %s21
      %p49 = scmp.eq.s32.totalorder %s48, 0
      %s51 = sadd.s32 %s50, 1
      %s52 = scalar_select %p49, %s50, %s51
      %p55 = pneg %p49
      %p56 = scmp.eq.s32.totalorder %s14, 1
      %p57 = por %p55, %p56
      %p58 = scmp.ne.s32.totalorder %s50, %s53
      %p59 = scmp.eq.s32.totalorder %s14, 0
      %p60 = por %p58, %p59
      %p61 = scmp.ne.s32.totalorder %s50, %s53
      %p62 = scmp.eq.s32.totalorder %s19, 1
      %p63 = por %p61, %p62
      %p64 = scmp.ne.s32.totalorder %s53, %s54
      %p65 = scmp.eq.s32.totalorder %s19, 0
      %p66 = por %p64, %p65
      %p67 = scmp.ne.s32.totalorder %s53, %s54
      %p68 = scmp.eq.s32.totalorder %s20, 1
      %p69 = por %p67, %p68
      %p71 = scmp.ne.s32.totalorder %s54, %s70
      %p72 = scmp.eq.s32.totalorder %s20, 0
      %p73 = por %p71, %p72
      %s75 = sadd.s32 %s74, 1
      %p78 = scmp.eq.s32.totalorder %s14, 1
      %p79 = scmp.ne.s32.totalorder %s74, %s76
      %p80 = scmp.eq.s32.totalorder %s14, 0
      %p81 = por %p79, %p80
      %p82 = scmp.ne.s32.totalorder %s74, %s76
      %p83 = scmp.eq.s32.totalorder %s19, 1
      %p84 = por %p82, %p83
      %p85 = scmp.ne.s32.totalorder %s76, %s77
      %p86 = scmp.eq.s32.totalorder %s19, 0
      %p87 = por %p85, %p86
      %p88 = scmp.ne.s32.totalorder %s76, %s77
      %p89 = scmp.eq.s32.totalorder %s20, 1
      %p90 = por %p88, %p89
      %p92 = scmp.ne.s32.totalorder %s77, %s91
      %p93 = scmp.eq.s32.totalorder %s20, 0
      %p94 = por %p92, %p93
      %s96 = sadd.s32 %s95, 1
      %p99 = scmp.eq.s32.totalorder %s14, 1
      %p100 = scmp.ne.s32.totalorder %s95, %s97
      %p101 = scmp.eq.s32.totalorder %s14, 0
      %p102 = por %p100, %p101
      %p103 = scmp.ne.s32.totalorder %s95, %s97
      %p104 = scmp.eq.s32.totalorder %s19, 1
      %p105 = por %p103, %p104
      %p106 = scmp.ne.s32.totalorder %s97, %s98
      %p107 = scmp.eq.s32.totalorder %s19, 0
      %p108 = por %p106, %p107
      %p109 = scmp.ne.s32.totalorder %s97, %s98
      %p110 = scmp.eq.s32.totalorder %s20, 1
      %p111 = por %p109, %p110
      %p113 = scmp.ne.s32.totalorder %s98, %s112
      %p114 = scmp.eq.s32.totalorder %s20, 0
      %p115 = por %p113, %p114
      %s117 = sadd.s32 %s116, 1
      %p120 = scmp.eq.s32.totalorder %s14, 1
      %p121 = scmp.ne.s32.totalorder %s116, %s118
      %p122 = scmp.eq.s32.totalorder %s14, 0
      %p123 = por %p121, %p122
      %p124 = scmp.ne.s32.totalorder %s116, %s118
      %p125 = scmp.eq.s32.totalorder %s19, 1
      %p126 = por %p124, %p125
      %p127 = scmp.ne.s32.totalorder %s118, %s119
      %p128 = scmp.eq.s32.totalorder %s19, 0
      %p129 = por %p127, %p128
      %p130 = scmp.ne.s32.totalorder %s118, %s119
      %p131 = scmp.eq.s32.totalorder %s20, 1
      %p132 = por %p130, %p131
      %p134 = scmp.ne.s32.totalorder %s119, %s133
      %p135 = scmp.eq.s32.totalorder %s20, 0
      %p136 = por %p134, %p135
      %s137 = ssub.s32 %s14, %s21
      %p138 = scmp.eq.s32.totalorder %s137, 0
      %s140 = sadd.s32 %s139, 1
      %s141 = scalar_select %p138, %s139, %s140
      %p144 = pneg %p138
      %p145 = scmp.eq.s32.totalorder %s14, 1
      %p146 = por %p144, %p145
      %p147 = scmp.ne.s32.totalorder %s139, %s142
      %p148 = scmp.eq.s32.totalorder %s14, 0
      %p149 = por %p147, %p148
      %p150 = scmp.ne.s32.totalorder %s139, %s142
      %p151 = scmp.eq.s32.totalorder %s19, 1
      %p152 = por %p150, %p151
      %p153 = scmp.ne.s32.totalorder %s142, %s143
      %p154 = scmp.eq.s32.totalorder %s19, 0
      %p155 = por %p153, %p154
      %p156 = scmp.ne.s32.totalorder %s142, %s143
      %p157 = scmp.eq.s32.totalorder %s20, 1
      %p158 = por %p156, %p157
      %p160 = scmp.ne.s32.totalorder %s143, %s159
      %p161 = scmp.eq.s32.totalorder %s20, 0
      %p162 = por %p160, %p161
      %p163 = scmp.le.s32.totalorder 1, %s14
      %p164 = scmp.lt.s32.totalorder %s14, 3
      %p165 = pnand %p163, %p164
      %p166 = pneg %p165
      // Predicated region
      $region9: #{tpu_custom_call.1} parent=5 // pred_check
        _
      $region10: #{tpu_custom_call.1} parent=5 // pred_check_branch
        %168 = sbr.rel (%p165) target = $region12
      $region11: #{tpu_custom_call.1} parent=5 // pred_region
        %s169 = ssub.s32 %s14, 1
        // Predicated region
        $region13: #{tpu_custom_call.1} parent=11 // pred_check
          %p170 = pneg %p87
        $region14: #{tpu_custom_call.1} parent=11 // pred_check_branch
          %172 = sbr.rel (%p170) target = $region16
        $region15: #{tpu_custom_call.1} parent=11 // pred_region
          _
        $region16: #{tpu_custom_call.1} parent=11 // pred_fallthru
          _
        // Predicated region
        $region17: #{tpu_custom_call.1} parent=11 // pred_check
          %p173 = pneg %p108
        $region18: #{tpu_custom_call.1} parent=11 // pred_check_branch
          %175 = sbr.rel (%p173) target = $region20
        $region19: #{tpu_custom_call.1} parent=11 // pred_region
          _
        $region20: #{tpu_custom_call.1} parent=11 // pred_fallthru
          _
        // Predicated region
        $region21: #{tpu_custom_call.1} parent=11 // pred_check
          %p176 = pneg %p129
        $region22: #{tpu_custom_call.1} parent=11 // pred_check_branch
          %178 = sbr.rel (%p176) target = $region24
        $region23: #{tpu_custom_call.1} parent=11 // pred_region
          _
        $region24: #{tpu_custom_call.1} parent=11 // pred_fallthru
          _
      $region12: #{tpu_custom_call.1} parent=5 // pred_fallthru
        _
      %p179 = scmp.lt.s32.totalorder %s14, 2
      // Predicated region
      $region25: #{tpu_custom_call.1} parent=5 // pred_check
        %p180 = pneg %p179
      $region26: #{tpu_custom_call.1} parent=5 // pred_check_branch
        %182 = sbr.rel (%p180) target = $region28
      $region27: #{tpu_custom_call.1} parent=5 // pred_region
        // Predicated region
        $region29: #{tpu_custom_call.1} parent=27 // pred_check
          %p183 = pneg %p34
        $region30: #{tpu_custom_call.1} parent=27 // pred_check_branch
          %185 = sbr.rel (%p183) target = $region32
        $region31: #{tpu_custom_call.1} parent=27 // pred_region
          %p186 = scmp.lt.s32.totalorder %s14, 1
          %s187 = scalar_select %p186, %s14, 1
          %s188 = smul.addr %s187, 16
          %s189 = smul.addr %s188, 8
          %s190 = scalar_lea.vmem %s0, %s189
        $region32: #{tpu_custom_call.1} parent=27 // pred_fallthru
          _
        // Predicated region
        $region33: #{tpu_custom_call.1} parent=27 // pred_check
          %p191 = pneg %p60
        $region34: #{tpu_custom_call.1} parent=27 // pred_check_branch
          %193 = sbr.rel (%p191) target = $region36
        $region35: #{tpu_custom_call.1} parent=27 // pred_region
          %p194 = scmp.lt.s32.totalorder %s14, 1
          %s195 = scalar_select %p194, %s14, 1
          %s196 = scalar_lea.vmem %s1, %s195
        $region36: #{tpu_custom_call.1} parent=27 // pred_fallthru
          _
      $region28: #{tpu_custom_call.1} parent=5 // pred_fallthru
        _
      %p197 = scmp.le.s32.totalorder 1, %s14
      %p198 = scmp.lt.s32.totalorder %s14, 3
      %p199 = pnand %p197, %p198
      %p200 = pneg %p199
      // Predicated region
      $region37: #{tpu_custom_call.1} parent=5 // pred_check
        _
      $region38: #{tpu_custom_call.1} parent=5 // pred_check_branch
        %202 = sbr.rel (%p199) target = $region40
      $region39: #{tpu_custom_call.1} parent=5 // pred_region
        %s203 = ssub.s32 %s14, 1
        %p204 = scmp.lt.s32.totalorder %s19, 1
        %s205 = scalar_select %p204, %s19, 1
        %s206 = smul.addr %s205, 16
        %s207 = smul.addr %s206, 8
        %s208 = scalar_lea.vmem %s0, %s207
        %p209 = pneg %p40
        %p210 = pneg %p37
        %p211 = scmp.lt.s32.totalorder %s19, 1
        %s212 = scalar_select %p211, %s19, 1
        %s213 = scalar_lea.vmem %s1, %s212
        %p214 = pneg %p66
        %p215 = pneg %p63
        %p216 = pneg %p87
        %p217 = pneg %p84
        %p218 = pneg %p108
        %p219 = pneg %p105
        %p220 = pneg %p129
        %p221 = pneg %p126
        %p222 = pneg %p155
        %p223 = pneg %p152
        %s224 = sand.u32 %s142, 1
        %s225 = scalar_lea.sflag [#allocation3], %s224
        %s226 = sand.u32 %s142, 1
        %s227 = smul.addr %s226, 32
        %s228 = scalar_lea.vmem [#allocation2], %s227
        %p229 = scmp.lt.s32.totalorder %s19, 1
        %s230 = scalar_select %p229, %s19, 1
        %s231 = smul.addr %s230, 16
        %s232 = smul.addr %s231, 8
        %s233 = scalar_lea.vmem %s0, %s232
        %p234 = scmp.lt.s32.totalorder %s19, 1
        %s235 = scalar_select %p234, %s19, 1
        %s236 = scalar_lea.vmem %s1, %s235
        %v237 = vld [vmem:[%s233] sm:$0xff]
        %v238 = vld [vmem:[%s233 + $0x8] sm:$0xff]
        %v239 = vld [vmem:[%s233 + $0x10] sm:$0xff]
        %v240 = vld [vmem:[%s233 + $0x18] sm:$0xff]
        %v241 = vld [vmem:[%s233 + $0x20] sm:$0xff]
        %v242 = vld [vmem:[%s233 + $0x28] sm:$0xff]
        %v243 = vld [vmem:[%s233 + $0x30] sm:$0xff]
        %v244 = vld [vmem:[%s233 + $0x38] sm:$0xff]
        %v245 = vld [vmem:[%s233 + $0x40] sm:$0xff]
        %v246 = vld [vmem:[%s233 + $0x48] sm:$0xff]
        %v247 = vld [vmem:[%s233 + $0x50] sm:$0xff]
        %v248 = vld [vmem:[%s233 + $0x58] sm:$0xff]
        %v249 = vld [vmem:[%s233 + $0x60] sm:$0xff]
        %v250 = vld [vmem:[%s233 + $0x68] sm:$0xff]
        %v251 = vld [vmem:[%s233 + $0x70] sm:$0xff]
        %v252 = vld [vmem:[%s233 + $0x78] sm:$0xff]
        %v253 = vld [vmem:[%s2] sm:$0xff]
        %v254 = vld [vmem:[%s2 + $0x8] sm:$0xff]
        %v255 = vld [vmem:[%s2 + $0x10] sm:$0xff]
        %v256 = vld [vmem:[%s2 + $0x18] sm:$0xff]
        %vm257 = vcmask 261120
        %v259 = vsel %vm257, %v237, 0
        %v262 = vsel %vm257, %v238, 0
        %v265 = vsel %vm257, %v239, 0
        %v268 = vsel %vm257, %v240, 0
        %v271 = vsel %vm257, %v241, 0
        %v274 = vsel %vm257, %v242, 0
        %v277 = vsel %vm257, %v243, 0
        %v280 = vsel %vm257, %v244, 0
        %v283 = vsel %vm257, %v245, 0
        %v286 = vsel %vm257, %v246, 0
        %v289 = vsel %vm257, %v247, 0
        %v292 = vsel %vm257, %v248, 0
        %v295 = vsel %vm257, %v249, 0
        %v298 = vsel %vm257, %v250, 0
        %v301 = vsel %vm257, %v251, 0
        %v304 = vsel %vm257, %v252, 0
        %306 = vmatprep.subr.mxu0 0.0
        %307 = vmatpush1.msra.mxu0 %v253
        %308 = vmatprep.subr.mxu0 0.0
        %309 = vmatpush1.msra.mxu0 %v254
        %310 = vmatprep.subr.mxu0 0.0
        %311 = vmatpush1.msra.mxu0 %v255
        %312 = vmatprep.subr.mxu0 0.0
        %313 = vmatpush1.msra.mxu0 %v256
        %314 = vmatprep.subr.mxu0 0.0
        %315 = vmatpush1.msra.mxu0 0.0
        %316 = vmatprep.subr.mxu0 0.0
        %317 = vmatpush1.msra.mxu0 0.0
        %318 = vmatprep.subr.mxu0 0.0
        %319 = vmatpush1.msra.mxu0 0.0
        %320 = vmatprep.subr.mxu0 0.0
        %321 = vmatpush1.msra.mxu0 0.0
        %322 = vmatprep.subr.mxu0 0.0
        %323 = vmatpush1.msra.mxu0 0.0
        %324 = vmatprep.subr.mxu0 0.0
        %325 = vmatpush1.msra.mxu0 0.0
        %326 = vmatprep.subr.mxu0 0.0
        %327 = vmatpush1.msra.mxu0 0.0
        %328 = vmatprep.subr.mxu0 0.0
        %329 = vmatpush1.msra.mxu0 0.0
        %330 = vmatprep.subr.mxu0 0.0
        %331 = vmatpush1.msra.mxu0 0.0
        %332 = vmatprep.subr.mxu0 0.0
        %333 = vmatpush1.msra.mxu0 0.0
        %334 = vmatprep.subr.mxu0 0.0
        %335 = vmatpush1.msra.mxu0 0.0
        %336 = vmatprep.subr.mxu0 0.0
        %337 = vmatpush1.msra.mxu0 0.0
        %338 = vmatprep.subr.mxu0 0.0
        %339 = vmatpush1.msra.mxu0 0.0
        %340 = vmatprep.subr.mxu0 0.0
        %341 = vmatpush1.msra.mxu0 0.0
        %342 = vmatprep.subr.mxu0 0.0
        %343 = vmatpush1.msra.mxu0 0.0
        %344 = vmatprep.subr.mxu0 0.0
        %345 = vmatpush1.msra.mxu0 0.0
        %346 = vmatprep.subr.mxu0 0.0
        %347 = vmatpush1.msra.mxu0 0.0
        %348 = vmatprep.subr.mxu0 0.0
        %349 = vmatpush1.msra.mxu0 0.0
        %350 = vmatprep.subr.mxu0 0.0
        %351 = vmatpush1.msra.mxu0 0.0
        %352 = vmatprep.subr.mxu0 0.0
        %353 = vmatpush1.msra.mxu0 0.0
        %354 = vmatprep.subr.mxu0 0.0
        %355 = vmatpush1.msra.mxu0 0.0
        %356 = vmatprep.subr.mxu0 0.0
        %357 = vmatpush1.msra.mxu0 0.0
        %358 = vmatprep.subr.mxu0 0.0
        %359 = vmatpush1.msra.mxu0 0.0
        %360 = vmatprep.subr.mxu0 0.0
        %361 = vmatpush1.msra.mxu0 0.0
        %362 = vmatprep.subr.mxu0 0.0
        %363 = vmatpush1.msra.mxu0 0.0
        %364 = vmatprep.subr.mxu0 0.0
        %365 = vmatpush1.msra.mxu0 0.0
        %366 = vmatprep.subr.mxu0 0.0
        %367 = vmatpush1.msra.mxu0 0.0
        %368 = vmatprep.subr.mxu0 0.0
        %369 = vmatpush1.msra.mxu0 0.0
        %370 = vmatprep.mubr.f32.mxu0 0.0
        %371 = vmatmul.mubr.f32.gmra.mrb[0].mxu0 %v259
        %v372 = vpop.f32.mrb[0].mxu0
        %v373 = vadd.f32 0.0, %v372
        %v374 = vpop.f32.mrb[0].mxu0
        %375 = vmatprep.mubr.f32.mxu0 0.0
        %376 = vmatmul.mubr.f32.gmra.mrb[0].mxu0 %v262
        %v377 = vpop.f32.mrb[0].mxu0
        %v378 = vadd.f32 0.0, %v377
        %v379 = vpop.f32.mrb[0].mxu0
        %380 = vmatprep.mubr.f32.mxu0 0.0
        %381 = vmatmul.mubr.f32.gmra.mrb[0].mxu0 %v265
        %v382 = vpop.f32.mrb[0].mxu0
        %v383 = vadd.f32 0.0, %v382
        %v384 = vpop.f32.mrb[0].mxu0
        %385 = vmatprep.mubr.f32.mxu0 0.0
        %386 = vmatmul.mubr.f32.gmra.mrb[0].mxu0 %v268
        %v387 = vpop.f32.mrb[0].mxu0
        %v388 = vadd.f32 0.0, %v387
        %v389 = vpop.f32.mrb[0].mxu0
        %390 = vmatprep.mubr.f32.mxu0 0.0
        %391 = vmatmul.mubr.f32.gmra.mrb[0].mxu0 %v271
        %v392 = vpop.f32.mrb[0].mxu0
        %v393 = vadd.f32 0.0, %v392
        %v394 = vpop.f32.mrb[0].mxu0
        %395 = vmatprep.mubr.f32.mxu0 0.0
        %396 = vmatmul.mubr.f32.gmra.mrb[0].mxu0 %v274
        %v397 = vpop.f32.mrb[0].mxu0
        %v398 = vadd.f32 0.0, %v397
        %v399 = vpop.f32.mrb[0].mxu0
        %400 = vmatprep.mubr.f32.mxu0 0.0
        %401 = vmatmul.mubr.f32.gmra.mrb[0].mxu0 %v277
        %v402 = vpop.f32.mrb[0].mxu0
        %v403 = vadd.f32 0.0, %v402
        %v404 = vpop.f32.mrb[0].mxu0
        %405 = vmatprep.mubr.f32.mxu0 0.0
        %406 = vmatmul.mubr.f32.gmra.mrb[0].mxu0 %v280
        %v407 = vpop.f32.mrb[0].mxu0
        %v408 = vadd.f32 0.0, %v407
        %v409 = vpop.f32.mrb[0].mxu0
        %410 = vmatprep.mubr.f32.mxu0 0.0
        %411 = vmatmul.mubr.f32.gmra.mrb[0].mxu0 %v283
        %v412 = vpop.f32.mrb[0].mxu0
        %v413 = vadd.f32 0.0, %v412
        %v414 = vpop.f32.mrb[0].mxu0
        %415 = vmatprep.mubr.f32.mxu0 0.0
        %416 = vmatmul.mubr.f32.gmra.mrb[0].mxu0 %v286
        %v417 = vpop.f32.mrb[0].mxu0
        %v418 = vadd.f32 0.0, %v417
        %v419 = vpop.f32.mrb[0].mxu0
        %420 = vmatprep.mubr.f32.mxu0 0.0
        %421 = vmatmul.mubr.f32.gmra.mrb[0].mxu0 %v289
        %v422 = vpop.f32.mrb[0].mxu0
        %v423 = vadd.f32 0.0, %v422
        %v424 = vpop.f32.mrb[0].mxu0
        %425 = vmatprep.mubr.f32.mxu0 0.0
        %426 = vmatmul.mubr.f32.gmra.mrb[0].mxu0 %v292
        %v427 = vpop.f32.mrb[0].mxu0
        %v428 = vadd.f32 0.0, %v427
        %v429 = vpop.f32.mrb[0].mxu0
        %430 = vmatprep.mubr.f32.mxu0 0.0
        %431 = vmatmul.mubr.f32.gmra.mrb[0].mxu0 %v295
        %v432 = vpop.f32.mrb[0].mxu0
        %v433 = vadd.f32 0.0, %v432
        %v434 = vpop.f32.mrb[0].mxu0
        %435 = vmatprep.mubr.f32.mxu0 0.0
        %436 = vmatmul.mubr.f32.gmra.mrb[0].mxu0 %v298
        %v437 = vpop.f32.mrb[0].mxu0
        %v438 = vadd.f32 0.0, %v437
        %v439 = vpop.f32.mrb[0].mxu0
        %440 = vmatprep.mubr.f32.mxu0 0.0
        %441 = vmatmul.mubr.f32.gmra.mrb[0].mxu0 %v301
        %v442 = vpop.f32.mrb[0].mxu0
        %v443 = vadd.f32 0.0, %v442
        %v444 = vpop.f32.mrb[0].mxu0
        %445 = vmatprep.mubr.f32.mxu0 0.0
        %446 = vmatmul.mubr.f32.gmra.mrb[0].mxu0 %v304
        %v447 = vpop.f32.mrb[0].mxu0
        %v448 = vadd.f32 0.0, %v447
        %v449 = vpop.f32.mrb[0].mxu0
        %450 = vdwg.mxu0
        %v451 = vld [vmem:[%s3] sm:$0xff]
        %v452 = vld [vmem:[%s3 + $0x8] sm:$0xff]
        %v453 = vld [vmem:[%s3 + $0x10] sm:$0xff]
        %v454 = vld [vmem:[%s3 + $0x18] sm:$0xff]
        %455 = vmatprep.subr.mxu0 0.0
        %456 = vmatpush1.msra.mxu0 %v451
        %457 = vmatprep.subr.mxu0 0.0
        %458 = vmatpush1.msra.mxu0 %v452
        %459 = vmatprep.subr.mxu0 0.0
        %460 = vmatpush1.msra.mxu0 %v453
        %461 = vmatprep.subr.mxu0 0.0
        %462 = vmatpush1.msra.mxu0 %v454
        %463 = vmatprep.subr.mxu0 0.0
        %464 = vmatpush1.msra.mxu0 0.0
        %465 = vmatprep.subr.mxu0 0.0
        %466 = vmatpush1.msra.mxu0 0.0
        %467 = vmatprep.subr.mxu0 0.0
        %468 = vmatpush1.msra.mxu0 0.0
        %469 = vmatprep.subr.mxu0 0.0
        %470 = vmatpush1.msra.mxu0 0.0
        %471 = vmatprep.subr.mxu0 0.0
        %472 = vmatpush1.msra.mxu0 0.0
        %473 = vmatprep.subr.mxu0 0.0
        %474 = vmatpush1.msra.mxu0 0.0
        %475 = vmatprep.subr.mxu0 0.0
        %476 = vmatpush1.msra.mxu0 0.0
        %477 = vmatprep.subr.mxu0 0.0
        %478 = vmatpush1.msra.mxu0 0.0
        %479 = vmatprep.subr.mxu0 0.0
        %480 = vmatpush1.msra.mxu0 0.0
        %481 = vmatprep.subr.mxu0 0.0
        %482 = vmatpush1.msra.mxu0 0.0
        %483 = vmatprep.subr.mxu0 0.0
        %484 = vmatpush1.msra.mxu0 0.0
        %485 = vmatprep.subr.mxu0 0.0
        %486 = vmatpush1.msra.mxu0 0.0
        %487 = vmatprep.subr.mxu0 0.0
        %488 = vmatpush1.msra.mxu0 0.0
        %489 = vmatprep.subr.mxu0 0.0
        %490 = vmatpush1.msra.mxu0 0.0
        %491 = vmatprep.subr.mxu0 0.0
        %492 = vmatpush1.msra.mxu0 0.0
        %493 = vmatprep.subr.mxu0 0.0
        %494 = vmatpush1.msra.mxu0 0.0
        %495 = vmatprep.subr.mxu0 0.0
        %496 = vmatpush1.msra.mxu0 0.0
        %497 = vmatprep.subr.mxu0 0.0
        %498 = vmatpush1.msra.mxu0 0.0
        %499 = vmatprep.subr.mxu0 0.0
        %500 = vmatpush1.msra.mxu0 0.0
        %501 = vmatprep.subr.mxu0 0.0
        %502 = vmatpush1.msra.mxu0 0.0
        %503 = vmatprep.subr.mxu0 0.0
        %504 = vmatpush1.msra.mxu0 0.0
        %505 = vmatprep.subr.mxu0 0.0
        %506 = vmatpush1.msra.mxu0 0.0
        %507 = vmatprep.subr.mxu0 0.0
        %508 = vmatpush1.msra.mxu0 0.0
        %509 = vmatprep.subr.mxu0 0.0
        %510 = vmatpush1.msra.mxu0 0.0
        %511 = vmatprep.subr.mxu0 0.0
        %512 = vmatpush1.msra.mxu0 0.0
        %513 = vmatprep.subr.mxu0 0.0
        %514 = vmatpush1.msra.mxu0 0.0
        %515 = vmatprep.subr.mxu0 0.0
        %516 = vmatpush1.msra.mxu0 0.0
        %517 = vmatprep.subr.mxu0 0.0
        %518 = vmatpush1.msra.mxu0 0.0
        %519 = vmatprep.mubr.f32.mxu0 0.0
        %520 = vmatmul.mubr.f32.gmra.mrb[0].mxu0 %v259
        %v521 = vpop.f32.mrb[0].mxu0
        %v522 = vadd.f32 0.0, %v521
        %v523 = vpop.f32.mrb[0].mxu0
        %524 = vmatprep.mubr.f32.mxu0 0.0
        %525 = vmatmul.mubr.f32.gmra.mrb[0].mxu0 %v262
        %v526 = vpop.f32.mrb[0].mxu0
        %v527 = vadd.f32 0.0, %v526
        %v528 = vpop.f32.mrb[0].mxu0
        %529 = vmatprep.mubr.f32.mxu0 0.0
        %530 = vmatmul.mubr.f32.gmra.mrb[0].mxu0 %v265
        %v531 = vpop.f32.mrb[0].mxu0
        %v532 = vadd.f32 0.0, %v531
        %v533 = vpop.f32.mrb[0].mxu0
        %534 = vmatprep.mubr.f32.mxu0 0.0
        %535 = vmatmul.mubr.f32.gmra.mrb[0].mxu0 %v268
        %v536 = vpop.f32.mrb[0].mxu0
        %v537 = vadd.f32 0.0, %v536
        %v538 = vpop.f32.mrb[0].mxu0
        %539 = vmatprep.mubr.f32.mxu0 0.0
        %540 = vmatmul.mubr.f32.gmra.mrb[0].mxu0 %v271
        %v541 = vpop.f32.mrb[0].mxu0
        %v542 = vadd.f32 0.0, %v541
        %v543 = vpop.f32.mrb[0].mxu0
        %544 = vmatprep.mubr.f32.mxu0 0.0
        %545 = vmatmul.mubr.f32.gmra.mrb[0].mxu0 %v274
        %v546 = vpop.f32.mrb[0].mxu0
        %v547 = vadd.f32 0.0, %v546
        %v548 = vpop.f32.mrb[0].mxu0
        %549 = vmatprep.mubr.f32.mxu0 0.0
        %550 = vmatmul.mubr.f32.gmra.mrb[0].mxu0 %v277
        %v551 = vpop.f32.mrb[0].mxu0
        %v552 = vadd.f32 0.0, %v551
        %v553 = vpop.f32.mrb[0].mxu0
        %554 = vmatprep.mubr.f32.mxu0 0.0
        %555 = vmatmul.mubr.f32.gmra.mrb[0].mxu0 %v280
        %v556 = vpop.f32.mrb[0].mxu0
        %v557 = vadd.f32 0.0, %v556
        %v558 = vpop.f32.mrb[0].mxu0
        %559 = vmatprep.mubr.f32.mxu0 0.0
        %560 = vmatmul.mubr.f32.gmra.mrb[0].mxu0 %v283
        %v561 = vpop.f32.mrb[0].mxu0
        %v562 = vadd.f32 0.0, %v561
        %v563 = vpop.f32.mrb[0].mxu0
        %564 = vmatprep.mubr.f32.mxu0 0.0
        %565 = vmatmul.mubr.f32.gmra.mrb[0].mxu0 %v286
        %v566 = vpop.f32.mrb[0].mxu0
        %v567 = vadd.f32 0.0, %v566
        %v568 = vpop.f32.mrb[0].mxu0
        %569 = vmatprep.mubr.f32.mxu0 0.0
        %570 = vmatmul.mubr.f32.gmra.mrb[0].mxu0 %v289
        %v571 = vpop.f32.mrb[0].mxu0
        %v572 = vadd.f32 0.0, %v571
        %v573 = vpop.f32.mrb[0].mxu0
        %574 = vmatprep.mubr.f32.mxu0 0.0
        %575 = vmatmul.mubr.f32.gmra.mrb[0].mxu0 %v292
        %v576 = vpop.f32.mrb[0].mxu0
        %v577 = vadd.f32 0.0, %v576
        %v578 = vpop.f32.mrb[0].mxu0
        %579 = vmatprep.mubr.f32.mxu0 0.0
        %580 = vmatmul.mubr.f32.gmra.mrb[0].mxu0 %v295
        %v581 = vpop.f32.mrb[0].mxu0
        %v582 = vadd.f32 0.0, %v581
        %v583 = vpop.f32.mrb[0].mxu0
        %584 = vmatprep.mubr.f32.mxu0 0.0
        %585 = vmatmul.mubr.f32.gmra.mrb[0].mxu0 %v298
        %v586 = vpop.f32.mrb[0].mxu0
        %v587 = vadd.f32 0.0, %v586
        %v588 = vpop.f32.mrb[0].mxu0
        %589 = vmatprep.mubr.f32.mxu0 0.0
        %590 = vmatmul.mubr.f32.gmra.mrb[0].mxu0 %v301
        %v591 = vpop.f32.mrb[0].mxu0
        %v592 = vadd.f32 0.0, %v591
        %v593 = vpop.f32.mrb[0].mxu0
        %594 = vmatprep.mubr.f32.mxu0 0.0
        %595 = vmatmul.mubr.f32.gmra.mrb[0].mxu0 %v304
        %v596 = vpop.f32.mrb[0].mxu0
        %v597 = vadd.f32 0.0, %v596
        %v598 = vpop.f32.mrb[0].mxu0
        %599 = vdwg.mxu0
        %v600 = vld [vmem:[%s4] sm:$0xff]
        %v601 = vld [vmem:[%s4 + $0x8] sm:$0xff]
        %v602 = vld [vmem:[%s4 + $0x10] sm:$0xff]
        %v603 = vld [vmem:[%s4 + $0x18] sm:$0xff]
        %604 = vmatprep.subr.mxu0 0.0
        %605 = vmatpush1.msra.mxu0 %v600
        %606 = vmatprep.subr.mxu0 0.0
        %607 = vmatpush1.msra.mxu0 %v601
        %608 = vmatprep.subr.mxu0 0.0
        %609 = vmatpush1.msra.mxu0 %v602
        %610 = vmatprep.subr.mxu0 0.0
        %611 = vmatpush1.msra.mxu0 %v603
        %612 = vmatprep.subr.mxu0 0.0
        %613 = vmatpush1.msra.mxu0 0.0
        %614 = vmatprep.subr.mxu0 0.0
        %615 = vmatpush1.msra.mxu0 0.0
        %616 = vmatprep.subr.mxu0 0.0
        %617 = vmatpush1.msra.mxu0 0.0
        %618 = vmatprep.subr.mxu0 0.0
        %619 = vmatpush1.msra.mxu0 0.0
        %620 = vmatprep.subr.mxu0 0.0
        %621 = vmatpush1.msra.mxu0 0.0
        %622 = vmatprep.subr.mxu0 0.0
        %623 = vmatpush1.msra.mxu0 0.0
        %624 = vmatprep.subr.mxu0 0.0
        %625 = vmatpush1.msra.mxu0 0.0
        %626 = vmatprep.subr.mxu0 0.0
        %627 = vmatpush1.msra.mxu0 0.0
        %628 = vmatprep.subr.mxu0 0.0
        %629 = vmatpush1.msra.mxu0 0.0
        %630 = vmatprep.subr.mxu0 0.0
        %631 = vmatpush1.msra.mxu0 0.0
        %632 = vmatprep.subr.mxu0 0.0
        %633 = vmatpush1.msra.mxu0 0.0
        %634 = vmatprep.subr.mxu0 0.0
        %635 = vmatpush1.msra.mxu0 0.0
        %636 = vmatprep.subr.mxu0 0.0
        %637 = vmatpush1.msra.mxu0 0.0
        %638 = vmatprep.subr.mxu0 0.0
        %639 = vmatpush1.msra.mxu0 0.0
        %640 = vmatprep.subr.mxu0 0.0
        %641 = vmatpush1.msra.mxu0 0.0
        %642 = vmatprep.subr.mxu0 0.0
        %643 = vmatpush1.msra.mxu0 0.0
        %644 = vmatprep.subr.mxu0 0.0
        %645 = vmatpush1.msra.mxu0 0.0
        %646 = vmatprep.subr.mxu0 0.0
        %647 = vmatpush1.msra.mxu0 0.0
        %648 = vmatprep.subr.mxu0 0.0
        %649 = vmatpush1.msra.mxu0 0.0
        %650 = vmatprep.subr.mxu0 0.0
        %651 = vmatpush1.msra.mxu0 0.0
        %652 = vmatprep.subr.mxu0 0.0
        %653 = vmatpush1.msra.mxu0 0.0
        %654 = vmatprep.subr.mxu0 0.0
        %655 = vmatpush1.msra.mxu0 0.0
        %656 = vmatprep.subr.mxu0 0.0
        %657 = vmatpush1.msra.mxu0 0.0
        %658 = vmatprep.subr.mxu0 0.0
        %659 = vmatpush1.msra.mxu0 0.0
        %660 = vmatprep.subr.mxu0 0.0
        %661 = vmatpush1.msra.mxu0 0.0
        %662 = vmatprep.subr.mxu0 0.0
        %663 = vmatpush1.msra.mxu0 0.0
        %664 = vmatprep.subr.mxu0 0.0
        %665 = vmatpush1.msra.mxu0 0.0
        %666 = vmatprep.subr.mxu0 0.0
        %667 = vmatpush1.msra.mxu0 0.0
        %668 = vmatprep.mubr.f32.mxu0 0.0
        %669 = vmatmul.mubr.f32.gmra.mrb[0].mxu0 %v259
        %v670 = vpop.f32.mrb[0].mxu0
        %v671 = vadd.f32 0.0, %v670
        %v672 = vpop.f32.mrb[0].mxu0
        %673 = vmatprep.mubr.f32.mxu0 0.0
        %674 = vmatmul.mubr.f32.gmra.mrb[0].mxu0 %v262
        %v675 = vpop.f32.mrb[0].mxu0
        %v676 = vadd.f32 0.0, %v675
        %v677 = vpop.f32.mrb[0].mxu0
        %678 = vmatprep.mubr.f32.mxu0 0.0
        %679 = vmatmul.mubr.f32.gmra.mrb[0].mxu0 %v265
        %v680 = vpop.f32.mrb[0].mxu0
        %v681 = vadd.f32 0.0, %v680
        %v682 = vpop.f32.mrb[0].mxu0
        %683 = vmatprep.mubr.f32.mxu0 0.0
        %684 = vmatmul.mubr.f32.gmra.mrb[0].mxu0 %v268
        %v685 = vpop.f32.mrb[0].mxu0
        %v686 = vadd.f32 0.0, %v685
        %v687 = vpop.f32.mrb[0].mxu0
        %688 = vmatprep.mubr.f32.mxu0 0.0
        %689 = vmatmul.mubr.f32.gmra.mrb[0].mxu0 %v271
        %v690 = vpop.f32.mrb[0].mxu0
        %v691 = vadd.f32 0.0, %v690
        %v692 = vpop.f32.mrb[0].mxu0
        %693 = vmatprep.mubr.f32.mxu0 0.0
        %694 = vmatmul.mubr.f32.gmra.mrb[0].mxu0 %v274
        %v695 = vpop.f32.mrb[0].mxu0
        %v696 = vadd.f32 0.0, %v695
        %v697 = vpop.f32.mrb[0].mxu0
        %698 = vmatprep.mubr.f32.mxu0 0.0
        %699 = vmatmul.mubr.f32.gmra.mrb[0].mxu0 %v277
        %v700 = vpop.f32.mrb[0].mxu0
        %v701 = vadd.f32 0.0, %v700
        %v702 = vpop.f32.mrb[0].mxu0
        %703 = vmatprep.mubr.f32.mxu0 0.0
        %704 = vmatmul.mubr.f32.gmra.mrb[0].mxu0 %v280
        %v705 = vpop.f32.mrb[0].mxu0
        %v706 = vadd.f32 0.0, %v705
        %v707 = vpop.f32.mrb[0].mxu0
        %708 = vmatprep.mubr.f32.mxu0 0.0
        %709 = vmatmul.mubr.f32.gmra.mrb[0].mxu0 %v283
        %v710 = vpop.f32.mrb[0].mxu0
        %v711 = vadd.f32 0.0, %v710
        %v712 = vpop.f32.mrb[0].mxu0
        %713 = vmatprep.mubr.f32.mxu0 0.0
        %714 = vmatmul.mubr.f32.gmra.mrb[0].mxu0 %v286
        %v715 = vpop.f32.mrb[0].mxu0
        %v716 = vadd.f32 0.0, %v715
        %v717 = vpop.f32.mrb[0].mxu0
        %718 = vmatprep.mubr.f32.mxu0 0.0
        %719 = vmatmul.mubr.f32.gmra.mrb[0].mxu0 %v289
        %v720 = vpop.f32.mrb[0].mxu0
        %v721 = vadd.f32 0.0, %v720
        %v722 = vpop.f32.mrb[0].mxu0
        %723 = vmatprep.mubr.f32.mxu0 0.0
        %724 = vmatmul.mubr.f32.gmra.mrb[0].mxu0 %v292
        %v725 = vpop.f32.mrb[0].mxu0
        %v726 = vadd.f32 0.0, %v725
        %v727 = vpop.f32.mrb[0].mxu0
        %728 = vmatprep.mubr.f32.mxu0 0.0
        %729 = vmatmul.mubr.f32.gmra.mrb[0].mxu0 %v295
        %v730 = vpop.f32.mrb[0].mxu0
        %v731 = vadd.f32 0.0, %v730
        %v732 = vpop.f32.mrb[0].mxu0
        %733 = vmatprep.mubr.f32.mxu0 0.0
        %734 = vmatmul.mubr.f32.gmra.mrb[0].mxu0 %v298
        %v735 = vpop.f32.mrb[0].mxu0
        %v736 = vadd.f32 0.0, %v735
        %v737 = vpop.f32.mrb[0].mxu0
        %738 = vmatprep.mubr.f32.mxu0 0.0
        %739 = vmatmul.mubr.f32.gmra.mrb[0].mxu0 %v301
        %v740 = vpop.f32.mrb[0].mxu0
        %v741 = vadd.f32 0.0, %v740
        %v742 = vpop.f32.mrb[0].mxu0
        %743 = vmatprep.mubr.f32.mxu0 0.0
        %744 = vmatmul.mubr.f32.gmra.mrb[0].mxu0 %v304
        %v745 = vpop.f32.mrb[0].mxu0
        %v746 = vadd.f32 0.0, %v745
        %v747 = vpop.f32.mrb[0].mxu0
        %748 = vdwg.mxu0
        %v749 = vld [vmem:[%s236] sm:$0x1]
        %vm750 = vcmp.gt.f32.partialorder %v749, 0.5
        %v751 = vlaneseq
        %v752 = vand.u32 %v751, 127
        %vm753 = vcmp.lt.s32.totalorder %v752, 16
        %vm754 = vcmask 64512
        %v756 = vsel %vm754, %v373, 0
        %v759 = vsel %vm754, %v378, 0
        %v762 = vsel %vm754, %v383, 0
        %v765 = vsel %vm754, %v388, 0
        %v768 = vsel %vm754, %v393, 0
        %v771 = vsel %vm754, %v398, 0
        %v774 = vsel %vm754, %v403, 0
        %v777 = vsel %vm754, %v408, 0
        %v780 = vsel %vm754, %v413, 0
        %v783 = vsel %vm754, %v418, 0
        %v786 = vsel %vm754, %v423, 0
        %v789 = vsel %vm754, %v428, 0
        %v792 = vsel %vm754, %v433, 0
        %v795 = vsel %vm754, %v438, 0
        %v798 = vsel %vm754, %v443, 0
        %v801 = vsel %vm754, %v448, 0
        %v804 = vsel %vm754, %v522, 0
        %v807 = vsel %vm754, %v527, 0
        %v810 = vsel %vm754, %v532, 0
        %v813 = vsel %vm754, %v537, 0
        %v816 = vsel %vm754, %v542, 0
        %v819 = vsel %vm754, %v547, 0
        %v822 = vsel %vm754, %v552, 0
        %v825 = vsel %vm754, %v557, 0
        %v828 = vsel %vm754, %v562, 0
        %v831 = vsel %vm754, %v567, 0
        %v834 = vsel %vm754, %v572, 0
        %v837 = vsel %vm754, %v577, 0
        %v840 = vsel %vm754, %v582, 0
        %v843 = vsel %vm754, %v587, 0
        %v846 = vsel %vm754, %v592, 0
        %v849 = vsel %vm754, %v597, 0
        %851 = vmatprep.subr.mxu0 0.0
        %852 = vmatpush1.xpose.msra.mxu0 %v804
        %853 = vmatprep.subr.mxu0 0.0
        %854 = vmatpush1.xpose.msra.mxu0 %v807
        %855 = vmatprep.subr.mxu0 0.0
        %856 = vmatpush1.xpose.msra.mxu0 %v810
        %857 = vmatprep.subr.mxu0 0.0
        %858 = vmatpush1.xpose.msra.mxu0 %v813
        %859 = vmatprep.subr.mxu0 0.0
        %860 = vmatpush1.xpose.msra.mxu0 %v816
        %861 = vmatprep.subr.mxu0 0.0
        %862 = vmatpush1.xpose.msra.mxu0 %v819
        %863 = vmatprep.subr.mxu0 0.0
        %864 = vmatpush1.xpose.msra.mxu0 %v822
        %865 = vmatprep.subr.mxu0 0.0
        %866 = vmatpush1.xpose.msra.mxu0 %v825
        %867 = vmatprep.subr.mxu0 0.0
        %868 = vmatpush1.xpose.msra.mxu0 %v828
        %869 = vmatprep.subr.mxu0 0.0
        %870 = vmatpush1.xpose.msra.mxu0 %v831
        %871 = vmatprep.subr.mxu0 0.0
        %872 = vmatpush1.xpose.msra.mxu0 %v834
        %873 = vmatprep.subr.mxu0 0.0
        %874 = vmatpush1.xpose.msra.mxu0 %v837
        %875 = vmatprep.subr.mxu0 0.0
        %876 = vmatpush1.xpose.msra.mxu0 %v840
        %877 = vmatprep.subr.mxu0 0.0
        %878 = vmatpush1.xpose.msra.mxu0 %v843
        %879 = vmatprep.subr.mxu0 0.0
        %880 = vmatpush1.xpose.msra.mxu0 %v846
        %881 = vmatprep.subr.mxu0 0.0
        %882 = vmatpush1.xpose.msra.mxu0 %v849
        %883 = vmatprep.subr.mxu0 0.0
        %884 = vmatpush1.xpose.msra.mxu0 0.0
        %885 = vmatprep.subr.mxu0 0.0
        %886 = vmatpush1.xpose.msra.mxu0 0.0
        %887 = vmatprep.subr.mxu0 0.0
        %888 = vmatpush1.xpose.msra.mxu0 0.0
        %889 = vmatprep.subr.mxu0 0.0
        %890 = vmatpush1.xpose.msra.mxu0 0.0
        %891 = vmatprep.subr.mxu0 0.0
        %892 = vmatpush1.xpose.msra.mxu0 0.0
        %893 = vmatprep.subr.mxu0 0.0
        %894 = vmatpush1.xpose.msra.mxu0 0.0
        %895 = vmatprep.subr.mxu0 0.0
        %896 = vmatpush1.xpose.msra.mxu0 0.0
        %897 = vmatprep.subr.mxu0 0.0
        %898 = vmatpush1.xpose.msra.mxu0 0.0
        %899 = vmatprep.subr.mxu0 0.0
        %900 = vmatpush1.xpose.msra.mxu0 0.0
        %901 = vmatprep.subr.mxu0 0.0
        %902 = vmatpush1.xpose.msra.mxu0 0.0
        %903 = vmatprep.subr.mxu0 0.0
        %904 = vmatpush1.xpose.msra.mxu0 0.0
        %905 = vmatprep.subr.mxu0 0.0
        %906 = vmatpush1.xpose.msra.mxu0 0.0
        %907 = vmatprep.subr.mxu0 0.0
        %908 = vmatpush1.xpose.msra.mxu0 0.0
        %909 = vmatprep.subr.mxu0 0.0
        %910 = vmatpush1.xpose.msra.mxu0 0.0
        %911 = vmatprep.subr.mxu0 0.0
        %912 = vmatpush1.xpose.msra.mxu0 0.0
        %913 = vmatprep.subr.mxu0 0.0
        %914 = vmatpush1.xpose.msra.mxu0 0.0
        %915 = vmatprep.mubr.f32.mxu0 0.0
        %916 = vmatmul.mubr.f32.gmra.mrb[0].mxu0 %v756
        %v917 = vpop.f32.mrb[0].mxu0
        %v918 = vadd.f32 0.0, %v917
        %v919 = vpop.f32.mrb[0].mxu0
        %920 = vmatprep.mubr.f32.mxu0 0.0
        %921 = vmatmul.mubr.f32.gmra.mrb[0].mxu0 %v759
        %v922 = vpop.f32.mrb[0].mxu0
        %v923 = vadd.f32 0.0, %v922
        %v924 = vpop.f32.mrb[0].mxu0
        %925 = vmatprep.mubr.f32.mxu0 0.0
        %926 = vmatmul.mubr.f32.gmra.mrb[0].mxu0 %v762
        %v927 = vpop.f32.mrb[0].mxu0
        %v928 = vadd.f32 0.0, %v927
        %v929 = vpop.f32.mrb[0].mxu0
        %930 = vmatprep.mubr.f32.mxu0 0.0
        %931 = vmatmul.mubr.f32.gmra.mrb[0].mxu0 %v765
        %v932 = vpop.f32.mrb[0].mxu0
        %v933 = vadd.f32 0.0, %v932
        %v934 = vpop.f32.mrb[0].mxu0
        %935 = vmatprep.mubr.f32.mxu0 0.0
        %936 = vmatmul.mubr.f32.gmra.mrb[0].mxu0 %v768
        %v937 = vpop.f32.mrb[0].mxu0
        %v938 = vadd.f32 0.0, %v937
        %v939 = vpop.f32.mrb[0].mxu0
        %940 = vmatprep.mubr.f32.mxu0 0.0
        %941 = vmatmul.mubr.f32.gmra.mrb[0].mxu0 %v771
        %v942 = vpop.f32.mrb[0].mxu0
        %v943 = vadd.f32 0.0, %v942
        %v944 = vpop.f32.mrb[0].mxu0
        %945 = vmatprep.mubr.f32.mxu0 0.0
        %946 = vmatmul.mubr.f32.gmra.mrb[0].mxu0 %v774
        %v947 = vpop.f32.mrb[0].mxu0
        %v948 = vadd.f32 0.0, %v947
        %v949 = vpop.f32.mrb[0].mxu0
        %950 = vmatprep.mubr.f32.mxu0 0.0
        %951 = vmatmul.mubr.f32.gmra.mrb[0].mxu0 %v777
        %v952 = vpop.f32.mrb[0].mxu0
        %v953 = vadd.f32 0.0, %v952
        %v954 = vpop.f32.mrb[0].mxu0
        %955 = vmatprep.mubr.f32.mxu0 0.0
        %956 = vmatmul.mubr.f32.gmra.mrb[0].mxu0 %v780
        %v957 = vpop.f32.mrb[0].mxu0
        %v958 = vadd.f32 0.0, %v957
        %v959 = vpop.f32.mrb[0].mxu0
        %960 = vmatprep.mubr.f32.mxu0 0.0
        %961 = vmatmul.mubr.f32.gmra.mrb[0].mxu0 %v783
        %v962 = vpop.f32.mrb[0].mxu0
        %v963 = vadd.f32 0.0, %v962
        %v964 = vpop.f32.mrb[0].mxu0
        %965 = vmatprep.mubr.f32.mxu0 0.0
        %966 = vmatmul.mubr.f32.gmra.mrb[0].mxu0 %v786
        %v967 = vpop.f32.mrb[0].mxu0
        %v968 = vadd.f32 0.0, %v967
        %v969 = vpop.f32.mrb[0].mxu0
        %970 = vmatprep.mubr.f32.mxu0 0.0
        %971 = vmatmul.mubr.f32.gmra.mrb[0].mxu0 %v789
        %v972 = vpop.f32.mrb[0].mxu0
        %v973 = vadd.f32 0.0, %v972
        %v974 = vpop.f32.mrb[0].mxu0
        %975 = vmatprep.mubr.f32.mxu0 0.0
        %976 = vmatmul.mubr.f32.gmra.mrb[0].mxu0 %v792
        %v977 = vpop.f32.mrb[0].mxu0
        %v978 = vadd.f32 0.0, %v977
        %v979 = vpop.f32.mrb[0].mxu0
        %980 = vmatprep.mubr.f32.mxu0 0.0
        %981 = vmatmul.mubr.f32.gmra.mrb[0].mxu0 %v795
        %v982 = vpop.f32.mrb[0].mxu0
        %v983 = vadd.f32 0.0, %v982
        %v984 = vpop.f32.mrb[0].mxu0
        %985 = vmatprep.mubr.f32.mxu0 0.0
        %986 = vmatmul.mubr.f32.gmra.mrb[0].mxu0 %v798
        %v987 = vpop.f32.mrb[0].mxu0
        %v988 = vadd.f32 0.0, %v987
        %v989 = vpop.f32.mrb[0].mxu0
        %990 = vmatprep.mubr.f32.mxu0 0.0
        %991 = vmatmul.mubr.f32.gmra.mrb[0].mxu0 %v801
        %v992 = vpop.f32.mrb[0].mxu0
        %v993 = vadd.f32 0.0, %v992
        %v994 = vpop.f32.mrb[0].mxu0
        %995 = vdwg.mxu0
        %v996 = vsel %vm750, 1, 0
        %v997 = vlaneseq
        %v998 = vshrl.u32 %v997, 7
        %v999 = vsub.s32 0, %v998
        %v1000 = vrot.slane %v996, %v999
        %vm1001 = vcmp.eq.s32.totalorder %v1000, 1
        %v1002 = vsel %vm1001, %v918, -1e+30
        %v1003 = vsel %vm1001, %v923, -1e+30
        %v1004 = vsel %vm1001, %v928, -1e+30
        %v1005 = vsel %vm1001, %v933, -1e+30
        %v1006 = vsel %vm1001, %v938, -1e+30
        %v1007 = vsel %vm1001, %v943, -1e+30
        %v1008 = vsel %vm1001, %v948, -1e+30
        %v1009 = vsel %vm1001, %v953, -1e+30
        %v1010 = vsel %vm1001, %v958, -1e+30
        %v1011 = vsel %vm1001, %v963, -1e+30
        %v1012 = vsel %vm1001, %v968, -1e+30
        %v1013 = vsel %vm1001, %v973, -1e+30
        %v1014 = vsel %vm1001, %v978, -1e+30
        %v1015 = vsel %vm1001, %v983, -1e+30
        %v1016 = vsel %vm1001, %v988, -1e+30
        %v1017 = vsel %vm1001, %v993, -1e+30
        %1018 = vmax.xlane.f32.xlu0 %v1002
        %v1019 = vpop.xlane.xlu0 %1018
        %1020 = vmax.xlane.f32.xlu0 %v1003
        %v1021 = vpop.xlane.xlu0 %1020
        %1022 = vmax.xlane.f32.xlu0 %v1004
        %v1023 = vpop.xlane.xlu0 %1022
        %1024 = vmax.xlane.f32.xlu0 %v1005
        %v1025 = vpop.xlane.xlu0 %1024
        %1026 = vmax.xlane.f32.xlu0 %v1006
        %v1027 = vpop.xlane.xlu0 %1026
        %1028 = vmax.xlane.f32.xlu0 %v1007
        %v1029 = vpop.xlane.xlu0 %1028
        %1030 = vmax.xlane.f32.xlu0 %v1008
        %v1031 = vpop.xlane.xlu0 %1030
        %1032 = vmax.xlane.f32.xlu0 %v1009
        %v1033 = vpop.xlane.xlu0 %1032
        %1034 = vmax.xlane.f32.xlu0 %v1010
        %v1035 = vpop.xlane.xlu0 %1034
        %1036 = vmax.xlane.f32.xlu0 %v1011
        %v1037 = vpop.xlane.xlu0 %1036
        %1038 = vmax.xlane.f32.xlu0 %v1012
        %v1039 = vpop.xlane.xlu0 %1038
        %1040 = vmax.xlane.f32.xlu0 %v1013
        %v1041 = vpop.xlane.xlu0 %1040
        %1042 = vmax.xlane.f32.xlu0 %v1014
        %v1043 = vpop.xlane.xlu0 %1042
        %1044 = vmax.xlane.f32.xlu0 %v1015
        %v1045 = vpop.xlane.xlu0 %1044
        %1046 = vmax.xlane.f32.xlu0 %v1016
        %v1047 = vpop.xlane.xlu0 %1046
        %1048 = vmax.xlane.f32.xlu0 %v1017
        %v1049 = vpop.xlane.xlu0 %1048
        %v1050 = vsub.f32 %v1002, %v1019
        %v1051 = vsub.f32 %v1003, %v1021
        %v1052 = vsub.f32 %v1004, %v1023
        %v1053 = vsub.f32 %v1005, %v1025
        %v1054 = vsub.f32 %v1006, %v1027
        %v1055 = vsub.f32 %v1007, %v1029
        %v1056 = vsub.f32 %v1008, %v1031
        %v1057 = vsub.f32 %v1009, %v1033
        %v1058 = vsub.f32 %v1010, %v1035
        %v1059 = vsub.f32 %v1011, %v1037
        %v1060 = vsub.f32 %v1012, %v1039
        %v1061 = vsub.f32 %v1013, %v1041
        %v1062 = vsub.f32 %v1014, %v1043
        %v1063 = vsub.f32 %v1015, %v1045
        %v1064 = vsub.f32 %v1016, %v1047
        %v1065 = vsub.f32 %v1017, %v1049
        %v1066 = vmul.f32 %v1050, 1.442695
        %v1067 = vpow.pop %v1066
        %v1068 = vmul.f32 %v1051, 1.442695
        %v1069 = vpow.pop %v1068
        %v1070 = vmul.f32 %v1052, 1.442695
        %v1071 = vpow.pop %v1070
        %v1072 = vmul.f32 %v1053, 1.442695
        %v1073 = vpow.pop %v1072
        %v1074 = vmul.f32 %v1054, 1.442695
        %v1075 = vpow.pop %v1074
        %v1076 = vmul.f32 %v1055, 1.442695
        %v1077 = vpow.pop %v1076
        %v1078 = vmul.f32 %v1056, 1.442695
        %v1079 = vpow.pop %v1078
        %v1080 = vmul.f32 %v1057, 1.442695
        %v1081 = vpow.pop %v1080
        %v1082 = vmul.f32 %v1058, 1.442695
        %v1083 = vpow.pop %v1082
        %v1084 = vmul.f32 %v1059, 1.442695
        %v1085 = vpow.pop %v1084
        %v1086 = vmul.f32 %v1060, 1.442695
        %v1087 = vpow.pop %v1086
        %v1088 = vmul.f32 %v1061, 1.442695
        %v1089 = vpow.pop %v1088
        %v1090 = vmul.f32 %v1062, 1.442695
        %v1091 = vpow.pop %v1090
        %v1092 = vmul.f32 %v1063, 1.442695
        %v1093 = vpow.pop %v1092
        %v1094 = vmul.f32 %v1064, 1.442695
        %v1095 = vpow.pop %v1094
        %v1096 = vmul.f32 %v1065, 1.442695
        %v1097 = vpow.pop %v1096
        %v1098 = vsel %vm753, 1, 0
        %vm1099 = vcmp.eq.s32.totalorder %v1098, 1
        %v1100 = vsel %vm1099, %v1067, 0.0
        %v1101 = vsel %vm1099, %v1069, 0.0
        %v1102 = vsel %vm1099, %v1071, 0.0
        %v1103 = vsel %vm1099, %v1073, 0.0
        %v1104 = vsel %vm1099, %v1075, 0.0
        %v1105 = vsel %vm1099, %v1077, 0.0
        %v1106 = vsel %vm1099, %v1079, 0.0
        %v1107 = vsel %vm1099, %v1081, 0.0
        %v1108 = vsel %vm1099, %v1083, 0.0
        %v1109 = vsel %vm1099, %v1085, 0.0
        %v1110 = vsel %vm1099, %v1087, 0.0
        %v1111 = vsel %vm1099, %v1089, 0.0
        %v1112 = vsel %vm1099, %v1091, 0.0
        %v1113 = vsel %vm1099, %v1093, 0.0
        %v1114 = vsel %vm1099, %v1095, 0.0
        %v1115 = vsel %vm1099, %v1097, 0.0
        %1116 = vadd.xlane.f32.xlu0 %v1100
        %v1117 = vpop.xlane.xlu0 %1116
        %1118 = vadd.xlane.f32.xlu0 %v1101
        %v1119 = vpop.xlane.xlu0 %1118
        %1120 = vadd.xlane.f32.xlu0 %v1102
        %v1121 = vpop.xlane.xlu0 %1120
        %1122 = vadd.xlane.f32.xlu0 %v1103
        %v1123 = vpop.xlane.xlu0 %1122
        %1124 = vadd.xlane.f32.xlu0 %v1104
        %v1125 = vpop.xlane.xlu0 %1124
        %1126 = vadd.xlane.f32.xlu0 %v1105
        %v1127 = vpop.xlane.xlu0 %1126
        %1128 = vadd.xlane.f32.xlu0 %v1106
        %v1129 = vpop.xlane.xlu0 %1128
        %1130 = vadd.xlane.f32.xlu0 %v1107
        %v1131 = vpop.xlane.xlu0 %1130
        %1132 = vadd.xlane.f32.xlu0 %v1108
        %v1133 = vpop.xlane.xlu0 %1132
        %1134 = vadd.xlane.f32.xlu0 %v1109
        %v1135 = vpop.xlane.xlu0 %1134
        %1136 = vadd.xlane.f32.xlu0 %v1110
        %v1137 = vpop.xlane.xlu0 %1136
        %1138 = vadd.xlane.f32.xlu0 %v1111
        %v1139 = vpop.xlane.xlu0 %1138
        %1140 = vadd.xlane.f32.xlu0 %v1112
        %v1141 = vpop.xlane.xlu0 %1140
        %1142 = vadd.xlane.f32.xlu0 %v1113
        %v1143 = vpop.xlane.xlu0 %1142
        %1144 = vadd.xlane.f32.xlu0 %v1114
        %v1145 = vpop.xlane.xlu0 %1144
        %1146 = vadd.xlane.f32.xlu0 %v1115
        %v1147 = vpop.xlane.xlu0 %1146
        %v1148 = vrcp.pop %v1117
        %v1149 = vrcp.pop %v1119
        %v1150 = vrcp.pop %v1121
        %v1151 = vrcp.pop %v1123
        %v1152 = vrcp.pop %v1125
        %v1153 = vrcp.pop %v1127
        %v1154 = vrcp.pop %v1129
        %v1155 = vrcp.pop %v1131
        %v1156 = vrcp.pop %v1133
        %v1157 = vrcp.pop %v1135
        %v1158 = vrcp.pop %v1137
        %v1159 = vrcp.pop %v1139
        %v1160 = vrcp.pop %v1141
        %v1161 = vrcp.pop %v1143
        %v1162 = vrcp.pop %v1145
        %v1163 = vrcp.pop %v1147
        %v1164 = vmul.f32 %v1100, %v1148
        %v1165 = vmul.f32 %v1101, %v1149
        %v1166 = vmul.f32 %v1102, %v1150
        %v1167 = vmul.f32 %v1103, %v1151
        %v1168 = vmul.f32 %v1104, %v1152
        %v1169 = vmul.f32 %v1105, %v1153
        %v1170 = vmul.f32 %v1106, %v1154
        %v1171 = vmul.f32 %v1107, %v1155
        %v1172 = vmul.f32 %v1108, %v1156
        %v1173 = vmul.f32 %v1109, %v1157
        %v1174 = vmul.f32 %v1110, %v1158
        %v1175 = vmul.f32 %v1111, %v1159
        %v1176 = vmul.f32 %v1112, %v1160
        %v1177 = vmul.f32 %v1113, %v1161
        %v1178 = vmul.f32 %v1114, %v1162
        %v1179 = vmul.f32 %v1115, %v1163
        %1180 = vxpose.xlu0.b32.start [1/16] %v671, 128
        %1181 = vxpose.xlu0.b32.cont [2/16] %v676, 128
        %1182 = vxpose.xlu0.b32.cont [3/16] %v681, 128
        %1183 = vxpose.xlu0.b32.cont [4/16] %v686, 128
        %1184 = vxpose.xlu0.b32.cont [5/16] %v691, 128
        %1185 = vxpose.xlu0.b32.cont [6/16] %v696, 128
        %1186 = vxpose.xlu0.b32.cont [7/16] %v701, 128
        %1187 = vxpose.xlu0.b32.cont [8/16] %v706, 128
        %1188 = vxpose.xlu0.b32.cont [9/16] %v711, 128
        %1189 = vxpose.xlu0.b32.cont [10/16] %v716, 128
        %1190 = vxpose.xlu0.b32.cont [11/16] %v721, 128
        %1191 = vxpose.xlu0.b32.cont [12/16] %v726, 128
        %1192 = vxpose.xlu0.b32.cont [13/16] %v731, 128
        %1193 = vxpose.xlu0.b32.cont [14/16] %v736, 128
        %1194 = vxpose.xlu0.b32.cont [15/16] %v741, 128
        %1195 = vxpose.xlu0.b32.end [16/16] %v746, 128
        %v1196 = vpop.trf.xlu0
        %v1197 = vpop.trf.xlu0
        %v1198 = vpop.trf.xlu0
        %v1199 = vpop.trf.xlu0
        %v1200 = vpop.trf.xlu0
        %v1201 = vpop.trf.xlu0
        %v1202 = vpop.trf.xlu0
        %v1203 = vpop.trf.xlu0
        %v1204 = vpop.trf.xlu0
        %v1205 = vpop.trf.xlu0
        %v1206 = vpop.trf.xlu0
        %v1207 = vpop.trf.xlu0
        %v1208 = vpop.trf.xlu0
        %v1209 = vpop.trf.xlu0
        %v1210 = vpop.trf.xlu0
        %v1211 = vpop.trf.xlu0
        %1212 = vmatprep.subr.mxu0 0.0
        %1213 = vmatpush1.xpose.msra.mxu0 %v1164
        %1214 = vmatprep.subr.mxu0 0.0
        %1215 = vmatpush1.xpose.msra.mxu0 %v1165
        %1216 = vmatprep.subr.mxu0 0.0
        %1217 = vmatpush1.xpose.msra.mxu0 %v1166
        %1218 = vmatprep.subr.mxu0 0.0
        %1219 = vmatpush1.xpose.msra.mxu0 %v1167
        %1220 = vmatprep.subr.mxu0 0.0
        %1221 = vmatpush1.xpose.msra.mxu0 %v1168
        %1222 = vmatprep.subr.mxu0 0.0
        %1223 = vmatpush1.xpose.msra.mxu0 %v1169
        %1224 = vmatprep.subr.mxu0 0.0
        %1225 = vmatpush1.xpose.msra.mxu0 %v1170
        %1226 = vmatprep.subr.mxu0 0.0
        %1227 = vmatpush1.xpose.msra.mxu0 %v1171
        %1228 = vmatprep.subr.mxu0 0.0
        %1229 = vmatpush1.xpose.msra.mxu0 %v1172
        %1230 = vmatprep.subr.mxu0 0.0
        %1231 = vmatpush1.xpose.msra.mxu0 %v1173
        %1232 = vmatprep.subr.mxu0 0.0
        %1233 = vmatpush1.xpose.msra.mxu0 %v1174
        %1234 = vmatprep.subr.mxu0 0.0
        %1235 = vmatpush1.xpose.msra.mxu0 %v1175
        %1236 = vmatprep.subr.mxu0 0.0
        %1237 = vmatpush1.xpose.msra.mxu0 %v1176
        %1238 = vmatprep.subr.mxu0 0.0
        %1239 = vmatpush1.xpose.msra.mxu0 %v1177
        %1240 = vmatprep.subr.mxu0 0.0
        %1241 = vmatpush1.xpose.msra.mxu0 %v1178
        %1242 = vmatprep.subr.mxu0 0.0
        %1243 = vmatpush1.xpose.msra.mxu0 %v1179
        %1244 = vmatprep.subr.mxu0 0.0
        %1245 = vmatpush1.xpose.msra.mxu0 0.0
        %1246 = vmatprep.subr.mxu0 0.0
        %1247 = vmatpush1.xpose.msra.mxu0 0.0
        %1248 = vmatprep.subr.mxu0 0.0
        %1249 = vmatpush1.xpose.msra.mxu0 0.0
        %1250 = vmatprep.subr.mxu0 0.0
        %1251 = vmatpush1.xpose.msra.mxu0 0.0
        %1252 = vmatprep.subr.mxu0 0.0
        %1253 = vmatpush1.xpose.msra.mxu0 0.0
        %1254 = vmatprep.subr.mxu0 0.0
        %1255 = vmatpush1.xpose.msra.mxu0 0.0
        %1256 = vmatprep.subr.mxu0 0.0
        %1257 = vmatpush1.xpose.msra.mxu0 0.0
        %1258 = vmatprep.subr.mxu0 0.0
        %1259 = vmatpush1.xpose.msra.mxu0 0.0
        %1260 = vmatprep.subr.mxu0 0.0
        %1261 = vmatpush1.xpose.msra.mxu0 0.0
        %1262 = vmatprep.subr.mxu0 0.0
        %1263 = vmatpush1.xpose.msra.mxu0 0.0
        %1264 = vmatprep.subr.mxu0 0.0
        %1265 = vmatpush1.xpose.msra.mxu0 0.0
        %1266 = vmatprep.subr.mxu0 0.0
        %1267 = vmatpush1.xpose.msra.mxu0 0.0
        %1268 = vmatprep.subr.mxu0 0.0
        %1269 = vmatpush1.xpose.msra.mxu0 0.0
        %1270 = vmatprep.subr.mxu0 0.0
        %1271 = vmatpush1.xpose.msra.mxu0 0.0
        %1272 = vmatprep.subr.mxu0 0.0
        %1273 = vmatpush1.xpose.msra.mxu0 0.0
        %1274 = vmatprep.subr.mxu0 0.0
        %1275 = vmatpush1.xpose.msra.mxu0 0.0
        %1276 = vmatprep.mubr.f32.mxu0 0.0
        %1277 = vmatmul.mubr.f32.gmra.mrb[0].mxu0 %v1196
        %v1278 = vpop.f32.mrb[0].mxu0
        %v1279 = vadd.f32 0.0, %v1278
        %v1280 = vpop.f32.mrb[0].mxu0
        %1281 = vdwg.mxu0
        %1282 = vst [vmem:[%s228] sm:$0xff] %v1279
        %1283 = vrot.lane.b32.xlu0 %v373, 120
        %v1284 = vpop.permute.xlu0 %1283
        %1285 = vrot.lane.b32.xlu0 %v378, 120
        %v1286 = vpop.permute.xlu0 %1285
        %1287 = vrot.lane.b32.xlu0 %v383, 120
        %v1288 = vpop.permute.xlu0 %1287
        %1289 = vrot.lane.b32.xlu0 %v388, 120
        %v1290 = vpop.permute.xlu0 %1289
        %1291 = vrot.lane.b32.xlu0 %v393, 120
        %v1292 = vpop.permute.xlu0 %1291
        %1293 = vrot.lane.b32.xlu0 %v398, 120
        %v1294 = vpop.permute.xlu0 %1293
        %1295 = vrot.lane.b32.xlu0 %v403, 120
        %v1296 = vpop.permute.xlu0 %1295
        %1297 = vrot.lane.b32.xlu0 %v408, 120
        %v1298 = vpop.permute.xlu0 %1297
        %1299 = vrot.lane.b32.xlu0 %v413, 120
        %v1300 = vpop.permute.xlu0 %1299
        %1301 = vrot.lane.b32.xlu0 %v418, 120
        %v1302 = vpop.permute.xlu0 %1301
        %1303 = vrot.lane.b32.xlu0 %v423, 120
        %v1304 = vpop.permute.xlu0 %1303
        %1305 = vrot.lane.b32.xlu0 %v428, 120
        %v1306 = vpop.permute.xlu0 %1305
        %1307 = vrot.lane.b32.xlu0 %v433, 120
        %v1308 = vpop.permute.xlu0 %1307
        %1309 = vrot.lane.b32.xlu0 %v438, 120
        %v1310 = vpop.permute.xlu0 %1309
        %1311 = vrot.lane.b32.xlu0 %v443, 120
        %v1312 = vpop.permute.xlu0 %1311
        %1313 = vrot.lane.b32.xlu0 %v448, 120
        %v1314 = vpop.permute.xlu0 %1313
        %1315 = vrot.lane.b32.xlu0 %v522, 120
        %v1316 = vpop.permute.xlu0 %1315
        %1317 = vrot.lane.b32.xlu0 %v527, 120
        %v1318 = vpop.permute.xlu0 %1317
        %1319 = vrot.lane.b32.xlu0 %v532, 120
        %v1320 = vpop.permute.xlu0 %1319
        %1321 = vrot.lane.b32.xlu0 %v537, 120
        %v1322 = vpop.permute.xlu0 %1321
        %1323 = vrot.lane.b32.xlu0 %v542, 120
        %v1324 = vpop.permute.xlu0 %1323
        %1325 = vrot.lane.b32.xlu0 %v547, 120
        %v1326 = vpop.permute.xlu0 %1325
        %1327 = vrot.lane.b32.xlu0 %v552, 120
        %v1328 = vpop.permute.xlu0 %1327
        %1329 = vrot.lane.b32.xlu0 %v557, 120
        %v1330 = vpop.permute.xlu0 %1329
        %1331 = vrot.lane.b32.xlu0 %v562, 120
        %v1332 = vpop.permute.xlu0 %1331
        %1333 = vrot.lane.b32.xlu0 %v567, 120
        %v1334 = vpop.permute.xlu0 %1333
        %1335 = vrot.lane.b32.xlu0 %v572, 120
        %v1336 = vpop.permute.xlu0 %1335
        %1337 = vrot.lane.b32.xlu0 %v577, 120
        %v1338 = vpop.permute.xlu0 %1337
        %1339 = vrot.lane.b32.xlu0 %v582, 120
        %v1340 = vpop.permute.xlu0 %1339
        %1341 = vrot.lane.b32.xlu0 %v587, 120
        %v1342 = vpop.permute.xlu0 %1341
        %1343 = vrot.lane.b32.xlu0 %v592, 120
        %v1344 = vpop.permute.xlu0 %1343
        %1345 = vrot.lane.b32.xlu0 %v597, 120
        %v1346 = vpop.permute.xlu0 %1345
        %v1347 = vsel %vm754, %v1284, 0
        %v1349 = vsel %vm754, %v1286, 0
        %v1351 = vsel %vm754, %v1288, 0
        %v1353 = vsel %vm754, %v1290, 0
        %v1355 = vsel %vm754, %v1292, 0
        %v1357 = vsel %vm754, %v1294, 0
        %v1359 = vsel %vm754, %v1296, 0
        %v1361 = vsel %vm754, %v1298, 0
        %v1363 = vsel %vm754, %v1300, 0
        %v1365 = vsel %vm754, %v1302, 0
        %v1367 = vsel %vm754, %v1304, 0
        %v1369 = vsel %vm754, %v1306, 0
        %v1371 = vsel %vm754, %v1308, 0
        %v1373 = vsel %vm754, %v1310, 0
        %v1375 = vsel %vm754, %v1312, 0
        %v1377 = vsel %vm754, %v1314, 0
        %v1379 = vsel %vm754, %v1316, 0
        %v1381 = vsel %vm754, %v1318, 0
        %v1383 = vsel %vm754, %v1320, 0
        %v1385 = vsel %vm754, %v1322, 0
        %v1387 = vsel %vm754, %v1324, 0
        %v1389 = vsel %vm754, %v1326, 0
        %v1391 = vsel %vm754, %v1328, 0
        %v1393 = vsel %vm754, %v1330, 0
        %v1395 = vsel %vm754, %v1332, 0
        %v1397 = vsel %vm754, %v1334, 0
        %v1399 = vsel %vm754, %v1336, 0
        %v1401 = vsel %vm754, %v1338, 0
        %v1403 = vsel %vm754, %v1340, 0
        %v1405 = vsel %vm754, %v1342, 0
        %v1407 = vsel %vm754, %v1344, 0
        %v1409 = vsel %vm754, %v1346, 0
        %1411 = vmatprep.subr.mxu0 0.0
        %1412 = vmatpush1.xpose.msra.mxu0 %v1379
        %1413 = vmatprep.subr.mxu0 0.0
        %1414 = vmatpush1.xpose.msra.mxu0 %v1381
        %1415 = vmatprep.subr.mxu0 0.0
        %1416 = vmatpush1.xpose.msra.mxu0 %v1383
        %1417 = vmatprep.subr.mxu0 0.0
        %1418 = vmatpush1.xpose.msra.mxu0 %v1385
        %1419 = vmatprep.subr.mxu0 0.0
        %1420 = vmatpush1.xpose.msra.mxu0 %v1387
        %1421 = vmatprep.subr.mxu0 0.0
        %1422 = vmatpush1.xpose.msra.mxu0 %v1389
        %1423 = vmatprep.subr.mxu0 0.0
        %1424 = vmatpush1.xpose.msra.mxu0 %v1391
        %1425 = vmatprep.subr.mxu0 0.0
        %1426 = vmatpush1.xpose.msra.mxu0 %v1393
        %1427 = vmatprep.subr.mxu0 0.0
        %1428 = vmatpush1.xpose.msra.mxu0 %v1395
        %1429 = vmatprep.subr.mxu0 0.0
        %1430 = vmatpush1.xpose.msra.mxu0 %v1397
        %1431 = vmatprep.subr.mxu0 0.0
        %1432 = vmatpush1.xpose.msra.mxu0 %v1399
        %1433 = vmatprep.subr.mxu0 0.0
        %1434 = vmatpush1.xpose.msra.mxu0 %v1401
        %1435 = vmatprep.subr.mxu0 0.0
        %1436 = vmatpush1.xpose.msra.mxu0 %v1403
        %1437 = vmatprep.subr.mxu0 0.0
        %1438 = vmatpush1.xpose.msra.mxu0 %v1405
        %1439 = vmatprep.subr.mxu0 0.0
        %1440 = vmatpush1.xpose.msra.mxu0 %v1407
        %1441 = vmatprep.subr.mxu0 0.0
        %1442 = vmatpush1.xpose.msra.mxu0 %v1409
        %1443 = vmatprep.subr.mxu0 0.0
        %1444 = vmatpush1.xpose.msra.mxu0 0.0
        %1445 = vmatprep.subr.mxu0 0.0
        %1446 = vmatpush1.xpose.msra.mxu0 0.0
        %1447 = vmatprep.subr.mxu0 0.0
        %1448 = vmatpush1.xpose.msra.mxu0 0.0
        %1449 = vmatprep.subr.mxu0 0.0
        %1450 = vmatpush1.xpose.msra.mxu0 0.0
        %1451 = vmatprep.subr.mxu0 0.0
        %1452 = vmatpush1.xpose.msra.mxu0 0.0
        %1453 = vmatprep.subr.mxu0 0.0
        %1454 = vmatpush1.xpose.msra.mxu0 0.0
        %1455 = vmatprep.subr.mxu0 0.0
        %1456 = vmatpush1.xpose.msra.mxu0 0.0
        %1457 = vmatprep.subr.mxu0 0.0
        %1458 = vmatpush1.xpose.msra.mxu0 0.0
        %1459 = vmatprep.subr.mxu0 0.0
        %1460 = vmatpush1.xpose.msra.mxu0 0.0
        %1461 = vmatprep.subr.mxu0 0.0
        %1462 = vmatpush1.xpose.msra.mxu0 0.0
        %1463 = vmatprep.subr.mxu0 0.0
        %1464 = vmatpush1.xpose.msra.mxu0 0.0
        %1465 = vmatprep.subr.mxu0 0.0
        %1466 = vmatpush1.xpose.msra.mxu0 0.0
        %1467 = vmatprep.subr.mxu0 0.0
        %1468 = vmatpush1.xpose.msra.mxu0 0.0
        %1469 = vmatprep.subr.mxu0 0.0
        %1470 = vmatpush1.xpose.msra.mxu0 0.0
        %1471 = vmatprep.subr.mxu0 0.0
        %1472 = vmatpush1.xpose.msra.mxu0 0.0
        %1473 = vmatprep.subr.mxu0 0.0
        %1474 = vmatpush1.xpose.msra.mxu0 0.0
        %1475 = vmatprep.mubr.f32.mxu0 0.0
        %1476 = vmatmul.mubr.f32.gmra.mrb[0].mxu0 %v1347
        %v1477 = vpop.f32.mrb[0].mxu0
        %v1478 = vadd.f32 0.0, %v1477
        %v1479 = vpop.f32.mrb[0].mxu0
        %1480 = vmatprep.mubr.f32.mxu0 0.0
        %1481 = vmatmul.mubr.f32.gmra.mrb[0].mxu0 %v1349
        %v1482 = vpop.f32.mrb[0].mxu0
        %v1483 = vadd.f32 0.0, %v1482
        %v1484 = vpop.f32.mrb[0].mxu0
        %1485 = vmatprep.mubr.f32.mxu0 0.0
        %1486 = vmatmul.mubr.f32.gmra.mrb[0].mxu0 %v1351
        %v1487 = vpop.f32.mrb[0].mxu0
        %v1488 = vadd.f32 0.0, %v1487
        %v1489 = vpop.f32.mrb[0].mxu0
        %1490 = vmatprep.mubr.f32.mxu0 0.0
        %1491 = vmatmul.mubr.f32.gmra.mrb[0].mxu0 %v1353
        %v1492 = vpop.f32.mrb[0].mxu0
        %v1493 = vadd.f32 0.0, %v1492
        %v1494 = vpop.f32.mrb[0].mxu0
        %1495 = vmatprep.mubr.f32.mxu0 0.0
        %1496 = vmatmul.mubr.f32.gmra.mrb[0].mxu0 %v1355
        %v1497 = vpop.f32.mrb[0].mxu0
        %v1498 = vadd.f32 0.0, %v1497
        %v1499 = vpop.f32.mrb[0].mxu0
        %1500 = vmatprep.mubr.f32.mxu0 0.0
        %1501 = vmatmul.mubr.f32.gmra.mrb[0].mxu0 %v1357
        %v1502 = vpop.f32.mrb[0].mxu0
        %v1503 = vadd.f32 0.0, %v1502
        %v1504 = vpop.f32.mrb[0].mxu0
        %1505 = vmatprep.mubr.f32.mxu0 0.0
        %1506 = vmatmul.mubr.f32.gmra.mrb[0].mxu0 %v1359
        %v1507 = vpop.f32.mrb[0].mxu0
        %v1508 = vadd.f32 0.0, %v1507
        %v1509 = vpop.f32.mrb[0].mxu0
        %1510 = vmatprep.mubr.f32.mxu0 0.0
        %1511 = vmatmul.mubr.f32.gmra.mrb[0].mxu0 %v1361
        %v1512 = vpop.f32.mrb[0].mxu0
        %v1513 = vadd.f32 0.0, %v1512
        %v1514 = vpop.f32.mrb[0].mxu0
        %1515 = vmatprep.mubr.f32.mxu0 0.0
        %1516 = vmatmul.mubr.f32.gmra.mrb[0].mxu0 %v1363
        %v1517 = vpop.f32.mrb[0].mxu0
        %v1518 = vadd.f32 0.0, %v1517
        %v1519 = vpop.f32.mrb[0].mxu0
        %1520 = vmatprep.mubr.f32.mxu0 0.0
        %1521 = vmatmul.mubr.f32.gmra.mrb[0].mxu0 %v1365
        %v1522 = vpop.f32.mrb[0].mxu0
        %v1523 = vadd.f32 0.0, %v1522
        %v1524 = vpop.f32.mrb[0].mxu0
        %1525 = vmatprep.mubr.f32.mxu0 0.0
        %1526 = vmatmul.mubr.f32.gmra.mrb[0].mxu0 %v1367
        %v1527 = vpop.f32.mrb[0].mxu0
        %v1528 = vadd.f32 0.0, %v1527
        %v1529 = vpop.f32.mrb[0].mxu0
        %1530 = vmatprep.mubr.f32.mxu0 0.0
        %1531 = vmatmul.mubr.f32.gmra.mrb[0].mxu0 %v1369
        %v1532 = vpop.f32.mrb[0].mxu0
        %v1533 = vadd.f32 0.0, %v1532
        %v1534 = vpop.f32.mrb[0].mxu0
        %1535 = vmatprep.mubr.f32.mxu0 0.0
        %1536 = vmatmul.mubr.f32.gmra.mrb[0].mxu0 %v1371
        %v1537 = vpop.f32.mrb[0].mxu0
        %v1538 = vadd.f32 0.0, %v1537
        %v1539 = vpop.f32.mrb[0].mxu0
        %1540 = vmatprep.mubr.f32.mxu0 0.0
        %1541 = vmatmul.mubr.f32.gmra.mrb[0].mxu0 %v1373
        %v1542 = vpop.f32.mrb[0].mxu0
        %v1543 = vadd.f32 0.0, %v1542
        %v1544 = vpop.f32.mrb[0].mxu0
        %1545 = vmatprep.mubr.f32.mxu0 0.0
        %1546 = vmatmul.mubr.f32.gmra.mrb[0].mxu0 %v1375
        %v1547 = vpop.f32.mrb[0].mxu0
        %v1548 = vadd.f32 0.0, %v1547
        %v1549 = vpop.f32.mrb[0].mxu0
        %1550 = vmatprep.mubr.f32.mxu0 0.0
        %1551 = vmatmul.mubr.f32.gmra.mrb[0].mxu0 %v1377
        %v1552 = vpop.f32.mrb[0].mxu0
        %v1553 = vadd.f32 0.0, %v1552
        %v1554 = vpop.f32.mrb[0].mxu0
        %1555 = vdwg.mxu0
        %v1556 = vsel %vm1001, %v1478, -1e+30
        %v1557 = vsel %vm1001, %v1483, -1e+30
        %v1558 = vsel %vm1001, %v1488, -1e+30
        %v1559 = vsel %vm1001, %v1493, -1e+30
        %v1560 = vsel %vm1001, %v1498, -1e+30
        %v1561 = vsel %vm1001, %v1503, -1e+30
        %v1562 = vsel %vm1001, %v1508, -1e+30
        %v1563 = vsel %vm1001, %v1513, -1e+30
        %v1564 = vsel %vm1001, %v1518, -1e+30
        %v1565 = vsel %vm1001, %v1523, -1e+30
        %v1566 = vsel %vm1001, %v1528, -1e+30
        %v1567 = vsel %vm1001, %v1533, -1e+30
        %v1568 = vsel %vm1001, %v1538, -1e+30
        %v1569 = vsel %vm1001, %v1543, -1e+30
        %v1570 = vsel %vm1001, %v1548, -1e+30
        %v1571 = vsel %vm1001, %v1553, -1e+30
        %1572 = vmax.xlane.f32.xlu0 %v1556
        %v1573 = vpop.xlane.xlu0 %1572
        %1574 = vmax.xlane.f32.xlu0 %v1557
        %v1575 = vpop.xlane.xlu0 %1574
        %1576 = vmax.xlane.f32.xlu0 %v1558
        %v1577 = vpop.xlane.xlu0 %1576
        %1578 = vmax.xlane.f32.xlu0 %v1559
        %v1579 = vpop.xlane.xlu0 %1578
        %1580 = vmax.xlane.f32.xlu0 %v1560
        %v1581 = vpop.xlane.xlu0 %1580
        %1582 = vmax.xlane.f32.xlu0 %v1561
        %v1583 = vpop.xlane.xlu0 %1582
        %1584 = vmax.xlane.f32.xlu0 %v1562
        %v1585 = vpop.xlane.xlu0 %1584
        %1586 = vmax.xlane.f32.xlu0 %v1563
        %v1587 = vpop.xlane.xlu0 %1586
        %1588 = vmax.xlane.f32.xlu0 %v1564
        %v1589 = vpop.xlane.xlu0 %1588
        %1590 = vmax.xlane.f32.xlu0 %v1565
        %v1591 = vpop.xlane.xlu0 %1590
        %1592 = vmax.xlane.f32.xlu0 %v1566
        %v1593 = vpop.xlane.xlu0 %1592
        %1594 = vmax.xlane.f32.xlu0 %v1567
        %v1595 = vpop.xlane.xlu0 %1594
        %1596 = vmax.xlane.f32.xlu0 %v1568
        %v1597 = vpop.xlane.xlu0 %1596
        %1598 = vmax.xlane.f32.xlu0 %v1569
        %v1599 = vpop.xlane.xlu0 %1598
        %1600 = vmax.xlane.f32.xlu0 %v1570
        %v1601 = vpop.xlane.xlu0 %1600
        %1602 = vmax.xlane.f32.xlu0 %v1571
        %v1603 = vpop.xlane.xlu0 %1602
        %v1604 = vsub.f32 %v1556, %v1573
        %v1605 = vsub.f32 %v1557, %v1575
        %v1606 = vsub.f32 %v1558, %v1577
        %v1607 = vsub.f32 %v1559, %v1579
        %v1608 = vsub.f32 %v1560, %v1581
        %v1609 = vsub.f32 %v1561, %v1583
        %v1610 = vsub.f32 %v1562, %v1585
        %v1611 = vsub.f32 %v1563, %v1587
        %v1612 = vsub.f32 %v1564, %v1589
        %v1613 = vsub.f32 %v1565, %v1591
        %v1614 = vsub.f32 %v1566, %v1593
        %v1615 = vsub.f32 %v1567, %v1595
        %v1616 = vsub.f32 %v1568, %v1597
        %v1617 = vsub.f32 %v1569, %v1599
        %v1618 = vsub.f32 %v1570, %v1601
        %v1619 = vsub.f32 %v1571, %v1603
        %v1620 = vmul.f32 %v1604, 1.442695
        %v1621 = vpow.pop %v1620
        %v1622 = vmul.f32 %v1605, 1.442695
        %v1623 = vpow.pop %v1622
        %v1624 = vmul.f32 %v1606, 1.442695
        %v1625 = vpow.pop %v1624
        %v1626 = vmul.f32 %v1607, 1.442695
        %v1627 = vpow.pop %v1626
        %v1628 = vmul.f32 %v1608, 1.442695
        %v1629 = vpow.pop %v1628
        %v1630 = vmul.f32 %v1609, 1.442695
        %v1631 = vpow.pop %v1630
        %v1632 = vmul.f32 %v1610, 1.442695
        %v1633 = vpow.pop %v1632
        %v1634 = vmul.f32 %v1611, 1.442695
        %v1635 = vpow.pop %v1634
        %v1636 = vmul.f32 %v1612, 1.442695
        %v1637 = vpow.pop %v1636
        %v1638 = vmul.f32 %v1613, 1.442695
        %v1639 = vpow.pop %v1638
        %v1640 = vmul.f32 %v1614, 1.442695
        %v1641 = vpow.pop %v1640
        %v1642 = vmul.f32 %v1615, 1.442695
        %v1643 = vpow.pop %v1642
        %v1644 = vmul.f32 %v1616, 1.442695
        %v1645 = vpow.pop %v1644
        %v1646 = vmul.f32 %v1617, 1.442695
        %v1647 = vpow.pop %v1646
        %v1648 = vmul.f32 %v1618, 1.442695
        %v1649 = vpow.pop %v1648
        %v1650 = vmul.f32 %v1619, 1.442695
        %v1651 = vpow.pop %v1650
        %v1652 = vsel %vm1099, %v1621, 0.0
        %v1653 = vsel %vm1099, %v1623, 0.0
        %v1654 = vsel %vm1099, %v1625, 0.0
        %v1655 = vsel %vm1099, %v1627, 0.0
        %v1656 = vsel %vm1099, %v1629, 0.0
        %v1657 = vsel %vm1099, %v1631, 0.0
        %v1658 = vsel %vm1099, %v1633, 0.0
        %v1659 = vsel %vm1099, %v1635, 0.0
        %v1660 = vsel %vm1099, %v1637, 0.0
        %v1661 = vsel %vm1099, %v1639, 0.0
        %v1662 = vsel %vm1099, %v1641, 0.0
        %v1663 = vsel %vm1099, %v1643, 0.0
        %v1664 = vsel %vm1099, %v1645, 0.0
        %v1665 = vsel %vm1099, %v1647, 0.0
        %v1666 = vsel %vm1099, %v1649, 0.0
        %v1667 = vsel %vm1099, %v1651, 0.0
        %1668 = vadd.xlane.f32.xlu0 %v1652
        %v1669 = vpop.xlane.xlu0 %1668
        %1670 = vadd.xlane.f32.xlu0 %v1653
        %v1671 = vpop.xlane.xlu0 %1670
        %1672 = vadd.xlane.f32.xlu0 %v1654
        %v1673 = vpop.xlane.xlu0 %1672
        %1674 = vadd.xlane.f32.xlu0 %v1655
        %v1675 = vpop.xlane.xlu0 %1674
        %1676 = vadd.xlane.f32.xlu0 %v1656
        %v1677 = vpop.xlane.xlu0 %1676
        %1678 = vadd.xlane.f32.xlu0 %v1657
        %v1679 = vpop.xlane.xlu0 %1678
        %1680 = vadd.xlane.f32.xlu0 %v1658
        %v1681 = vpop.xlane.xlu0 %1680
        %1682 = vadd.xlane.f32.xlu0 %v1659
        %v1683 = vpop.xlane.xlu0 %1682
        %1684 = vadd.xlane.f32.xlu0 %v1660
        %v1685 = vpop.xlane.xlu0 %1684
        %1686 = vadd.xlane.f32.xlu0 %v1661
        %v1687 = vpop.xlane.xlu0 %1686
        %1688 = vadd.xlane.f32.xlu0 %v1662
        %v1689 = vpop.xlane.xlu0 %1688
        %1690 = vadd.xlane.f32.xlu0 %v1663
        %v1691 = vpop.xlane.xlu0 %1690
        %1692 = vadd.xlane.f32.xlu0 %v1664
        %v1693 = vpop.xlane.xlu0 %1692
        %1694 = vadd.xlane.f32.xlu0 %v1665
        %v1695 = vpop.xlane.xlu0 %1694
        %1696 = vadd.xlane.f32.xlu0 %v1666
        %v1697 = vpop.xlane.xlu0 %1696
        %1698 = vadd.xlane.f32.xlu0 %v1667
        %v1699 = vpop.xlane.xlu0 %1698
        %v1700 = vrcp.pop %v1669
        %v1701 = vrcp.pop %v1671
        %v1702 = vrcp.pop %v1673
        %v1703 = vrcp.pop %v1675
        %v1704 = vrcp.pop %v1677
        %v1705 = vrcp.pop %v1679
        %v1706 = vrcp.pop %v1681
        %v1707 = vrcp.pop %v1683
        %v1708 = vrcp.pop %v1685
        %v1709 = vrcp.pop %v1687
        %v1710 = vrcp.pop %v1689
        %v1711 = vrcp.pop %v1691
        %v1712 = vrcp.pop %v1693
        %v1713 = vrcp.pop %v1695
        %v1714 = vrcp.pop %v1697
        %v1715 = vrcp.pop %v1699
        %v1716 = vmul.f32 %v1652, %v1700
        %v1717 = vmul.f32 %v1653, %v1701
        %v1718 = vmul.f32 %v1654, %v1702
        %v1719 = vmul.f32 %v1655, %v1703
        %v1720 = vmul.f32 %v1656, %v1704
        %v1721 = vmul.f32 %v1657, %v1705
        %v1722 = vmul.f32 %v1658, %v1706
        %v1723 = vmul.f32 %v1659, %v1707
        %v1724 = vmul.f32 %v1660, %v1708
        %v1725 = vmul.f32 %v1661, %v1709
        %v1726 = vmul.f32 %v1662, %v1710
        %v1727 = vmul.f32 %v1663, %v1711
        %v1728 = vmul.f32 %v1664, %v1712
        %v1729 = vmul.f32 %v1665, %v1713
        %v1730 = vmul.f32 %v1666, %v1714
        %v1731 = vmul.f32 %v1667, %v1715
        %1748 = vrot.lane.b32.xlu0 %v671, 120
        %v1749 = vpop.permute.xlu0 %1748
        %1750 = vrot.lane.b32.xlu0 %v676, 120
        %v1751 = vpop.permute.xlu0 %1750
        %1752 = vrot.lane.b32.xlu0 %v681, 120
        %v1753 = vpop.permute.xlu0 %1752
        %1754 = vrot.lane.b32.xlu0 %v686, 120
        %v1755 = vpop.permute.xlu0 %1754
        %1756 = vrot.lane.b32.xlu0 %v691, 120
        %v1757 = vpop.permute.xlu0 %1756
        %1758 = vrot.lane.b32.xlu0 %v696, 120
        %v1759 = vpop.permute.xlu0 %1758
        %1760 = vrot.lane.b32.xlu0 %v701, 120
        %v1761 = vpop.permute.xlu0 %1760
        %1762 = vrot.lane.b32.xlu0 %v706, 120
        %v1763 = vpop.permute.xlu0 %1762
        %1764 = vrot.lane.b32.xlu0 %v711, 120
        %v1765 = vpop.permute.xlu0 %1764
        %1766 = vrot.lane.b32.xlu0 %v716, 120
        %v1767 = vpop.permute.xlu0 %1766
        %1768 = vrot.lane.b32.xlu0 %v721, 120
        %v1769 = vpop.permute.xlu0 %1768
        %1770 = vrot.lane.b32.xlu0 %v726, 120
        %v1771 = vpop.permute.xlu0 %1770
        %1772 = vrot.lane.b32.xlu0 %v731, 120
        %v1773 = vpop.permute.xlu0 %1772
        %1774 = vrot.lane.b32.xlu0 %v736, 120
        %v1775 = vpop.permute.xlu0 %1774
        %1776 = vrot.lane.b32.xlu0 %v741, 120
        %v1777 = vpop.permute.xlu0 %1776
        %1778 = vrot.lane.b32.xlu0 %v746, 120
        %v1779 = vpop.permute.xlu0 %1778
        %1796 = vxpose.xlu0.b32.start [1/16] %v1749, 128
        %1797 = vxpose.xlu0.b32.cont [2/16] %v1751, 128
        %1798 = vxpose.xlu0.b32.cont [3/16] %v1753, 128
        %1799 = vxpose.xlu0.b32.cont [4/16] %v1755, 128
        %1800 = vxpose.xlu0.b32.cont [5/16] %v1757, 128
        %1801 = vxpose.xlu0.b32.cont [6/16] %v1759, 128
        %1802 = vxpose.xlu0.b32.cont [7/16] %v1761, 128
        %1803 = vxpose.xlu0.b32.cont [8/16] %v1763, 128
        %1804 = vxpose.xlu0.b32.cont [9/16] %v1765, 128
        %1805 = vxpose.xlu0.b32.cont [10/16] %v1767, 128
        %1806 = vxpose.xlu0.b32.cont [11/16] %v1769, 128
        %1807 = vxpose.xlu0.b32.cont [12/16] %v1771, 128
        %1808 = vxpose.xlu0.b32.cont [13/16] %v1773, 128
        %1809 = vxpose.xlu0.b32.cont [14/16] %v1775, 128
        %1810 = vxpose.xlu0.b32.cont [15/16] %v1777, 128
        %1811 = vxpose.xlu0.b32.end [16/16] %v1779, 128
        %v1812 = vpop.trf.xlu0
        %v1813 = vpop.trf.xlu0
        %v1814 = vpop.trf.xlu0
        %v1815 = vpop.trf.xlu0
        %v1816 = vpop.trf.xlu0
        %v1817 = vpop.trf.xlu0
        %v1818 = vpop.trf.xlu0
        %v1819 = vpop.trf.xlu0
        %v1820 = vpop.trf.xlu0
        %v1821 = vpop.trf.xlu0
        %v1822 = vpop.trf.xlu0
        %v1823 = vpop.trf.xlu0
        %v1824 = vpop.trf.xlu0
        %v1825 = vpop.trf.xlu0
        %v1826 = vpop.trf.xlu0
        %v1827 = vpop.trf.xlu0
        %1828 = vmatprep.subr.mxu0 0.0
        %1829 = vmatpush1.xpose.msra.mxu0 %v1716
        %1830 = vmatprep.subr.mxu0 0.0
        %1831 = vmatpush1.xpose.msra.mxu0 %v1717
        %1832 = vmatprep.subr.mxu0 0.0
        %1833 = vmatpush1.xpose.msra.mxu0 %v1718
        %1834 = vmatprep.subr.mxu0 0.0
        %1835 = vmatpush1.xpose.msra.mxu0 %v1719
        %1836 = vmatprep.subr.mxu0 0.0
        %1837 = vmatpush1.xpose.msra.mxu0 %v1720
        %1838 = vmatprep.subr.mxu0 0.0
        %1839 = vmatpush1.xpose.msra.mxu0 %v1721
        %1840 = vmatprep.subr.mxu0 0.0
        %1841 = vmatpush1.xpose.msra.mxu0 %v1722
        %1842 = vmatprep.subr.mxu0 0.0
        %1843 = vmatpush1.xpose.msra.mxu0 %v1723
        %1844 = vmatprep.subr.mxu0 0.0
        %1845 = vmatpush1.xpose.msra.mxu0 %v1724
        %1846 = vmatprep.subr.mxu0 0.0
        %1847 = vmatpush1.xpose.msra.mxu0 %v1725
        %1848 = vmatprep.subr.mxu0 0.0
        %1849 = vmatpush1.xpose.msra.mxu0 %v1726
        %1850 = vmatprep.subr.mxu0 0.0
        %1851 = vmatpush1.xpose.msra.mxu0 %v1727
        %1852 = vmatprep.subr.mxu0 0.0
        %1853 = vmatpush1.xpose.msra.mxu0 %v1728
        %1854 = vmatprep.subr.mxu0 0.0
        %1855 = vmatpush1.xpose.msra.mxu0 %v1729
        %1856 = vmatprep.subr.mxu0 0.0
        %1857 = vmatpush1.xpose.msra.mxu0 %v1730
        %1858 = vmatprep.subr.mxu0 0.0
        %1859 = vmatpush1.xpose.msra.mxu0 %v1731
        %1860 = vmatprep.subr.mxu0 0.0
        %1861 = vmatpush1.xpose.msra.mxu0 0.0
        %1862 = vmatprep.subr.mxu0 0.0
        %1863 = vmatpush1.xpose.msra.mxu0 0.0
        %1864 = vmatprep.subr.mxu0 0.0
        %1865 = vmatpush1.xpose.msra.mxu0 0.0
        %1866 = vmatprep.subr.mxu0 0.0
        %1867 = vmatpush1.xpose.msra.mxu0 0.0
        %1868 = vmatprep.subr.mxu0 0.0
        %1869 = vmatpush1.xpose.msra.mxu0 0.0
        %1870 = vmatprep.subr.mxu0 0.0
        %1871 = vmatpush1.xpose.msra.mxu0 0.0
        %1872 = vmatprep.subr.mxu0 0.0
        %1873 = vmatpush1.xpose.msra.mxu0 0.0
        %1874 = vmatprep.subr.mxu0 0.0
        %1875 = vmatpush1.xpose.msra.mxu0 0.0
        %1876 = vmatprep.subr.mxu0 0.0
        %1877 = vmatpush1.xpose.msra.mxu0 0.0
        %1878 = vmatprep.subr.mxu0 0.0
        %1879 = vmatpush1.xpose.msra.mxu0 0.0
        %1880 = vmatprep.subr.mxu0 0.0
        %1881 = vmatpush1.xpose.msra.mxu0 0.0
        %1882 = vmatprep.subr.mxu0 0.0
        %1883 = vmatpush1.xpose.msra.mxu0 0.0
        %1884 = vmatprep.subr.mxu0 0.0
        %1885 = vmatpush1.xpose.msra.mxu0 0.0
        %1886 = vmatprep.subr.mxu0 0.0
        %1887 = vmatpush1.xpose.msra.mxu0 0.0
        %1888 = vmatprep.subr.mxu0 0.0
        %1889 = vmatpush1.xpose.msra.mxu0 0.0
        %1890 = vmatprep.subr.mxu0 0.0
        %1891 = vmatpush1.xpose.msra.mxu0 0.0
        %1892 = vmatprep.mubr.f32.mxu0 0.0
        %1893 = vmatmul.mubr.f32.gmra.mrb[0].mxu0 %v1812
        %v1894 = vpop.f32.mrb[0].mxu0
        %v1895 = vadd.f32 0.0, %v1894
        %v1896 = vpop.f32.mrb[0].mxu0
        %1897 = vdwg.mxu0
        %1898 = vst [vmem:[%s228 + $0x8] sm:$0xff] %v1895
        %1899 = vrot.lane.b32.xlu0 %v373, 112
        %v1900 = vpop.permute.xlu0 %1899
        %1901 = vrot.lane.b32.xlu0 %v378, 112
        %v1902 = vpop.permute.xlu0 %1901
        %1903 = vrot.lane.b32.xlu0 %v383, 112
        %v1904 = vpop.permute.xlu0 %1903
        %1905 = vrot.lane.b32.xlu0 %v388, 112
        %v1906 = vpop.permute.xlu0 %1905
        %1907 = vrot.lane.b32.xlu0 %v393, 112
        %v1908 = vpop.permute.xlu0 %1907
        %1909 = vrot.lane.b32.xlu0 %v398, 112
        %v1910 = vpop.permute.xlu0 %1909
        %1911 = vrot.lane.b32.xlu0 %v403, 112
        %v1912 = vpop.permute.xlu0 %1911
        %1913 = vrot.lane.b32.xlu0 %v408, 112
        %v1914 = vpop.permute.xlu0 %1913
        %1915 = vrot.lane.b32.xlu0 %v413, 112
        %v1916 = vpop.permute.xlu0 %1915
        %1917 = vrot.lane.b32.xlu0 %v418, 112
        %v1918 = vpop.permute.xlu0 %1917
        %1919 = vrot.lane.b32.xlu0 %v423, 112
        %v1920 = vpop.permute.xlu0 %1919
        %1921 = vrot.lane.b32.xlu0 %v428, 112
        %v1922 = vpop.permute.xlu0 %1921
        %1923 = vrot.lane.b32.xlu0 %v433, 112
        %v1924 = vpop.permute.xlu0 %1923
        %1925 = vrot.lane.b32.xlu0 %v438, 112
        %v1926 = vpop.permute.xlu0 %1925
        %1927 = vrot.lane.b32.xlu0 %v443, 112
        %v1928 = vpop.permute.xlu0 %1927
        %1929 = vrot.lane.b32.xlu0 %v448, 112
        %v1930 = vpop.permute.xlu0 %1929
        %1931 = vrot.lane.b32.xlu0 %v522, 112
        %v1932 = vpop.permute.xlu0 %1931
        %1933 = vrot.lane.b32.xlu0 %v527, 112
        %v1934 = vpop.permute.xlu0 %1933
        %1935 = vrot.lane.b32.xlu0 %v532, 112
        %v1936 = vpop.permute.xlu0 %1935
        %1937 = vrot.lane.b32.xlu0 %v537, 112
        %v1938 = vpop.permute.xlu0 %1937
        %1939 = vrot.lane.b32.xlu0 %v542, 112
        %v1940 = vpop.permute.xlu0 %1939
        %1941 = vrot.lane.b32.xlu0 %v547, 112
        %v1942 = vpop.permute.xlu0 %1941
        %1943 = vrot.lane.b32.xlu0 %v552, 112
        %v1944 = vpop.permute.xlu0 %1943
        %1945 = vrot.lane.b32.xlu0 %v557, 112
        %v1946 = vpop.permute.xlu0 %1945
        %1947 = vrot.lane.b32.xlu0 %v562, 112
        %v1948 = vpop.permute.xlu0 %1947
        %1949 = vrot.lane.b32.xlu0 %v567, 112
        %v1950 = vpop.permute.xlu0 %1949
        %1951 = vrot.lane.b32.xlu0 %v572, 112
        %v1952 = vpop.permute.xlu0 %1951
        %1953 = vrot.lane.b32.xlu0 %v577, 112
        %v1954 = vpop.permute.xlu0 %1953
        %1955 = vrot.lane.b32.xlu0 %v582, 112
        %v1956 = vpop.permute.xlu0 %1955
        %1957 = vrot.lane.b32.xlu0 %v587, 112
        %v1958 = vpop.permute.xlu0 %1957
        %1959 = vrot.lane.b32.xlu0 %v592, 112
        %v1960 = vpop.permute.xlu0 %1959
        %1961 = vrot.lane.b32.xlu0 %v597, 112
        %v1962 = vpop.permute.xlu0 %1961
        %v1963 = vsel %vm754, %v1900, 0
        %v1965 = vsel %vm754, %v1902, 0
        %v1967 = vsel %vm754, %v1904, 0
        %v1969 = vsel %vm754, %v1906, 0
        %v1971 = vsel %vm754, %v1908, 0
        %v1973 = vsel %vm754, %v1910, 0
        %v1975 = vsel %vm754, %v1912, 0
        %v1977 = vsel %vm754, %v1914, 0
        %v1979 = vsel %vm754, %v1916, 0
        %v1981 = vsel %vm754, %v1918, 0
        %v1983 = vsel %vm754, %v1920, 0
        %v1985 = vsel %vm754, %v1922, 0
        %v1987 = vsel %vm754, %v1924, 0
        %v1989 = vsel %vm754, %v1926, 0
        %v1991 = vsel %vm754, %v1928, 0
        %v1993 = vsel %vm754, %v1930, 0
        %v1995 = vsel %vm754, %v1932, 0
        %v1997 = vsel %vm754, %v1934, 0
        %v1999 = vsel %vm754, %v1936, 0
        %v2001 = vsel %vm754, %v1938, 0
        %v2003 = vsel %vm754, %v1940, 0
        %v2005 = vsel %vm754, %v1942, 0
        %v2007 = vsel %vm754, %v1944, 0
        %v2009 = vsel %vm754, %v1946, 0
        %v2011 = vsel %vm754, %v1948, 0
        %v2013 = vsel %vm754, %v1950, 0
        %v2015 = vsel %vm754, %v1952, 0
        %v2017 = vsel %vm754, %v1954, 0
        %v2019 = vsel %vm754, %v1956, 0
        %v2021 = vsel %vm754, %v1958, 0
        %v2023 = vsel %vm754, %v1960, 0
        %v2025 = vsel %vm754, %v1962, 0
        %2027 = vmatprep.subr.mxu0 0.0
        %2028 = vmatpush1.xpose.msra.mxu0 %v1995
        %2029 = vmatprep.subr.mxu0 0.0
        %2030 = vmatpush1.xpose.msra.mxu0 %v1997
        %2031 = vmatprep.subr.mxu0 0.0
        %2032 = vmatpush1.xpose.msra.mxu0 %v1999
        %2033 = vmatprep.subr.mxu0 0.0
        %2034 = vmatpush1.xpose.msra.mxu0 %v2001
        %2035 = vmatprep.subr.mxu0 0.0
        %2036 = vmatpush1.xpose.msra.mxu0 %v2003
        %2037 = vmatprep.subr.mxu0 0.0
        %2038 = vmatpush1.xpose.msra.mxu0 %v2005
        %2039 = vmatprep.subr.mxu0 0.0
        %2040 = vmatpush1.xpose.msra.mxu0 %v2007
        %2041 = vmatprep.subr.mxu0 0.0
        %2042 = vmatpush1.xpose.msra.mxu0 %v2009
        %2043 = vmatprep.subr.mxu0 0.0
        %2044 = vmatpush1.xpose.msra.mxu0 %v2011
        %2045 = vmatprep.subr.mxu0 0.0
        %2046 = vmatpush1.xpose.msra.mxu0 %v2013
        %2047 = vmatprep.subr.mxu0 0.0
        %2048 = vmatpush1.xpose.msra.mxu0 %v2015
        %2049 = vmatprep.subr.mxu0 0.0
        %2050 = vmatpush1.xpose.msra.mxu0 %v2017
        %2051 = vmatprep.subr.mxu0 0.0
        %2052 = vmatpush1.xpose.msra.mxu0 %v2019
        %2053 = vmatprep.subr.mxu0 0.0
        %2054 = vmatpush1.xpose.msra.mxu0 %v2021
        %2055 = vmatprep.subr.mxu0 0.0
        %2056 = vmatpush1.xpose.msra.mxu0 %v2023
        %2057 = vmatprep.subr.mxu0 0.0
        %2058 = vmatpush1.xpose.msra.mxu0 %v2025
        %2059 = vmatprep.subr.mxu0 0.0
        %2060 = vmatpush1.xpose.msra.mxu0 0.0
        %2061 = vmatprep.subr.mxu0 0.0
        %2062 = vmatpush1.xpose.msra.mxu0 0.0
        %2063 = vmatprep.subr.mxu0 0.0
        %2064 = vmatpush1.xpose.msra.mxu0 0.0
        %2065 = vmatprep.subr.mxu0 0.0
        %2066 = vmatpush1.xpose.msra.mxu0 0.0
        %2067 = vmatprep.subr.mxu0 0.0
        %2068 = vmatpush1.xpose.msra.mxu0 0.0
        %2069 = vmatprep.subr.mxu0 0.0
        %2070 = vmatpush1.xpose.msra.mxu0 0.0
        %2071 = vmatprep.subr.mxu0 0.0
        %2072 = vmatpush1.xpose.msra.mxu0 0.0
        %2073 = vmatprep.subr.mxu0 0.0
        %2074 = vmatpush1.xpose.msra.mxu0 0.0
        %2075 = vmatprep.subr.mxu0 0.0
        %2076 = vmatpush1.xpose.msra.mxu0 0.0
        %2077 = vmatprep.subr.mxu0 0.0
        %2078 = vmatpush1.xpose.msra.mxu0 0.0
        %2079 = vmatprep.subr.mxu0 0.0
        %2080 = vmatpush1.xpose.msra.mxu0 0.0
        %2081 = vmatprep.subr.mxu0 0.0
        %2082 = vmatpush1.xpose.msra.mxu0 0.0
        %2083 = vmatprep.subr.mxu0 0.0
        %2084 = vmatpush1.xpose.msra.mxu0 0.0
        %2085 = vmatprep.subr.mxu0 0.0
        %2086 = vmatpush1.xpose.msra.mxu0 0.0
        %2087 = vmatprep.subr.mxu0 0.0
        %2088 = vmatpush1.xpose.msra.mxu0 0.0
        %2089 = vmatprep.subr.mxu0 0.0
        %2090 = vmatpush1.xpose.msra.mxu0 0.0
        %2091 = vmatprep.mubr.f32.mxu0 0.0
        %2092 = vmatmul.mubr.f32.gmra.mrb[0].mxu0 %v1963
        %v2093 = vpop.f32.mrb[0].mxu0
        %v2094 = vadd.f32 0.0, %v2093
        %v2095 = vpop.f32.mrb[0].mxu0
        %2096 = vmatprep.mubr.f32.mxu0 0.0
        %2097 = vmatmul.mubr.f32.gmra.mrb[0].mxu0 %v1965
        %v2098 = vpop.f32.mrb[0].mxu0
        %v2099 = vadd.f32 0.0, %v2098
        %v2100 = vpop.f32.mrb[0].mxu0
        %2101 = vmatprep.mubr.f32.mxu0 0.0
        %2102 = vmatmul.mubr.f32.gmra.mrb[0].mxu0 %v1967
        %v2103 = vpop.f32.mrb[0].mxu0
        %v2104 = vadd.f32 0.0, %v2103
        %v2105 = vpop.f32.mrb[0].mxu0
        %2106 = vmatprep.mubr.f32.mxu0 0.0
        %2107 = vmatmul.mubr.f32.gmra.mrb[0].mxu0 %v1969
        %v2108 = vpop.f32.mrb[0].mxu0
        %v2109 = vadd.f32 0.0, %v2108
        %v2110 = vpop.f32.mrb[0].mxu0
        %2111 = vmatprep.mubr.f32.mxu0 0.0
        %2112 = vmatmul.mubr.f32.gmra.mrb[0].mxu0 %v1971
        %v2113 = vpop.f32.mrb[0].mxu0
        %v2114 = vadd.f32 0.0, %v2113
        %v2115 = vpop.f32.mrb[0].mxu0
        %2116 = vmatprep.mubr.f32.mxu0 0.0
        %2117 = vmatmul.mubr.f32.gmra.mrb[0].mxu0 %v1973
        %v2118 = vpop.f32.mrb[0].mxu0
        %v2119 = vadd.f32 0.0, %v2118
        %v2120 = vpop.f32.mrb[0].mxu0
        %2121 = vmatprep.mubr.f32.mxu0 0.0
        %2122 = vmatmul.mubr.f32.gmra.mrb[0].mxu0 %v1975
        %v2123 = vpop.f32.mrb[0].mxu0
        %v2124 = vadd.f32 0.0, %v2123
        %v2125 = vpop.f32.mrb[0].mxu0
        %2126 = vmatprep.mubr.f32.mxu0 0.0
        %2127 = vmatmul.mubr.f32.gmra.mrb[0].mxu0 %v1977
        %v2128 = vpop.f32.mrb[0].mxu0
        %v2129 = vadd.f32 0.0, %v2128
        %v2130 = vpop.f32.mrb[0].mxu0
        %2131 = vmatprep.mubr.f32.mxu0 0.0
        %2132 = vmatmul.mubr.f32.gmra.mrb[0].mxu0 %v1979
        %v2133 = vpop.f32.mrb[0].mxu0
        %v2134 = vadd.f32 0.0, %v2133
        %v2135 = vpop.f32.mrb[0].mxu0
        %2136 = vmatprep.mubr.f32.mxu0 0.0
        %2137 = vmatmul.mubr.f32.gmra.mrb[0].mxu0 %v1981
        %v2138 = vpop.f32.mrb[0].mxu0
        %v2139 = vadd.f32 0.0, %v2138
        %v2140 = vpop.f32.mrb[0].mxu0
        %2141 = vmatprep.mubr.f32.mxu0 0.0
        %2142 = vmatmul.mubr.f32.gmra.mrb[0].mxu0 %v1983
        %v2143 = vpop.f32.mrb[0].mxu0
        %v2144 = vadd.f32 0.0, %v2143
        %v2145 = vpop.f32.mrb[0].mxu0
        %2146 = vmatprep.mubr.f32.mxu0 0.0
        %2147 = vmatmul.mubr.f32.gmra.mrb[0].mxu0 %v1985
        %v2148 = vpop.f32.mrb[0].mxu0
        %v2149 = vadd.f32 0.0, %v2148
        %v2150 = vpop.f32.mrb[0].mxu0
        %2151 = vmatprep.mubr.f32.mxu0 0.0
        %2152 = vmatmul.mubr.f32.gmra.mrb[0].mxu0 %v1987
        %v2153 = vpop.f32.mrb[0].mxu0
        %v2154 = vadd.f32 0.0, %v2153
        %v2155 = vpop.f32.mrb[0].mxu0
        %2156 = vmatprep.mubr.f32.mxu0 0.0
        %2157 = vmatmul.mubr.f32.gmra.mrb[0].mxu0 %v1989
        %v2158 = vpop.f32.mrb[0].mxu0
        %v2159 = vadd.f32 0.0, %v2158
        %v2160 = vpop.f32.mrb[0].mxu0
        %2161 = vmatprep.mubr.f32.mxu0 0.0
        %2162 = vmatmul.mubr.f32.gmra.mrb[0].mxu0 %v1991
        %v2163 = vpop.f32.mrb[0].mxu0
        %v2164 = vadd.f32 0.0, %v2163
        %v2165 = vpop.f32.mrb[0].mxu0
        %2166 = vmatprep.mubr.f32.mxu0 0.0
        %2167 = vmatmul.mubr.f32.gmra.mrb[0].mxu0 %v1993
        %v2168 = vpop.f32.mrb[0].mxu0
        %v2169 = vadd.f32 0.0, %v2168
        %v2170 = vpop.f32.mrb[0].mxu0
        %2171 = vdwg.mxu0
        %v2172 = vsel %vm1001, %v2094, -1e+30
        %v2173 = vsel %vm1001, %v2099, -1e+30
        %v2174 = vsel %vm1001, %v2104, -1e+30
        %v2175 = vsel %vm1001, %v2109, -1e+30
        %v2176 = vsel %vm1001, %v2114, -1e+30
        %v2177 = vsel %vm1001, %v2119, -1e+30
        %v2178 = vsel %vm1001, %v2124, -1e+30
        %v2179 = vsel %vm1001, %v2129, -1e+30
        %v2180 = vsel %vm1001, %v2134, -1e+30
        %v2181 = vsel %vm1001, %v2139, -1e+30
        %v2182 = vsel %vm1001, %v2144, -1e+30
        %v2183 = vsel %vm1001, %v2149, -1e+30
        %v2184 = vsel %vm1001, %v2154, -1e+30
        %v2185 = vsel %vm1001, %v2159, -1e+30
        %v2186 = vsel %vm1001, %v2164, -1e+30
        %v2187 = vsel %vm1001, %v2169, -1e+30
        %2188 = vmax.xlane.f32.xlu0 %v2172
        %v2189 = vpop.xlane.xlu0 %2188
        %2190 = vmax.xlane.f32.xlu0 %v2173
        %v2191 = vpop.xlane.xlu0 %2190
        %2192 = vmax.xlane.f32.xlu0 %v2174
        %v2193 = vpop.xlane.xlu0 %2192
        %2194 = vmax.xlane.f32.xlu0 %v2175
        %v2195 = vpop.xlane.xlu0 %2194
        %2196 = vmax.xlane.f32.xlu0 %v2176
        %v2197 = vpop.xlane.xlu0 %2196
        %2198 = vmax.xlane.f32.xlu0 %v2177
        %v2199 = vpop.xlane.xlu0 %2198
        %2200 = vmax.xlane.f32.xlu0 %v2178
        %v2201 = vpop.xlane.xlu0 %2200
        %2202 = vmax.xlane.f32.xlu0 %v2179
        %v2203 = vpop.xlane.xlu0 %2202
        %2204 = vmax.xlane.f32.xlu0 %v2180
        %v2205 = vpop.xlane.xlu0 %2204
        %2206 = vmax.xlane.f32.xlu0 %v2181
        %v2207 = vpop.xlane.xlu0 %2206
        %2208 = vmax.xlane.f32.xlu0 %v2182
        %v2209 = vpop.xlane.xlu0 %2208
        %2210 = vmax.xlane.f32.xlu0 %v2183
        %v2211 = vpop.xlane.xlu0 %2210
        %2212 = vmax.xlane.f32.xlu0 %v2184
        %v2213 = vpop.xlane.xlu0 %2212
        %2214 = vmax.xlane.f32.xlu0 %v2185
        %v2215 = vpop.xlane.xlu0 %2214
        %2216 = vmax.xlane.f32.xlu0 %v2186
        %v2217 = vpop.xlane.xlu0 %2216
        %2218 = vmax.xlane.f32.xlu0 %v2187
        %v2219 = vpop.xlane.xlu0 %2218
        %v2220 = vsub.f32 %v2172, %v2189
        %v2221 = vsub.f32 %v2173, %v2191
        %v2222 = vsub.f32 %v2174, %v2193
        %v2223 = vsub.f32 %v2175, %v2195
        %v2224 = vsub.f32 %v2176, %v2197
        %v2225 = vsub.f32 %v2177, %v2199
        %v2226 = vsub.f32 %v2178, %v2201
        %v2227 = vsub.f32 %v2179, %v2203
        %v2228 = vsub.f32 %v2180, %v2205
        %v2229 = vsub.f32 %v2181, %v2207
        %v2230 = vsub.f32 %v2182, %v2209
        %v2231 = vsub.f32 %v2183, %v2211
        %v2232 = vsub.f32 %v2184, %v2213
        %v2233 = vsub.f32 %v2185, %v2215
        %v2234 = vsub.f32 %v2186, %v2217
        %v2235 = vsub.f32 %v2187, %v2219
        %v2236 = vmul.f32 %v2220, 1.442695
        %v2237 = vpow.pop %v2236
        %v2238 = vmul.f32 %v2221, 1.442695
        %v2239 = vpow.pop %v2238
        %v2240 = vmul.f32 %v2222, 1.442695
        %v2241 = vpow.pop %v2240
        %v2242 = vmul.f32 %v2223, 1.442695
        %v2243 = vpow.pop %v2242
        %v2244 = vmul.f32 %v2224, 1.442695
        %v2245 = vpow.pop %v2244
        %v2246 = vmul.f32 %v2225, 1.442695
        %v2247 = vpow.pop %v2246
        %v2248 = vmul.f32 %v2226, 1.442695
        %v2249 = vpow.pop %v2248
        %v2250 = vmul.f32 %v2227, 1.442695
        %v2251 = vpow.pop %v2250
        %v2252 = vmul.f32 %v2228, 1.442695
        %v2253 = vpow.pop %v2252
        %v2254 = vmul.f32 %v2229, 1.442695
        %v2255 = vpow.pop %v2254
        %v2256 = vmul.f32 %v2230, 1.442695
        %v2257 = vpow.pop %v2256
        %v2258 = vmul.f32 %v2231, 1.442695
        %v2259 = vpow.pop %v2258
        %v2260 = vmul.f32 %v2232, 1.442695
        %v2261 = vpow.pop %v2260
        %v2262 = vmul.f32 %v2233, 1.442695
        %v2263 = vpow.pop %v2262
        %v2264 = vmul.f32 %v2234, 1.442695
        %v2265 = vpow.pop %v2264
        %v2266 = vmul.f32 %v2235, 1.442695
        %v2267 = vpow.pop %v2266
        %v2268 = vsel %vm1099, %v2237, 0.0
        %v2269 = vsel %vm1099, %v2239, 0.0
        %v2270 = vsel %vm1099, %v2241, 0.0
        %v2271 = vsel %vm1099, %v2243, 0.0
        %v2272 = vsel %vm1099, %v2245, 0.0
        %v2273 = vsel %vm1099, %v2247, 0.0
        %v2274 = vsel %vm1099, %v2249, 0.0
        %v2275 = vsel %vm1099, %v2251, 0.0
        %v2276 = vsel %vm1099, %v2253, 0.0
        %v2277 = vsel %vm1099, %v2255, 0.0
        %v2278 = vsel %vm1099, %v2257, 0.0
        %v2279 = vsel %vm1099, %v2259, 0.0
        %v2280 = vsel %vm1099, %v2261, 0.0
        %v2281 = vsel %vm1099, %v2263, 0.0
        %v2282 = vsel %vm1099, %v2265, 0.0
        %v2283 = vsel %vm1099, %v2267, 0.0
        %2284 = vadd.xlane.f32.xlu0 %v2268
        %v2285 = vpop.xlane.xlu0 %2284
        %2286 = vadd.xlane.f32.xlu0 %v2269
        %v2287 = vpop.xlane.xlu0 %2286
        %2288 = vadd.xlane.f32.xlu0 %v2270
        %v2289 = vpop.xlane.xlu0 %2288
        %2290 = vadd.xlane.f32.xlu0 %v2271
        %v2291 = vpop.xlane.xlu0 %2290
        %2292 = vadd.xlane.f32.xlu0 %v2272
        %v2293 = vpop.xlane.xlu0 %2292
        %2294 = vadd.xlane.f32.xlu0 %v2273
        %v2295 = vpop.xlane.xlu0 %2294
        %2296 = vadd.xlane.f32.xlu0 %v2274
        %v2297 = vpop.xlane.xlu0 %2296
        %2298 = vadd.xlane.f32.xlu0 %v2275
        %v2299 = vpop.xlane.xlu0 %2298
        %2300 = vadd.xlane.f32.xlu0 %v2276
        %v2301 = vpop.xlane.xlu0 %2300
        %2302 = vadd.xlane.f32.xlu0 %v2277
        %v2303 = vpop.xlane.xlu0 %2302
        %2304 = vadd.xlane.f32.xlu0 %v2278
        %v2305 = vpop.xlane.xlu0 %2304
        %2306 = vadd.xlane.f32.xlu0 %v2279
        %v2307 = vpop.xlane.xlu0 %2306
        %2308 = vadd.xlane.f32.xlu0 %v2280
        %v2309 = vpop.xlane.xlu0 %2308
        %2310 = vadd.xlane.f32.xlu0 %v2281
        %v2311 = vpop.xlane.xlu0 %2310
        %2312 = vadd.xlane.f32.xlu0 %v2282
        %v2313 = vpop.xlane.xlu0 %2312
        %2314 = vadd.xlane.f32.xlu0 %v2283
        %v2315 = vpop.xlane.xlu0 %2314
        %v2316 = vrcp.pop %v2285
        %v2317 = vrcp.pop %v2287
        %v2318 = vrcp.pop %v2289
        %v2319 = vrcp.pop %v2291
        %v2320 = vrcp.pop %v2293
        %v2321 = vrcp.pop %v2295
        %v2322 = vrcp.pop %v2297
        %v2323 = vrcp.pop %v2299
        %v2324 = vrcp.pop %v2301
        %v2325 = vrcp.pop %v2303
        %v2326 = vrcp.pop %v2305
        %v2327 = vrcp.pop %v2307
        %v2328 = vrcp.pop %v2309
        %v2329 = vrcp.pop %v2311
        %v2330 = vrcp.pop %v2313
        %v2331 = vrcp.pop %v2315
        %v2332 = vmul.f32 %v2268, %v2316
        %v2333 = vmul.f32 %v2269, %v2317
        %v2334 = vmul.f32 %v2270, %v2318
        %v2335 = vmul.f32 %v2271, %v2319
        %v2336 = vmul.f32 %v2272, %v2320
        %v2337 = vmul.f32 %v2273, %v2321
        %v2338 = vmul.f32 %v2274, %v2322
        %v2339 = vmul.f32 %v2275, %v2323
        %v2340 = vmul.f32 %v2276, %v2324
        %v2341 = vmul.f32 %v2277, %v2325
        %v2342 = vmul.f32 %v2278, %v2326
        %v2343 = vmul.f32 %v2279, %v2327
        %v2344 = vmul.f32 %v2280, %v2328
        %v2345 = vmul.f32 %v2281, %v2329
        %v2346 = vmul.f32 %v2282, %v2330
        %v2347 = vmul.f32 %v2283, %v2331
        %2348 = vrot.lane.b32.xlu0 %v671, 112
        %v2349 = vpop.permute.xlu0 %2348
        %2350 = vrot.lane.b32.xlu0 %v676, 112
        %v2351 = vpop.permute.xlu0 %2350
        %2352 = vrot.lane.b32.xlu0 %v681, 112
        %v2353 = vpop.permute.xlu0 %2352
        %2354 = vrot.lane.b32.xlu0 %v686, 112
        %v2355 = vpop.permute.xlu0 %2354
        %2356 = vrot.lane.b32.xlu0 %v691, 112
        %v2357 = vpop.permute.xlu0 %2356
        %2358 = vrot.lane.b32.xlu0 %v696, 112
        %v2359 = vpop.permute.xlu0 %2358
        %2360 = vrot.lane.b32.xlu0 %v701, 112
        %v2361 = vpop.permute.xlu0 %2360
        %2362 = vrot.lane.b32.xlu0 %v706, 112
        %v2363 = vpop.permute.xlu0 %2362
        %2364 = vrot.lane.b32.xlu0 %v711, 112
        %v2365 = vpop.permute.xlu0 %2364
        %2366 = vrot.lane.b32.xlu0 %v716, 112
        %v2367 = vpop.permute.xlu0 %2366
        %2368 = vrot.lane.b32.xlu0 %v721, 112
        %v2369 = vpop.permute.xlu0 %2368
        %2370 = vrot.lane.b32.xlu0 %v726, 112
        %v2371 = vpop.permute.xlu0 %2370
        %2372 = vrot.lane.b32.xlu0 %v731, 112
        %v2373 = vpop.permute.xlu0 %2372
        %2374 = vrot.lane.b32.xlu0 %v736, 112
        %v2375 = vpop.permute.xlu0 %2374
        %2376 = vrot.lane.b32.xlu0 %v741, 112
        %v2377 = vpop.permute.xlu0 %2376
        %2378 = vrot.lane.b32.xlu0 %v746, 112
        %v2379 = vpop.permute.xlu0 %2378
        %2396 = vxpose.xlu0.b32.start [1/16] %v2349, 128
        %2397 = vxpose.xlu0.b32.cont [2/16] %v2351, 128
        %2398 = vxpose.xlu0.b32.cont [3/16] %v2353, 128
        %2399 = vxpose.xlu0.b32.cont [4/16] %v2355, 128
        %2400 = vxpose.xlu0.b32.cont [5/16] %v2357, 128
        %2401 = vxpose.xlu0.b32.cont [6/16] %v2359, 128
        %2402 = vxpose.xlu0.b32.cont [7/16] %v2361, 128
        %2403 = vxpose.xlu0.b32.cont [8/16] %v2363, 128
        %2404 = vxpose.xlu0.b32.cont [9/16] %v2365, 128
        %2405 = vxpose.xlu0.b32.cont [10/16] %v2367, 128
        %2406 = vxpose.xlu0.b32.cont [11/16] %v2369, 128
        %2407 = vxpose.xlu0.b32.cont [12/16] %v2371, 128
        %2408 = vxpose.xlu0.b32.cont [13/16] %v2373, 128
        %2409 = vxpose.xlu0.b32.cont [14/16] %v2375, 128
        %2410 = vxpose.xlu0.b32.cont [15/16] %v2377, 128
        %2411 = vxpose.xlu0.b32.end [16/16] %v2379, 128
        %v2412 = vpop.trf.xlu0
        %v2413 = vpop.trf.xlu0
        %v2414 = vpop.trf.xlu0
        %v2415 = vpop.trf.xlu0
        %v2416 = vpop.trf.xlu0
        %v2417 = vpop.trf.xlu0
        %v2418 = vpop.trf.xlu0
        %v2419 = vpop.trf.xlu0
        %v2420 = vpop.trf.xlu0
        %v2421 = vpop.trf.xlu0
        %v2422 = vpop.trf.xlu0
        %v2423 = vpop.trf.xlu0
        %v2424 = vpop.trf.xlu0
        %v2425 = vpop.trf.xlu0
        %v2426 = vpop.trf.xlu0
        %v2427 = vpop.trf.xlu0
        %2428 = vmatprep.subr.mxu0 0.0
        %2429 = vmatpush1.xpose.msra.mxu0 %v2332
        %2430 = vmatprep.subr.mxu0 0.0
        %2431 = vmatpush1.xpose.msra.mxu0 %v2333
        %2432 = vmatprep.subr.mxu0 0.0
        %2433 = vmatpush1.xpose.msra.mxu0 %v2334
        %2434 = vmatprep.subr.mxu0 0.0
        %2435 = vmatpush1.xpose.msra.mxu0 %v2335
        %2436 = vmatprep.subr.mxu0 0.0
        %2437 = vmatpush1.xpose.msra.mxu0 %v2336
        %2438 = vmatprep.subr.mxu0 0.0
        %2439 = vmatpush1.xpose.msra.mxu0 %v2337
        %2440 = vmatprep.subr.mxu0 0.0
        %2441 = vmatpush1.xpose.msra.mxu0 %v2338
        %2442 = vmatprep.subr.mxu0 0.0
        %2443 = vmatpush1.xpose.msra.mxu0 %v2339
        %2444 = vmatprep.subr.mxu0 0.0
        %2445 = vmatpush1.xpose.msra.mxu0 %v2340
        %2446 = vmatprep.subr.mxu0 0.0
        %2447 = vmatpush1.xpose.msra.mxu0 %v2341
        %2448 = vmatprep.subr.mxu0 0.0
        %2449 = vmatpush1.xpose.msra.mxu0 %v2342
        %2450 = vmatprep.subr.mxu0 0.0
        %2451 = vmatpush1.xpose.msra.mxu0 %v2343
        %2452 = vmatprep.subr.mxu0 0.0
        %2453 = vmatpush1.xpose.msra.mxu0 %v2344
        %2454 = vmatprep.subr.mxu0 0.0
        %2455 = vmatpush1.xpose.msra.mxu0 %v2345
        %2456 = vmatprep.subr.mxu0 0.0
        %2457 = vmatpush1.xpose.msra.mxu0 %v2346
        %2458 = vmatprep.subr.mxu0 0.0
        %2459 = vmatpush1.xpose.msra.mxu0 %v2347
        %2460 = vmatprep.subr.mxu0 0.0
        %2461 = vmatpush1.xpose.msra.mxu0 0.0
        %2462 = vmatprep.subr.mxu0 0.0
        %2463 = vmatpush1.xpose.msra.mxu0 0.0
        %2464 = vmatprep.subr.mxu0 0.0
        %2465 = vmatpush1.xpose.msra.mxu0 0.0
        %2466 = vmatprep.subr.mxu0 0.0
        %2467 = vmatpush1.xpose.msra.mxu0 0.0
        %2468 = vmatprep.subr.mxu0 0.0
        %2469 = vmatpush1.xpose.msra.mxu0 0.0
        %2470 = vmatprep.subr.mxu0 0.0
        %2471 = vmatpush1.xpose.msra.mxu0 0.0
        %2472 = vmatprep.subr.mxu0 0.0
        %2473 = vmatpush1.xpose.msra.mxu0 0.0
        %2474 = vmatprep.subr.mxu0 0.0
        %2475 = vmatpush1.xpose.msra.mxu0 0.0
        %2476 = vmatprep.subr.mxu0 0.0
        %2477 = vmatpush1.xpose.msra.mxu0 0.0
        %2478 = vmatprep.subr.mxu0 0.0
        %2479 = vmatpush1.xpose.msra.mxu0 0.0
        %2480 = vmatprep.subr.mxu0 0.0
        %2481 = vmatpush1.xpose.msra.mxu0 0.0
        %2482 = vmatprep.subr.mxu0 0.0
        %2483 = vmatpush1.xpose.msra.mxu0 0.0
        %2484 = vmatprep.subr.mxu0 0.0
        %2485 = vmatpush1.xpose.msra.mxu0 0.0
        %2486 = vmatprep.subr.mxu0 0.0
        %2487 = vmatpush1.xpose.msra.mxu0 0.0
        %2488 = vmatprep.subr.mxu0 0.0
        %2489 = vmatpush1.xpose.msra.mxu0 0.0
        %2490 = vmatprep.subr.mxu0 0.0
        %2491 = vmatpush1.xpose.msra.mxu0 0.0
        %2492 = vmatprep.mubr.f32.mxu0 0.0
        %2493 = vmatmul.mubr.f32.gmra.mrb[0].mxu0 %v2412
        %v2494 = vpop.f32.mrb[0].mxu0
        %v2495 = vadd.f32 0.0, %v2494
        %v2496 = vpop.f32.mrb[0].mxu0
        %2497 = vdwg.mxu0
        %2498 = vst [vmem:[%s228 + $0x10] sm:$0xff] %v2495
        %2499 = vrot.lane.b32.xlu0 %v373, 104
        %v2500 = vpop.permute.xlu0 %2499
        %2501 = vrot.lane.b32.xlu0 %v378, 104
        %v2502 = vpop.permute.xlu0 %2501
        %2503 = vrot.lane.b32.xlu0 %v383, 104
        %v2504 = vpop.permute.xlu0 %2503
        %2505 = vrot.lane.b32.xlu0 %v388, 104
        %v2506 = vpop.permute.xlu0 %2505
        %2507 = vrot.lane.b32.xlu0 %v393, 104
        %v2508 = vpop.permute.xlu0 %2507
        %2509 = vrot.lane.b32.xlu0 %v398, 104
        %v2510 = vpop.permute.xlu0 %2509
        %2511 = vrot.lane.b32.xlu0 %v403, 104
        %v2512 = vpop.permute.xlu0 %2511
        %2513 = vrot.lane.b32.xlu0 %v408, 104
        %v2514 = vpop.permute.xlu0 %2513
        %2515 = vrot.lane.b32.xlu0 %v413, 104
        %v2516 = vpop.permute.xlu0 %2515
        %2517 = vrot.lane.b32.xlu0 %v418, 104
        %v2518 = vpop.permute.xlu0 %2517
        %2519 = vrot.lane.b32.xlu0 %v423, 104
        %v2520 = vpop.permute.xlu0 %2519
        %2521 = vrot.lane.b32.xlu0 %v428, 104
        %v2522 = vpop.permute.xlu0 %2521
        %2523 = vrot.lane.b32.xlu0 %v433, 104
        %v2524 = vpop.permute.xlu0 %2523
        %2525 = vrot.lane.b32.xlu0 %v438, 104
        %v2526 = vpop.permute.xlu0 %2525
        %2527 = vrot.lane.b32.xlu0 %v443, 104
        %v2528 = vpop.permute.xlu0 %2527
        %2529 = vrot.lane.b32.xlu0 %v448, 104
        %v2530 = vpop.permute.xlu0 %2529
        %2531 = vrot.lane.b32.xlu0 %v522, 104
        %v2532 = vpop.permute.xlu0 %2531
        %2533 = vrot.lane.b32.xlu0 %v527, 104
        %v2534 = vpop.permute.xlu0 %2533
        %2535 = vrot.lane.b32.xlu0 %v532, 104
        %v2536 = vpop.permute.xlu0 %2535
        %2537 = vrot.lane.b32.xlu0 %v537, 104
        %v2538 = vpop.permute.xlu0 %2537
        %2539 = vrot.lane.b32.xlu0 %v542, 104
        %v2540 = vpop.permute.xlu0 %2539
        %2541 = vrot.lane.b32.xlu0 %v547, 104
        %v2542 = vpop.permute.xlu0 %2541
        %2543 = vrot.lane.b32.xlu0 %v552, 104
        %v2544 = vpop.permute.xlu0 %2543
        %2545 = vrot.lane.b32.xlu0 %v557, 104
        %v2546 = vpop.permute.xlu0 %2545
        %2547 = vrot.lane.b32.xlu0 %v562, 104
        %v2548 = vpop.permute.xlu0 %2547
        %2549 = vrot.lane.b32.xlu0 %v567, 104
        %v2550 = vpop.permute.xlu0 %2549
        %2551 = vrot.lane.b32.xlu0 %v572, 104
        %v2552 = vpop.permute.xlu0 %2551
        %2553 = vrot.lane.b32.xlu0 %v577, 104
        %v2554 = vpop.permute.xlu0 %2553
        %2555 = vrot.lane.b32.xlu0 %v582, 104
        %v2556 = vpop.permute.xlu0 %2555
        %2557 = vrot.lane.b32.xlu0 %v587, 104
        %v2558 = vpop.permute.xlu0 %2557
        %2559 = vrot.lane.b32.xlu0 %v592, 104
        %v2560 = vpop.permute.xlu0 %2559
        %2561 = vrot.lane.b32.xlu0 %v597, 104
        %v2562 = vpop.permute.xlu0 %2561
        %v2563 = vsel %vm754, %v2500, 0
        %v2565 = vsel %vm754, %v2502, 0
        %v2567 = vsel %vm754, %v2504, 0
        %v2569 = vsel %vm754, %v2506, 0
        %v2571 = vsel %vm754, %v2508, 0
        %v2573 = vsel %vm754, %v2510, 0
        %v2575 = vsel %vm754, %v2512, 0
        %v2577 = vsel %vm754, %v2514, 0
        %v2579 = vsel %vm754, %v2516, 0
        %v2581 = vsel %vm754, %v2518, 0
        %v2583 = vsel %vm754, %v2520, 0
        %v2585 = vsel %vm754, %v2522, 0
        %v2587 = vsel %vm754, %v2524, 0
        %v2589 = vsel %vm754, %v2526, 0
        %v2591 = vsel %vm754, %v2528, 0
        %v2593 = vsel %vm754, %v2530, 0
        %v2595 = vsel %vm754, %v2532, 0
        %v2597 = vsel %vm754, %v2534, 0
        %v2599 = vsel %vm754, %v2536, 0
        %v2601 = vsel %vm754, %v2538, 0
        %v2603 = vsel %vm754, %v2540, 0
        %v2605 = vsel %vm754, %v2542, 0
        %v2607 = vsel %vm754, %v2544, 0
        %v2609 = vsel %vm754, %v2546, 0
        %v2611 = vsel %vm754, %v2548, 0
        %v2613 = vsel %vm754, %v2550, 0
        %v2615 = vsel %vm754, %v2552, 0
        %v2617 = vsel %vm754, %v2554, 0
        %v2619 = vsel %vm754, %v2556, 0
        %v2621 = vsel %vm754, %v2558, 0
        %v2623 = vsel %vm754, %v2560, 0
        %v2625 = vsel %vm754, %v2562, 0
        %2627 = vmatprep.subr.mxu0 0.0
        %2628 = vmatpush1.xpose.msra.mxu0 %v2595
        %2629 = vmatprep.subr.mxu0 0.0
        %2630 = vmatpush1.xpose.msra.mxu0 %v2597
        %2631 = vmatprep.subr.mxu0 0.0
        %2632 = vmatpush1.xpose.msra.mxu0 %v2599
        %2633 = vmatprep.subr.mxu0 0.0
        %2634 = vmatpush1.xpose.msra.mxu0 %v2601
        %2635 = vmatprep.subr.mxu0 0.0
        %2636 = vmatpush1.xpose.msra.mxu0 %v2603
        %2637 = vmatprep.subr.mxu0 0.0
        %2638 = vmatpush1.xpose.msra.mxu0 %v2605
        %2639 = vmatprep.subr.mxu0 0.0
        %2640 = vmatpush1.xpose.msra.mxu0 %v2607
        %2641 = vmatprep.subr.mxu0 0.0
        %2642 = vmatpush1.xpose.msra.mxu0 %v2609
        %2643 = vmatprep.subr.mxu0 0.0
        %2644 = vmatpush1.xpose.msra.mxu0 %v2611
        %2645 = vmatprep.subr.mxu0 0.0
        %2646 = vmatpush1.xpose.msra.mxu0 %v2613
        %2647 = vmatprep.subr.mxu0 0.0
        %2648 = vmatpush1.xpose.msra.mxu0 %v2615
        %2649 = vmatprep.subr.mxu0 0.0
        %2650 = vmatpush1.xpose.msra.mxu0 %v2617
        %2651 = vmatprep.subr.mxu0 0.0
        %2652 = vmatpush1.xpose.msra.mxu0 %v2619
        %2653 = vmatprep.subr.mxu0 0.0
        %2654 = vmatpush1.xpose.msra.mxu0 %v2621
        %2655 = vmatprep.subr.mxu0 0.0
        %2656 = vmatpush1.xpose.msra.mxu0 %v2623
        %2657 = vmatprep.subr.mxu0 0.0
        %2658 = vmatpush1.xpose.msra.mxu0 %v2625
        %2659 = vmatprep.subr.mxu0 0.0
        %2660 = vmatpush1.xpose.msra.mxu0 0.0
        %2661 = vmatprep.subr.mxu0 0.0
        %2662 = vmatpush1.xpose.msra.mxu0 0.0
        %2663 = vmatprep.subr.mxu0 0.0
        %2664 = vmatpush1.xpose.msra.mxu0 0.0
        %2665 = vmatprep.subr.mxu0 0.0
        %2666 = vmatpush1.xpose.msra.mxu0 0.0
        %2667 = vmatprep.subr.mxu0 0.0
        %2668 = vmatpush1.xpose.msra.mxu0 0.0
        %2669 = vmatprep.subr.mxu0 0.0
        %2670 = vmatpush1.xpose.msra.mxu0 0.0
        %2671 = vmatprep.subr.mxu0 0.0
        %2672 = vmatpush1.xpose.msra.mxu0 0.0
        %2673 = vmatprep.subr.mxu0 0.0
        %2674 = vmatpush1.xpose.msra.mxu0 0.0
        %2675 = vmatprep.subr.mxu0 0.0
        %2676 = vmatpush1.xpose.msra.mxu0 0.0
        %2677 = vmatprep.subr.mxu0 0.0
        %2678 = vmatpush1.xpose.msra.mxu0 0.0
        %2679 = vmatprep.subr.mxu0 0.0
        %2680 = vmatpush1.xpose.msra.mxu0 0.0
        %2681 = vmatprep.subr.mxu0 0.0
        %2682 = vmatpush1.xpose.msra.mxu0 0.0
        %2683 = vmatprep.subr.mxu0 0.0
        %2684 = vmatpush1.xpose.msra.mxu0 0.0
        %2685 = vmatprep.subr.mxu0 0.0
        %2686 = vmatpush1.xpose.msra.mxu0 0.0
        %2687 = vmatprep.subr.mxu0 0.0
        %2688 = vmatpush1.xpose.msra.mxu0 0.0
        %2689 = vmatprep.subr.mxu0 0.0
        %2690 = vmatpush1.xpose.msra.mxu0 0.0
        %2691 = vmatprep.mubr.f32.mxu0 0.0
        %2692 = vmatmul.mubr.f32.gmra.mrb[0].mxu0 %v2563
        %v2693 = vpop.f32.mrb[0].mxu0
        %v2694 = vadd.f32 0.0, %v2693
        %v2695 = vpop.f32.mrb[0].mxu0
        %2696 = vmatprep.mubr.f32.mxu0 0.0
        %2697 = vmatmul.mubr.f32.gmra.mrb[0].mxu0 %v2565
        %v2698 = vpop.f32.mrb[0].mxu0
        %v2699 = vadd.f32 0.0, %v2698
        %v2700 = vpop.f32.mrb[0].mxu0
        %2701 = vmatprep.mubr.f32.mxu0 0.0
        %2702 = vmatmul.mubr.f32.gmra.mrb[0].mxu0 %v2567
        %v2703 = vpop.f32.mrb[0].mxu0
        %v2704 = vadd.f32 0.0, %v2703
        %v2705 = vpop.f32.mrb[0].mxu0
        %2706 = vmatprep.mubr.f32.mxu0 0.0
        %2707 = vmatmul.mubr.f32.gmra.mrb[0].mxu0 %v2569
        %v2708 = vpop.f32.mrb[0].mxu0
        %v2709 = vadd.f32 0.0, %v2708
        %v2710 = vpop.f32.mrb[0].mxu0
        %2711 = vmatprep.mubr.f32.mxu0 0.0
        %2712 = vmatmul.mubr.f32.gmra.mrb[0].mxu0 %v2571
        %v2713 = vpop.f32.mrb[0].mxu0
        %v2714 = vadd.f32 0.0, %v2713
        %v2715 = vpop.f32.mrb[0].mxu0
        %2716 = vmatprep.mubr.f32.mxu0 0.0
        %2717 = vmatmul.mubr.f32.gmra.mrb[0].mxu0 %v2573
        %v2718 = vpop.f32.mrb[0].mxu0
        %v2719 = vadd.f32 0.0, %v2718
        %v2720 = vpop.f32.mrb[0].mxu0
        %2721 = vmatprep.mubr.f32.mxu0 0.0
        %2722 = vmatmul.mubr.f32.gmra.mrb[0].mxu0 %v2575
        %v2723 = vpop.f32.mrb[0].mxu0
        %v2724 = vadd.f32 0.0, %v2723
        %v2725 = vpop.f32.mrb[0].mxu0
        %2726 = vmatprep.mubr.f32.mxu0 0.0
        %2727 = vmatmul.mubr.f32.gmra.mrb[0].mxu0 %v2577
        %v2728 = vpop.f32.mrb[0].mxu0
        %v2729 = vadd.f32 0.0, %v2728
        %v2730 = vpop.f32.mrb[0].mxu0
        %2731 = vmatprep.mubr.f32.mxu0 0.0
        %2732 = vmatmul.mubr.f32.gmra.mrb[0].mxu0 %v2579
        %v2733 = vpop.f32.mrb[0].mxu0
        %v2734 = vadd.f32 0.0, %v2733
        %v2735 = vpop.f32.mrb[0].mxu0
        %2736 = vmatprep.mubr.f32.mxu0 0.0
        %2737 = vmatmul.mubr.f32.gmra.mrb[0].mxu0 %v2581
        %v2738 = vpop.f32.mrb[0].mxu0
        %v2739 = vadd.f32 0.0, %v2738
        %v2740 = vpop.f32.mrb[0].mxu0
        %2741 = vmatprep.mubr.f32.mxu0 0.0
        %2742 = vmatmul.mubr.f32.gmra.mrb[0].mxu0 %v2583
        %v2743 = vpop.f32.mrb[0].mxu0
        %v2744 = vadd.f32 0.0, %v2743
        %v2745 = vpop.f32.mrb[0].mxu0
        %2746 = vmatprep.mubr.f32.mxu0 0.0
        %2747 = vmatmul.mubr.f32.gmra.mrb[0].mxu0 %v2585
        %v2748 = vpop.f32.mrb[0].mxu0
        %v2749 = vadd.f32 0.0, %v2748
        %v2750 = vpop.f32.mrb[0].mxu0
        %2751 = vmatprep.mubr.f32.mxu0 0.0
        %2752 = vmatmul.mubr.f32.gmra.mrb[0].mxu0 %v2587
        %v2753 = vpop.f32.mrb[0].mxu0
        %v2754 = vadd.f32 0.0, %v2753
        %v2755 = vpop.f32.mrb[0].mxu0
        %2756 = vmatprep.mubr.f32.mxu0 0.0
        %2757 = vmatmul.mubr.f32.gmra.mrb[0].mxu0 %v2589
        %v2758 = vpop.f32.mrb[0].mxu0
        %v2759 = vadd.f32 0.0, %v2758
        %v2760 = vpop.f32.mrb[0].mxu0
        %2761 = vmatprep.mubr.f32.mxu0 0.0
        %2762 = vmatmul.mubr.f32.gmra.mrb[0].mxu0 %v2591
        %v2763 = vpop.f32.mrb[0].mxu0
        %v2764 = vadd.f32 0.0, %v2763
        %v2765 = vpop.f32.mrb[0].mxu0
        %2766 = vmatprep.mubr.f32.mxu0 0.0
        %2767 = vmatmul.mubr.f32.gmra.mrb[0].mxu0 %v2593
        %v2768 = vpop.f32.mrb[0].mxu0
        %v2769 = vadd.f32 0.0, %v2768
        %v2770 = vpop.f32.mrb[0].mxu0
        %2771 = vdwg.mxu0
        %v2772 = vsel %vm1001, %v2694, -1e+30
        %v2773 = vsel %vm1001, %v2699, -1e+30
        %v2774 = vsel %vm1001, %v2704, -1e+30
        %v2775 = vsel %vm1001, %v2709, -1e+30
        %v2776 = vsel %vm1001, %v2714, -1e+30
        %v2777 = vsel %vm1001, %v2719, -1e+30
        %v2778 = vsel %vm1001, %v2724, -1e+30
        %v2779 = vsel %vm1001, %v2729, -1e+30
        %v2780 = vsel %vm1001, %v2734, -1e+30
        %v2781 = vsel %vm1001, %v2739, -1e+30
        %v2782 = vsel %vm1001, %v2744, -1e+30
        %v2783 = vsel %vm1001, %v2749, -1e+30
        %v2784 = vsel %vm1001, %v2754, -1e+30
        %v2785 = vsel %vm1001, %v2759, -1e+30
        %v2786 = vsel %vm1001, %v2764, -1e+30
        %v2787 = vsel %vm1001, %v2769, -1e+30
        %2788 = vmax.xlane.f32.xlu0 %v2772
        %v2789 = vpop.xlane.xlu0 %2788
        %2790 = vmax.xlane.f32.xlu0 %v2773
        %v2791 = vpop.xlane.xlu0 %2790
        %2792 = vmax.xlane.f32.xlu0 %v2774
        %v2793 = vpop.xlane.xlu0 %2792
        %2794 = vmax.xlane.f32.xlu0 %v2775
        %v2795 = vpop.xlane.xlu0 %2794
        %2796 = vmax.xlane.f32.xlu0 %v2776
        %v2797 = vpop.xlane.xlu0 %2796
        %2798 = vmax.xlane.f32.xlu0 %v2777
        %v2799 = vpop.xlane.xlu0 %2798
        %2800 = vmax.xlane.f32.xlu0 %v2778
        %v2801 = vpop.xlane.xlu0 %2800
        %2802 = vmax.xlane.f32.xlu0 %v2779
        %v2803 = vpop.xlane.xlu0 %2802
        %2804 = vmax.xlane.f32.xlu0 %v2780
        %v2805 = vpop.xlane.xlu0 %2804
        %2806 = vmax.xlane.f32.xlu0 %v2781
        %v2807 = vpop.xlane.xlu0 %2806
        %2808 = vmax.xlane.f32.xlu0 %v2782
        %v2809 = vpop.xlane.xlu0 %2808
        %2810 = vmax.xlane.f32.xlu0 %v2783
        %v2811 = vpop.xlane.xlu0 %2810
        %2812 = vmax.xlane.f32.xlu0 %v2784
        %v2813 = vpop.xlane.xlu0 %2812
        %2814 = vmax.xlane.f32.xlu0 %v2785
        %v2815 = vpop.xlane.xlu0 %2814
        %2816 = vmax.xlane.f32.xlu0 %v2786
        %v2817 = vpop.xlane.xlu0 %2816
        %2818 = vmax.xlane.f32.xlu0 %v2787
        %v2819 = vpop.xlane.xlu0 %2818
        %v2820 = vsub.f32 %v2772, %v2789
        %v2821 = vsub.f32 %v2773, %v2791
        %v2822 = vsub.f32 %v2774, %v2793
        %v2823 = vsub.f32 %v2775, %v2795
        %v2824 = vsub.f32 %v2776, %v2797
        %v2825 = vsub.f32 %v2777, %v2799
        %v2826 = vsub.f32 %v2778, %v2801
        %v2827 = vsub.f32 %v2779, %v2803
        %v2828 = vsub.f32 %v2780, %v2805
        %v2829 = vsub.f32 %v2781, %v2807
        %v2830 = vsub.f32 %v2782, %v2809
        %v2831 = vsub.f32 %v2783, %v2811
        %v2832 = vsub.f32 %v2784, %v2813
        %v2833 = vsub.f32 %v2785, %v2815
        %v2834 = vsub.f32 %v2786, %v2817
        %v2835 = vsub.f32 %v2787, %v2819
        %v2836 = vmul.f32 %v2820, 1.442695
        %v2837 = vpow.pop %v2836
        %v2838 = vmul.f32 %v2821, 1.442695
        %v2839 = vpow.pop %v2838
        %v2840 = vmul.f32 %v2822, 1.442695
        %v2841 = vpow.pop %v2840
        %v2842 = vmul.f32 %v2823, 1.442695
        %v2843 = vpow.pop %v2842
        %v2844 = vmul.f32 %v2824, 1.442695
        %v2845 = vpow.pop %v2844
        %v2846 = vmul.f32 %v2825, 1.442695
        %v2847 = vpow.pop %v2846
        %v2848 = vmul.f32 %v2826, 1.442695
        %v2849 = vpow.pop %v2848
        %v2850 = vmul.f32 %v2827, 1.442695
        %v2851 = vpow.pop %v2850
        %v2852 = vmul.f32 %v2828, 1.442695
        %v2853 = vpow.pop %v2852
        %v2854 = vmul.f32 %v2829, 1.442695
        %v2855 = vpow.pop %v2854
        %v2856 = vmul.f32 %v2830, 1.442695
        %v2857 = vpow.pop %v2856
        %v2858 = vmul.f32 %v2831, 1.442695
        %v2859 = vpow.pop %v2858
        %v2860 = vmul.f32 %v2832, 1.442695
        %v2861 = vpow.pop %v2860
        %v2862 = vmul.f32 %v2833, 1.442695
        %v2863 = vpow.pop %v2862
        %v2864 = vmul.f32 %v2834, 1.442695
        %v2865 = vpow.pop %v2864
        %v2866 = vmul.f32 %v2835, 1.442695
        %v2867 = vpow.pop %v2866
        %v2868 = vsel %vm1099, %v2837, 0.0
        %v2869 = vsel %vm1099, %v2839, 0.0
        %v2870 = vsel %vm1099, %v2841, 0.0
        %v2871 = vsel %vm1099, %v2843, 0.0
        %v2872 = vsel %vm1099, %v2845, 0.0
        %v2873 = vsel %vm1099, %v2847, 0.0
        %v2874 = vsel %vm1099, %v2849, 0.0
        %v2875 = vsel %vm1099, %v2851, 0.0
        %v2876 = vsel %vm1099, %v2853, 0.0
        %v2877 = vsel %vm1099, %v2855, 0.0
        %v2878 = vsel %vm1099, %v2857, 0.0
        %v2879 = vsel %vm1099, %v2859, 0.0
        %v2880 = vsel %vm1099, %v2861, 0.0
        %v2881 = vsel %vm1099, %v2863, 0.0
        %v2882 = vsel %vm1099, %v2865, 0.0
        %v2883 = vsel %vm1099, %v2867, 0.0
        %2884 = vadd.xlane.f32.xlu0 %v2868
        %v2885 = vpop.xlane.xlu0 %2884
        %2886 = vadd.xlane.f32.xlu0 %v2869
        %v2887 = vpop.xlane.xlu0 %2886
        %2888 = vadd.xlane.f32.xlu0 %v2870
        %v2889 = vpop.xlane.xlu0 %2888
        %2890 = vadd.xlane.f32.xlu0 %v2871
        %v2891 = vpop.xlane.xlu0 %2890
        %2892 = vadd.xlane.f32.xlu0 %v2872
        %v2893 = vpop.xlane.xlu0 %2892
        %2894 = vadd.xlane.f32.xlu0 %v2873
        %v2895 = vpop.xlane.xlu0 %2894
        %2896 = vadd.xlane.f32.xlu0 %v2874
        %v2897 = vpop.xlane.xlu0 %2896
        %2898 = vadd.xlane.f32.xlu0 %v2875
        %v2899 = vpop.xlane.xlu0 %2898
        %2900 = vadd.xlane.f32.xlu0 %v2876
        %v2901 = vpop.xlane.xlu0 %2900
        %2902 = vadd.xlane.f32.xlu0 %v2877
        %v2903 = vpop.xlane.xlu0 %2902
        %2904 = vadd.xlane.f32.xlu0 %v2878
        %v2905 = vpop.xlane.xlu0 %2904
        %2906 = vadd.xlane.f32.xlu0 %v2879
        %v2907 = vpop.xlane.xlu0 %2906
        %2908 = vadd.xlane.f32.xlu0 %v2880
        %v2909 = vpop.xlane.xlu0 %2908
        %2910 = vadd.xlane.f32.xlu0 %v2881
        %v2911 = vpop.xlane.xlu0 %2910
        %2912 = vadd.xlane.f32.xlu0 %v2882
        %v2913 = vpop.xlane.xlu0 %2912
        %2914 = vadd.xlane.f32.xlu0 %v2883
        %v2915 = vpop.xlane.xlu0 %2914
        %v2916 = vrcp.pop %v2885
        %v2917 = vrcp.pop %v2887
        %v2918 = vrcp.pop %v2889
        %v2919 = vrcp.pop %v2891
        %v2920 = vrcp.pop %v2893
        %v2921 = vrcp.pop %v2895
        %v2922 = vrcp.pop %v2897
        %v2923 = vrcp.pop %v2899
        %v2924 = vrcp.pop %v2901
        %v2925 = vrcp.pop %v2903
        %v2926 = vrcp.pop %v2905
        %v2927 = vrcp.pop %v2907
        %v2928 = vrcp.pop %v2909
        %v2929 = vrcp.pop %v2911
        %v2930 = vrcp.pop %v2913
        %v2931 = vrcp.pop %v2915
        %v2932 = vmul.f32 %v2868, %v2916
        %v2933 = vmul.f32 %v2869, %v2917
        %v2934 = vmul.f32 %v2870, %v2918
        %v2935 = vmul.f32 %v2871, %v2919
        %v2936 = vmul.f32 %v2872, %v2920
        %v2937 = vmul.f32 %v2873, %v2921
        %v2938 = vmul.f32 %v2874, %v2922
        %v2939 = vmul.f32 %v2875, %v2923
        %v2940 = vmul.f32 %v2876, %v2924
        %v2941 = vmul.f32 %v2877, %v2925
        %v2942 = vmul.f32 %v2878, %v2926
        %v2943 = vmul.f32 %v2879, %v2927
        %v2944 = vmul.f32 %v2880, %v2928
        %v2945 = vmul.f32 %v2881, %v2929
        %v2946 = vmul.f32 %v2882, %v2930
        %v2947 = vmul.f32 %v2883, %v2931
        %2948 = vrot.lane.b32.xlu0 %v671, 104
        %v2949 = vpop.permute.xlu0 %2948
        %2950 = vrot.lane.b32.xlu0 %v676, 104
        %v2951 = vpop.permute.xlu0 %2950
        %2952 = vrot.lane.b32.xlu0 %v681, 104
        %v2953 = vpop.permute.xlu0 %2952
        %2954 = vrot.lane.b32.xlu0 %v686, 104
        %v2955 = vpop.permute.xlu0 %2954
        %2956 = vrot.lane.b32.xlu0 %v691, 104
        %v2957 = vpop.permute.xlu0 %2956
        %2958 = vrot.lane.b32.xlu0 %v696, 104
        %v2959 = vpop.permute.xlu0 %2958
        %2960 = vrot.lane.b32.xlu0 %v701, 104
        %v2961 = vpop.permute.xlu0 %2960
        %2962 = vrot.lane.b32.xlu0 %v706, 104
        %v2963 = vpop.permute.xlu0 %2962
        %2964 = vrot.lane.b32.xlu0 %v711, 104
        %v2965 = vpop.permute.xlu0 %2964
        %2966 = vrot.lane.b32.xlu0 %v716, 104
        %v2967 = vpop.permute.xlu0 %2966
        %2968 = vrot.lane.b32.xlu0 %v721, 104
        %v2969 = vpop.permute.xlu0 %2968
        %2970 = vrot.lane.b32.xlu0 %v726, 104
        %v2971 = vpop.permute.xlu0 %2970
        %2972 = vrot.lane.b32.xlu0 %v731, 104
        %v2973 = vpop.permute.xlu0 %2972
        %2974 = vrot.lane.b32.xlu0 %v736, 104
        %v2975 = vpop.permute.xlu0 %2974
        %2976 = vrot.lane.b32.xlu0 %v741, 104
        %v2977 = vpop.permute.xlu0 %2976
        %2978 = vrot.lane.b32.xlu0 %v746, 104
        %v2979 = vpop.permute.xlu0 %2978
        %2996 = vxpose.xlu0.b32.start [1/16] %v2949, 128
        %2997 = vxpose.xlu0.b32.cont [2/16] %v2951, 128
        %2998 = vxpose.xlu0.b32.cont [3/16] %v2953, 128
        %2999 = vxpose.xlu0.b32.cont [4/16] %v2955, 128
        %3000 = vxpose.xlu0.b32.cont [5/16] %v2957, 128
        %3001 = vxpose.xlu0.b32.cont [6/16] %v2959, 128
        %3002 = vxpose.xlu0.b32.cont [7/16] %v2961, 128
        %3003 = vxpose.xlu0.b32.cont [8/16] %v2963, 128
        %3004 = vxpose.xlu0.b32.cont [9/16] %v2965, 128
        %3005 = vxpose.xlu0.b32.cont [10/16] %v2967, 128
        %3006 = vxpose.xlu0.b32.cont [11/16] %v2969, 128
        %3007 = vxpose.xlu0.b32.cont [12/16] %v2971, 128
        %3008 = vxpose.xlu0.b32.cont [13/16] %v2973, 128
        %3009 = vxpose.xlu0.b32.cont [14/16] %v2975, 128
        %3010 = vxpose.xlu0.b32.cont [15/16] %v2977, 128
        %3011 = vxpose.xlu0.b32.end [16/16] %v2979, 128
        %v3012 = vpop.trf.xlu0
        %v3013 = vpop.trf.xlu0
        %v3014 = vpop.trf.xlu0
        %v3015 = vpop.trf.xlu0
        %v3016 = vpop.trf.xlu0
        %v3017 = vpop.trf.xlu0
        %v3018 = vpop.trf.xlu0
        %v3019 = vpop.trf.xlu0
        %v3020 = vpop.trf.xlu0
        %v3021 = vpop.trf.xlu0
        %v3022 = vpop.trf.xlu0
        %v3023 = vpop.trf.xlu0
        %v3024 = vpop.trf.xlu0
        %v3025 = vpop.trf.xlu0
        %v3026 = vpop.trf.xlu0
        %v3027 = vpop.trf.xlu0
        %3028 = vmatprep.subr.mxu0 0.0
        %3029 = vmatpush1.xpose.msra.mxu0 %v2932
        %3030 = vmatprep.subr.mxu0 0.0
        %3031 = vmatpush1.xpose.msra.mxu0 %v2933
        %3032 = vmatprep.subr.mxu0 0.0
        %3033 = vmatpush1.xpose.msra.mxu0 %v2934
        %3034 = vmatprep.subr.mxu0 0.0
        %3035 = vmatpush1.xpose.msra.mxu0 %v2935
        %3036 = vmatprep.subr.mxu0 0.0
        %3037 = vmatpush1.xpose.msra.mxu0 %v2936
        %3038 = vmatprep.subr.mxu0 0.0
        %3039 = vmatpush1.xpose.msra.mxu0 %v2937
        %3040 = vmatprep.subr.mxu0 0.0
        %3041 = vmatpush1.xpose.msra.mxu0 %v2938
        %3042 = vmatprep.subr.mxu0 0.0
        %3043 = vmatpush1.xpose.msra.mxu0 %v2939
        %3044 = vmatprep.subr.mxu0 0.0
        %3045 = vmatpush1.xpose.msra.mxu0 %v2940
        %3046 = vmatprep.subr.mxu0 0.0
        %3047 = vmatpush1.xpose.msra.mxu0 %v2941
        %3048 = vmatprep.subr.mxu0 0.0
        %3049 = vmatpush1.xpose.msra.mxu0 %v2942
        %3050 = vmatprep.subr.mxu0 0.0
        %3051 = vmatpush1.xpose.msra.mxu0 %v2943
        %3052 = vmatprep.subr.mxu0 0.0
        %3053 = vmatpush1.xpose.msra.mxu0 %v2944
        %3054 = vmatprep.subr.mxu0 0.0
        %3055 = vmatpush1.xpose.msra.mxu0 %v2945
        %3056 = vmatprep.subr.mxu0 0.0
        %3057 = vmatpush1.xpose.msra.mxu0 %v2946
        %3058 = vmatprep.subr.mxu0 0.0
        %3059 = vmatpush1.xpose.msra.mxu0 %v2947
        %3060 = vmatprep.subr.mxu0 0.0
        %3061 = vmatpush1.xpose.msra.mxu0 0.0
        %3062 = vmatprep.subr.mxu0 0.0
        %3063 = vmatpush1.xpose.msra.mxu0 0.0
        %3064 = vmatprep.subr.mxu0 0.0
        %3065 = vmatpush1.xpose.msra.mxu0 0.0
        %3066 = vmatprep.subr.mxu0 0.0
        %3067 = vmatpush1.xpose.msra.mxu0 0.0
        %3068 = vmatprep.subr.mxu0 0.0
        %3069 = vmatpush1.xpose.msra.mxu0 0.0
        %3070 = vmatprep.subr.mxu0 0.0
        %3071 = vmatpush1.xpose.msra.mxu0 0.0
        %3072 = vmatprep.subr.mxu0 0.0
        %3073 = vmatpush1.xpose.msra.mxu0 0.0
        %3074 = vmatprep.subr.mxu0 0.0
        %3075 = vmatpush1.xpose.msra.mxu0 0.0
        %3076 = vmatprep.subr.mxu0 0.0
        %3077 = vmatpush1.xpose.msra.mxu0 0.0
        %3078 = vmatprep.subr.mxu0 0.0
        %3079 = vmatpush1.xpose.msra.mxu0 0.0
        %3080 = vmatprep.subr.mxu0 0.0
        %3081 = vmatpush1.xpose.msra.mxu0 0.0
        %3082 = vmatprep.subr.mxu0 0.0
        %3083 = vmatpush1.xpose.msra.mxu0 0.0
        %3084 = vmatprep.subr.mxu0 0.0
        %3085 = vmatpush1.xpose.msra.mxu0 0.0
        %3086 = vmatprep.subr.mxu0 0.0
        %3087 = vmatpush1.xpose.msra.mxu0 0.0
        %3088 = vmatprep.subr.mxu0 0.0
        %3089 = vmatpush1.xpose.msra.mxu0 0.0
        %3090 = vmatprep.subr.mxu0 0.0
        %3091 = vmatpush1.xpose.msra.mxu0 0.0
        %3092 = vmatprep.mubr.f32.mxu0 0.0
        %3093 = vmatmul.mubr.f32.gmra.mrb[0].mxu0 %v3012
        %v3094 = vpop.f32.mrb[0].mxu0
        %v3095 = vadd.f32 0.0, %v3094
        %v3096 = vpop.f32.mrb[0].mxu0
        %3097 = vdwg.mxu0
        %3098 = vst [vmem:[%s228 + $0x18] sm:$0xff] %v3095
        %s3099 = sand.u32 %s142, 1
        %s3100 = scalar_lea.sflag [#allocation3], %s3099
        %s3101 = sand.u32 %s142, 1
        %s3102 = smul.addr %s3101, 32
        %s3103 = scalar_lea.vmem [#allocation2], %s3102
        // Predicated region
        $region41: #{tpu_custom_call.1} parent=39 // pred_check
          %p3104 = pneg %p152
        $region42: #{tpu_custom_call.1} parent=39 // pred_check_branch
          %3106 = sbr.rel (%p3104) target = $region44
        $region43: #{tpu_custom_call.1} parent=39 // pred_region
          %s3108 = ssub.s32 512, 512
          %3109 = vsyncadd %s3100, %s3108
          %s3110 = smul.addr %s19, 4
          %s3111 = smul.addr %s3110, 128
          %s3112 = scalar_lea.hbm %s5, %s3111
          %s3113 = sshll.u32 %s3103, 4
          %s3114 = int_to_ptr.vmem [resolvable:$true] %s3113
          %3119 = dma.vmem_to_hbm [thread:$0]  %s3114, 512, %s3112, %s3100, 128, 128, 8
        $region44: #{tpu_custom_call.1} parent=39 // pred_fallthru
          _
      $region40: #{tpu_custom_call.1} parent=5 // pred_fallthru
        _
      %p3120 = scmp.le.s32.totalorder 2, %s14
      // Predicated region
      $region45: #{tpu_custom_call.1} parent=5 // pred_check
        %p3121 = pneg %p3120
      $region46: #{tpu_custom_call.1} parent=5 // pred_check_branch
        %3123 = sbr.rel (%p3121) target = $region48
      $region47: #{tpu_custom_call.1} parent=5 // pred_region
        %s3124 = ssub.s32 %s14, 2
        // Predicated region
        $region49: #{tpu_custom_call.1} parent=47 // pred_check
          %p3125 = pneg %p158
        $region50: #{tpu_custom_call.1} parent=47 // pred_check_branch
          %3127 = sbr.rel (%p3125) target = $region52
        $region51: #{tpu_custom_call.1} parent=47 // pred_region
          %s3128 = sand.u32 %s143, 1
          %s3129 = scalar_lea.sflag [#allocation3], %s3128
          %s3130 = sand.u32 %s143, 1
          %s3131 = smul.addr %s3130, 32
          %s3132 = scalar_lea.vmem [#allocation2], %s3131
          %3133 = dma.done %s3129, 512
        $region52: #{tpu_custom_call.1} parent=47 // pred_fallthru
          _
      $region48: #{tpu_custom_call.1} parent=5 // pred_fallthru
        _
    $region6: #{tpu_custom_call.1} parent=1 // loop_footer
      %s18 = sadd.s32 1, %s14
    $region7: #{tpu_custom_call.1} parent=1 // loop_footer_branch
      %13 = sbr.rel target = $region3
    $region8: #{tpu_custom_call.1} parent=1 // loop_exit
      _
    %3134 = vsyncpa [#allocation3], 1
    %s3135 = scalar_lea.sflag [#allocation3], 1
    %3136 = vsyncpa %s3135, 1

</llo_original>
